<compile_context>
chip_gen: v6e
topology: v6e:2x2x1
jax: 0.10.0
libtpu: 0.0.40
codegen_flags: <defaults>
</compile_context>

<pallas_src>
import math
import numpy as np
import jax
import jax.numpy as jnp
from jax.experimental import pallas as pl
from jax.experimental.pallas import tpu as pltpu


def _round_up(x, m):
    return -(-x // m) * m


def _fold_bn(p, eps=1e-5):
    """Fold eval-mode BatchNorm into the conv weight / bias.

    Returns w with layout (KH, KW, Cout, Cin) and b with shape (Cout, 1)."""
    scale = p["gamma"] / jnp.sqrt(p["var"] + eps)
    w = p["w"].astype(jnp.float32) * scale[None, None, None, :]   # HWIO
    w = jnp.transpose(w, (0, 1, 3, 2))                            # (KH, KW, Cout, Cin)
    b = (p["beta"] - p["mean"] * scale).astype(jnp.float32).reshape(-1, 1)
    return w, b


def _pack_taps(w):
    """(KH, KW, Cout, Cin) -> (Cout, KH*KW*Cin); row-block order = tap-major
    (matches the im2col row layout built inside the kernel)."""
    kh, kw, co, ci = w.shape
    return jnp.transpose(w, (2, 0, 1, 3)).reshape(co, kh * kw * ci)


def inception_block_forward(params, x_nchw, eps=1e-5, compute_dtype=jnp.float32):
    """InceptionBlock.forward (NCHW in / NCHW out) as one fused Pallas kernel."""
    N, Cin, H, W = x_nchw.shape
    cdt = compute_dtype                     # matmul operand dtype (f32 or bf16)
    CinP = _round_up(Cin, 8)                # pad matmul K dim to a sublane multiple

    # ---- flat-layout geometry: spatial (row-major, stride WP) on the lane axis ----
    # WP chosen so LO = H*WP is a multiple of 128 -> unmasked, lane-dense stores.
    WP = _round_up(W + 4, 128 // math.gcd(H, 128))
    LO = H * WP                              # flat output length (cols >= W cropped later)
    HA, WA = H + 2, W + 2                    # valid extent of the 3x3/pad-2 intermediate
    LSP = _round_up(LO + 4 * WP + 4, 128)    # zero-framed 5x5-input grid, lane-padded
    FRONT = WP + 1                           # makes the 3x3 im2col base offset exactly 0
    BASE1 = FRONT + 2 * WP + 2               # flat index of original pixel (0, 0)
    LF = _round_up(max(FRONT + (H + 4) * WP,       # natural padded-input extent
                       2 * WP + 2 + LSP,           # 3x3 im2col max read
                       BASE1 + WP + 1 + LO), 128)  # maxpool max read
    TAIL = LF - FRONT - (H + 4) * WP

    # ---- fold BN, fuse branches 2a+3a and 2b+3b, pack taps into the K dim ----
    w1, b1 = _fold_bn(params["b1"], eps)
    w2a, b2a = _fold_bn(params["b2a"], eps)
    w2b, b2b = _fold_bn(params["b2b"], eps)
    w3a, b3a = _fold_bn(params["b3a"], eps)
    w3b, b3b = _fold_bn(params["b3b"], eps)
    pad_k = lambda w: jnp.pad(w, ((0, 0), (0, 0), (0, 0), (0, CinP - Cin)))

    C1 = w1.shape[2]
    C2, C3 = w2b.shape[2], w3b.shape[2]
    Cmid = C2 + C3                     # fused intermediate / fused 5x5 output channels
    Ctot = C1 + Cmid + Cin             # real channel count of torch.cat output
    CtotP = C1 + Cmid + CinP           # padded (maxpool slice padded to CinP)

    w1f = _pack_taps(pad_k(w1))                                           # (C1, CinP)
    w23a = _pack_taps(jnp.concatenate([pad_k(w2a), pad_k(w3a)], axis=2))  # (Cmid, 9*CinP)
    b23a = jnp.concatenate([b2a, b3a], axis=0)
    # Block-diagonal fused 5x5 weight: branch-2b acts on s[:C2], branch-3b on s[C2:].
    wbd = jnp.zeros((5, 5, Cmid, Cmid), jnp.float32)
    wbd = wbd.at[:, :, :C2, :C2].set(w2b).at[:, :, C2:, C2:].set(w3b)
    w23b = _pack_taps(wbd)                                                # (Cmid, 25*Cmid)
    b23b = jnp.concatenate([b2b, b3b], axis=0)
    w1f, w23a, w23b = (w.astype(cdt) for w in (w1f, w23a, w23b))

    # ---- pad + flatten the input once (channels -> sublanes, spatial -> lanes) ----
    xp = jnp.pad(x_nchw.astype(jnp.float32),
                 ((0, 0), (0, CinP - Cin), (2, 2), (2, WP - W - 2)))
    xf = jnp.pad(xp.reshape(N, CinP, (H + 4) * WP),
                 ((0, 0), (0, 0), (FRONT, TAIL))).astype(cdt)

    # ---- static masks (numpy constants, baked into the program) ----
    rows_o, cols_o = np.arange(LO) // WP, np.arange(LO) % WP
    taps = [(di, dj) for di in (-1, 0, 1) for dj in (-1, 0, 1)]
    mp_mask = np.zeros((len(taps), LO), np.float32)    # additive: 0 valid / -inf invalid
    for t, (di, dj) in enumerate(taps):
        ok = ((rows_o + di >= 0) & (rows_o + di < H) &
              (cols_o + dj >= 0) & (cols_o + dj < W))
        mp_mask[t] = np.where(ok, 0.0, -np.inf)
    rows_s, cols_s = np.arange(LSP) // WP, np.arange(LSP) % WP
    s_mask = (((rows_s >= 1) & (rows_s <= HA) & (cols_s >= 1) & (cols_s <= WA))
              .astype(np.float32).reshape(1, LSP))     # multiplicative zero frame
    mp_mask, s_mask = jnp.asarray(mp_mask), jnp.asarray(s_mask)

    def kernel(x_ref, mp_ref, sm_ref, w1_ref, b1_ref, w23a_ref, b23a_ref,
               w23b_ref, b23b_ref, o_ref, cols3_ref, s_ref, cols5_ref):
        xf_v = x_ref[0]                         # (CinP, LF)
        dt = o_ref.dtype

        # Hoisted center slice: 1x1-conv RHS == maxpool center tap (no mask needed).
        center = xf_v[:, BASE1:BASE1 + LO]

        # --- branch 1: 1x1 conv (+folded BN, ReLU); stored immediately ---
        br1 = jnp.maximum(
            jnp.dot(w1_ref[...], center, preferred_element_type=jnp.float32)
            + b1_ref[...], 0.0)
        o_ref[0, 0:C1, :] = br1.astype(dt)

        # --- branch 4: 3x3 / stride 1 / pad 1 max pool (-inf masks at borders) ---
        mpm = mp_ref[...]
        r = center                               # center tap: mask is all-zero, skip it
        for t, (di, dj) in enumerate(taps):
            if di == 0 and dj == 0:
                continue
            off = BASE1 + di * WP + dj
            r = jnp.maximum(r, xf_v[:, off:off + LO] + mpm[t:t + 1, :])
        o_ref[0, C1 + Cmid:CtotP, :] = r.astype(dt)   # padded channels cropped later

        # --- branches 2+3 fused: one 3x3(pad2) conv, then one block-diag 5x5(pad1) ---
        # im2col with taps packed into the MXU contraction dim (K = 9*CinP).
        for kh in range(3):
            for kw in range(3):
                t = kh * 3 + kw
                off = kh * WP + kw
                cols3_ref[t * CinP:(t + 1) * CinP, :] = xf_v[:, off:off + LSP]
        s = jnp.maximum(
            jnp.dot(w23a_ref[...], cols3_ref[...], preferred_element_type=jnp.float32)
            + b23a_ref[...], 0.0) * sm_ref[...]      # zero frame == 5x5 zero padding
        s_ref[...] = s.astype(s_ref.dtype)

        # im2col for the fused 5x5 (K = 25*Cmid); intermediate never leaves the kernel.
        for kh in range(5):
            for kw in range(5):
                t = kh * 5 + kw
                off = kh * WP + kw
                cols5_ref[t * Cmid:(t + 1) * Cmid, :] = s_ref[:, off:off + LO]
        br23 = jnp.maximum(
            jnp.dot(w23b_ref[...], cols5_ref[...], preferred_element_type=jnp.float32)
            + b23b_ref[...], 0.0)
        o_ref[0, C1:C1 + Cmid, :] = br23.astype(dt)

    def _const_spec(a):
        # Constant operands: same block every grid step (double-buffering them is
        # harmless at these sizes, so pipeline_mode is left at the default).
        return pl.BlockSpec(a.shape, lambda n, _nd=a.ndim: (0,) * _nd)

    out_flat = pl.pallas_call(
        kernel,
        out_shape=jax.ShapeDtypeStruct((N, CtotP, LO), jnp.float32),
        grid=(N,),
        in_specs=[pl.BlockSpec((1, CinP, LF), lambda n: (n, 0, 0)),
                  _const_spec(mp_mask), _const_spec(s_mask),
                  _const_spec(w1f), _const_spec(b1),
                  _const_spec(w23a), _const_spec(b23a),
                  _const_spec(w23b), _const_spec(b23b)],
        out_specs=pl.BlockSpec((1, CtotP, LO), lambda n: (n, 0, 0)),
        scratch_shapes=[pltpu.VMEM((9 * CinP, LSP), cdt),   # 3x3 im2col
                        pltpu.VMEM((Cmid, LSP), cdt),       # fused 3x3 output (framed)
                        pltpu.VMEM((25 * Cmid, LO), cdt)],  # 5x5 im2col
        compiler_params=pltpu.CompilerParams(
            dimension_semantics=("parallel",)),              # v7x: one sample per TC
    )(xf, mp_mask, s_mask, w1f, b1, w23a, b23a, w23b, b23b)

    # crop padded channels + scratch columns, restore NCHW
    return out_flat[:, :Ctot].reshape(N, Ctot, H, WP)[:, :, :, :W]


# ----------------------------- synthetic params ------------------------------

def init_inception_params(key, in_channels, out_1x1, out_5x5a, out_5x5b,
                          dtype=jnp.float32):
    """Deterministic synthetic parameters mirroring InceptionBlock.__init__ shapes."""
    def cna_params(k, cin, cout, ksize):
        k1, k2, k3, k4, k5 = jax.random.split(k, 5)
        fan_in = cin * ksize * ksize
        # Conv weight stored HWIO (torch stores OIHW; only the layout differs).
        w = jax.random.normal(k1, (ksize, ksize, cin, cout), dtype) / jnp.sqrt(
            jnp.asarray(fan_in, dtype))
        gamma = 1.0 + 0.1 * jax.random.normal(k2, (cout,), dtype)
        beta = 0.1 * jax.random.normal(k3, (cout,), dtype)
        mean = 0.1 * jax.random.normal(k4, (cout,), dtype)
        var = jnp.abs(jax.random.normal(k5, (cout,), dtype)) + 0.5
        return dict(w=w, gamma=gamma, beta=beta, mean=mean, var=var)

    ks = jax.random.split(key, 5)
    return dict(
        b1=cna_params(ks[0], in_channels, out_1x1, 1),      # 1x1, pad 0
        b2a=cna_params(ks[1], in_channels, out_5x5a, 3),     # 3x3, pad 2
        b2b=cna_params(ks[2], out_5x5a, out_5x5a, 5),        # 5x5, pad 1
        b3a=cna_params(ks[3], in_channels, out_5x5b, 3),     # 3x3, pad 2
        b3b=cna_params(ks[4], out_5x5b, out_5x5b, 5),        # 5x5, pad 1
    )


# ------------------------------ plain-JAX reference --------------------------

def _ref_cna(x, p, pad, eps=1e-5):
    scale = p["gamma"] / jnp.sqrt(p["var"] + eps)
    w = p["w"] * scale[None, None, None, :]
    b = p["beta"] - p["mean"] * scale
    y = jax.lax.conv_general_dilated(
        x, w, window_strides=(1, 1), padding=[(pad, pad), (pad, pad)],
        dimension_numbers=("NCHW", "HWIO", "NCHW"),
        precision=jax.lax.Precision.HIGHEST)
    return jnp.maximum(y + b[None, :, None, None], 0.0)


def _ref_forward(params, x):
    b1 = _ref_cna(x, params["b1"], 0)
    b2 = _ref_cna(_ref_cna(x, params["b2a"], 2), params["b2b"], 1)
    b3 = _ref_cna(_ref_cna(x, params["b3a"], 2), params["b3b"], 1)
    b4 = jax.lax.reduce_window(x, -jnp.inf, jax.lax.max,
                               (1, 1, 3, 3), (1, 1, 1, 1),
                               [(0, 0), (0, 0), (1, 1), (1, 1)])
    return jnp.concatenate([b1, b2, b3, b4], axis=1)


# ----------------------------------- main ------------------------------------

if __name__ == "__main__":
    key = jax.random.PRNGKey(0)
    kx, kp = jax.random.split(key)

    # Small shapes consistent with the module (dim=2): NCHW input.
    N, Cin, H, W = 2, 4, 16, 16
    out_1x1, out_5x5a, out_5x5b = 8, 8, 8

    x = jax.random.normal(kx, (N, Cin, H, W), jnp.float32)
    params = init_inception_params(kp, Cin, out_1x1, out_5x5a, out_5x5b)

    fwd = jax.jit(inception_block_forward)
    y = jax.block_until_ready(fwd(params, x))

    expected_channels = out_1x1 + out_5x5a + out_5x5b + Cin
    assert y.shape == (N, expected_channels, H, W), y.shape

    y_ref = jax.block_until_ready(_ref_forward(params, x))
    max_err = float(jnp.max(jnp.abs(y - y_ref)))
    # Tolerance leaves headroom for MXU f32 multi-pass rounding; real indexing
    # or layout bugs produce O(1) errors and are still caught.
    assert max_err < 2e-2, max_err

    print("KERNEL_OK")
</pallas_src>

<mosaic_0001>
module attributes {stable_mosaic.version = 11 : i64} {
  func.func @kernel(%arg0: i32, %arg1: memref<1x8x640xf32, #tpu.memory_space<vmem>>, %arg2: memref<9x384xf32, #tpu.memory_space<vmem>>, %arg3: memref<1x512xf32, #tpu.memory_space<vmem>>, %arg4: memref<8x8xf32, #tpu.memory_space<vmem>>, %arg5: memref<8x1xf32, #tpu.memory_space<vmem>>, %arg6: memref<16x72xf32, #tpu.memory_space<vmem>>, %arg7: memref<16x1xf32, #tpu.memory_space<vmem>>, %arg8: memref<16x400xf32, #tpu.memory_space<vmem>>, %arg9: memref<16x1xf32, #tpu.memory_space<vmem>>, %arg10: memref<1x32x384xf32, #tpu.memory_space<vmem>>, %arg11: memref<72x512xf32, #tpu.memory_space<vmem>>, %arg12: memref<16x512xf32, #tpu.memory_space<vmem>>, %arg13: memref<400x384xf32, #tpu.memory_space<vmem>>) attributes {dimension_semantics = [#tpu.dimension_semantics<parallel>], iteration_bounds = array<i64: 2>, scalar_prefetch = 0 : i64, scratch_operands = 3 : i64, tpu.core_type = #tpu.core_type<tc>, window_params = [{transform_indices = @transform_0, window_bounds = array<i64: 1, 8, 640>}, {pipeline_mode = #tpu.pipeline_mode<synchronous>, transform_indices = @transform_1, window_bounds = array<i64: 9, 384>}, {pipeline_mode = #tpu.pipeline_mode<synchronous>, transform_indices = @transform_2, window_bounds = array<i64: 1, 512>}, {pipeline_mode = #tpu.pipeline_mode<synchronous>, transform_indices = @transform_3, window_bounds = array<i64: 8, 8>}, {pipeline_mode = #tpu.pipeline_mode<synchronous>, transform_indices = @transform_4, window_bounds = array<i64: 8, 1>}, {pipeline_mode = #tpu.pipeline_mode<synchronous>, transform_indices = @transform_5, window_bounds = array<i64: 16, 72>}, {pipeline_mode = #tpu.pipeline_mode<synchronous>, transform_indices = @transform_6, window_bounds = array<i64: 16, 1>}, {pipeline_mode = #tpu.pipeline_mode<synchronous>, transform_indices = @transform_7, window_bounds = array<i64: 16, 400>}, {pipeline_mode = #tpu.pipeline_mode<synchronous>, transform_indices = @transform_8, window_bounds = array<i64: 16, 1>}, {transform_indices = @transform_9, window_bounds = array<i64: 1, 32, 384>}]} {
    %c0 = arith.constant 0 : index
    %c0_0 = arith.constant 0 : index
    %c0_1 = arith.constant 0 : index
    %0 = vector.load %arg1[%c0, %c0_0, %c0_1] : memref<1x8x640xf32, #tpu.memory_space<vmem>>, vector<1x8x640xf32>
    %1 = vector.shape_cast %0 : vector<1x8x640xf32> to vector<8x640xf32>
    %2 = vector.extract_strided_slice %1 {offsets = [0, 75], sizes = [8, 384], strides = [1, 1]} : vector<8x640xf32> to vector<8x384xf32>
    %c0_2 = arith.constant 0 : index
    %c0_3 = arith.constant 0 : index
    %3 = vector.load %arg4[%c0_2, %c0_3] : memref<8x8xf32, #tpu.memory_space<vmem>>, vector<8x8xf32>
    %cst = arith.constant dense<0.000000e+00> : vector<8x384xf32>
    %4 = tpu.matmul %3, %2, %cst {dimension_numbers = #tpu.dot_dimension_numbers<[1], [0], [0], [1], [0, 0, 1, 1], [], []>} : vector<8x8xf32>, vector<8x384xf32>, vector<8x384xf32> -> vector<8x384xf32>
    %c0_4 = arith.constant 0 : index
    %c0_5 = arith.constant 0 : index
    %5 = vector.load %arg5[%c0_4, %c0_5] : memref<8x1xf32, #tpu.memory_space<vmem>>, vector<8x1xf32>
    %6 = vector.broadcast %5 : vector<8x1xf32> to vector<8x384xf32>
    %7 = arith.addf %4, %6 : vector<8x384xf32>
    %cst_6 = arith.constant 0.000000e+00 : f32
    %8 = vector.broadcast %cst_6 : f32 to vector<8x384xf32>
    %9 = arith.maximumf %7, %8 : vector<8x384xf32>
    %c0_7 = arith.constant 0 : index
    %c0_8 = arith.constant 0 : index
    %c0_9 = arith.constant 0 : index
    %10 = vector.load %arg10[%c0_7, %c0_8, %c0_9] : memref<1x32x384xf32, #tpu.memory_space<vmem>>, vector<1x8x384xf32>
    %11 = vector.shape_cast %10 : vector<1x8x384xf32> to vector<8x384xf32>
    %12 = vector.shape_cast %9 : vector<8x384xf32> to vector<1x8x384xf32>
    tpu.vector_store %arg10[%c0_7, %c0_8, %c0_9], %12 {strides = array<i32>} : memref<1x32x384xf32, #tpu.memory_space<vmem>>, vector<1x8x384xf32>,
    %c0_10 = arith.constant 0 : index
    %c0_11 = arith.constant 0 : index
    %13 = vector.load %arg2[%c0_10, %c0_11] : memref<9x384xf32, #tpu.memory_space<vmem>>, vector<9x384xf32>
    %14 = vector.extract_strided_slice %1 {offsets = [0, 50], sizes = [8, 384], strides = [1, 1]} : vector<8x640xf32> to vector<8x384xf32>
    %15 = vector.extract_strided_slice %13 {offsets = [0, 0], sizes = [1, 384], strides = [1, 1]} : vector<9x384xf32> to vector<1x384xf32>
    %16 = vector.broadcast %15 : vector<1x384xf32> to vector<8x384xf32>
    %17 = arith.addf %14, %16 : vector<8x384xf32>
    %18 = arith.maximumf %2, %17 : vector<8x384xf32>
    %19 = vector.extract_strided_slice %1 {offsets = [0, 51], sizes = [8, 384], strides = [1, 1]} : vector<8x640xf32> to vector<8x384xf32>
    %20 = vector.extract_strided_slice %13 {offsets = [1, 0], sizes = [1, 384], strides = [1, 1]} : vector<9x384xf32> to vector<1x384xf32>
    %21 = vector.broadcast %20 : vector<1x384xf32> to vector<8x384xf32>
    %22 = arith.addf %19, %21 : vector<8x384xf32>
    %23 = arith.maximumf %18, %22 : vector<8x384xf32>
    %24 = vector.extract_strided_slice %1 {offsets = [0, 52], sizes = [8, 384], strides = [1, 1]} : vector<8x640xf32> to vector<8x384xf32>
    %25 = vector.extract_strided_slice %13 {offsets = [2, 0], sizes = [1, 384], strides = [1, 1]} : vector<9x384xf32> to vector<1x384xf32>
    %26 = vector.broadcast %25 : vector<1x384xf32> to vector<8x384xf32>
    %27 = arith.addf %24, %26 : vector<8x384xf32>
    %28 = arith.maximumf %23, %27 : vector<8x384xf32>
    %29 = vector.extract_strided_slice %1 {offsets = [0, 74], sizes = [8, 384], strides = [1, 1]} : vector<8x640xf32> to vector<8x384xf32>
    %30 = vector.extract_strided_slice %13 {offsets = [3, 0], sizes = [1, 384], strides = [1, 1]} : vector<9x384xf32> to vector<1x384xf32>
    %31 = vector.broadcast %30 : vector<1x384xf32> to vector<8x384xf32>
    %32 = arith.addf %29, %31 : vector<8x384xf32>
    %33 = arith.maximumf %28, %32 : vector<8x384xf32>
    %34 = vector.extract_strided_slice %1 {offsets = [0, 76], sizes = [8, 384], strides = [1, 1]} : vector<8x640xf32> to vector<8x384xf32>
    %35 = vector.extract_strided_slice %13 {offsets = [5, 0], sizes = [1, 384], strides = [1, 1]} : vector<9x384xf32> to vector<1x384xf32>
    %36 = vector.broadcast %35 : vector<1x384xf32> to vector<8x384xf32>
    %37 = arith.addf %34, %36 : vector<8x384xf32>
    %38 = arith.maximumf %33, %37 : vector<8x384xf32>
    %39 = vector.extract_strided_slice %1 {offsets = [0, 98], sizes = [8, 384], strides = [1, 1]} : vector<8x640xf32> to vector<8x384xf32>
    %40 = vector.extract_strided_slice %13 {offsets = [6, 0], sizes = [1, 384], strides = [1, 1]} : vector<9x384xf32> to vector<1x384xf32>
    %41 = vector.broadcast %40 : vector<1x384xf32> to vector<8x384xf32>
    %42 = arith.addf %39, %41 : vector<8x384xf32>
    %43 = arith.maximumf %38, %42 : vector<8x384xf32>
    %44 = vector.extract_strided_slice %1 {offsets = [0, 99], sizes = [8, 384], strides = [1, 1]} : vector<8x640xf32> to vector<8x384xf32>
    %45 = vector.extract_strided_slice %13 {offsets = [7, 0], sizes = [1, 384], strides = [1, 1]} : vector<9x384xf32> to vector<1x384xf32>
    %46 = vector.broadcast %45 : vector<1x384xf32> to vector<8x384xf32>
    %47 = arith.addf %44, %46 : vector<8x384xf32>
    %48 = arith.maximumf %43, %47 : vector<8x384xf32>
    %49 = vector.extract_strided_slice %1 {offsets = [0, 100], sizes = [8, 384], strides = [1, 1]} : vector<8x640xf32> to vector<8x384xf32>
    %50 = vector.extract_strided_slice %13 {offsets = [8, 0], sizes = [1, 384], strides = [1, 1]} : vector<9x384xf32> to vector<1x384xf32>
    %51 = vector.broadcast %50 : vector<1x384xf32> to vector<8x384xf32>
    %52 = arith.addf %49, %51 : vector<8x384xf32>
    %53 = arith.maximumf %48, %52 : vector<8x384xf32>
    %c0_12 = arith.constant 0 : index
    %c24 = arith.constant 24 : index
    %c0_13 = arith.constant 0 : index
    %54 = vector.load %arg10[%c0_12, %c24, %c0_13] : memref<1x32x384xf32, #tpu.memory_space<vmem>>, vector<1x8x384xf32>
    %55 = vector.shape_cast %54 : vector<1x8x384xf32> to vector<8x384xf32>
    %56 = vector.shape_cast %53 : vector<8x384xf32> to vector<1x8x384xf32>
    tpu.vector_store %arg10[%c0_12, %c24, %c0_13], %56 {strides = array<i32>} : memref<1x32x384xf32, #tpu.memory_space<vmem>>, vector<1x8x384xf32>,
    %57 = vector.extract_strided_slice %1 {offsets = [0, 0], sizes = [8, 512], strides = [1, 1]} : vector<8x640xf32> to vector<8x512xf32>
    %c0_14 = arith.constant 0 : index
    %c0_15 = arith.constant 0 : index
    %58 = vector.load %arg11[%c0_14, %c0_15] : memref<72x512xf32, #tpu.memory_space<vmem>>, vector<8x512xf32>
    tpu.vector_store %arg11[%c0_14, %c0_15], %57 {strides = array<i32>} : memref<72x512xf32, #tpu.memory_space<vmem>>, vector<8x512xf32>,
    %59 = vector.extract_strided_slice %1 {offsets = [0, 1], sizes = [8, 512], strides = [1, 1]} : vector<8x640xf32> to vector<8x512xf32>
    %c8 = arith.constant 8 : index
    %c0_16 = arith.constant 0 : index
    %60 = vector.load %arg11[%c8, %c0_16] : memref<72x512xf32, #tpu.memory_space<vmem>>, vector<8x512xf32>
    tpu.vector_store %arg11[%c8, %c0_16], %59 {strides = array<i32>} : memref<72x512xf32, #tpu.memory_space<vmem>>, vector<8x512xf32>,
    %61 = vector.extract_strided_slice %1 {offsets = [0, 2], sizes = [8, 512], strides = [1, 1]} : vector<8x640xf32> to vector<8x512xf32>
    %c16 = arith.constant 16 : index
    %c0_17 = arith.constant 0 : index
    %62 = vector.load %arg11[%c16, %c0_17] : memref<72x512xf32, #tpu.memory_space<vmem>>, vector<8x512xf32>
    tpu.vector_store %arg11[%c16, %c0_17], %61 {strides = array<i32>} : memref<72x512xf32, #tpu.memory_space<vmem>>, vector<8x512xf32>,
    %63 = vector.extract_strided_slice %1 {offsets = [0, 24], sizes = [8, 512], strides = [1, 1]} : vector<8x640xf32> to vector<8x512xf32>
    %c24_18 = arith.constant 24 : index
    %c0_19 = arith.constant 0 : index
    %64 = vector.load %arg11[%c24_18, %c0_19] : memref<72x512xf32, #tpu.memory_space<vmem>>, vector<8x512xf32>
    tpu.vector_store %arg11[%c24_18, %c0_19], %63 {strides = array<i32>} : memref<72x512xf32, #tpu.memory_space<vmem>>, vector<8x512xf32>,
    %65 = vector.extract_strided_slice %1 {offsets = [0, 25], sizes = [8, 512], strides = [1, 1]} : vector<8x640xf32> to vector<8x512xf32>
    %c32 = arith.constant 32 : index
    %c0_20 = arith.constant 0 : index
    %66 = vector.load %arg11[%c32, %c0_20] : memref<72x512xf32, #tpu.memory_space<vmem>>, vector<8x512xf32>
    tpu.vector_store %arg11[%c32, %c0_20], %65 {strides = array<i32>} : memref<72x512xf32, #tpu.memory_space<vmem>>, vector<8x512xf32>,
    %67 = vector.extract_strided_slice %1 {offsets = [0, 26], sizes = [8, 512], strides = [1, 1]} : vector<8x640xf32> to vector<8x512xf32>
    %c40 = arith.constant 40 : index
    %c0_21 = arith.constant 0 : index
    %68 = vector.load %arg11[%c40, %c0_21] : memref<72x512xf32, #tpu.memory_space<vmem>>, vector<8x512xf32>
    tpu.vector_store %arg11[%c40, %c0_21], %67 {strides = array<i32>} : memref<72x512xf32, #tpu.memory_space<vmem>>, vector<8x512xf32>,
    %69 = vector.extract_strided_slice %1 {offsets = [0, 48], sizes = [8, 512], strides = [1, 1]} : vector<8x640xf32> to vector<8x512xf32>
    %c48 = arith.constant 48 : index
    %c0_22 = arith.constant 0 : index
    %70 = vector.load %arg11[%c48, %c0_22] : memref<72x512xf32, #tpu.memory_space<vmem>>, vector<8x512xf32>
    tpu.vector_store %arg11[%c48, %c0_22], %69 {strides = array<i32>} : memref<72x512xf32, #tpu.memory_space<vmem>>, vector<8x512xf32>,
    %71 = vector.extract_strided_slice %1 {offsets = [0, 49], sizes = [8, 512], strides = [1, 1]} : vector<8x640xf32> to vector<8x512xf32>
    %c56 = arith.constant 56 : index
    %c0_23 = arith.constant 0 : index
    %72 = vector.load %arg11[%c56, %c0_23] : memref<72x512xf32, #tpu.memory_space<vmem>>, vector<8x512xf32>
    tpu.vector_store %arg11[%c56, %c0_23], %71 {strides = array<i32>} : memref<72x512xf32, #tpu.memory_space<vmem>>, vector<8x512xf32>,
    %73 = vector.extract_strided_slice %1 {offsets = [0, 50], sizes = [8, 512], strides = [1, 1]} : vector<8x640xf32> to vector<8x512xf32>
    %c64 = arith.constant 64 : index
    %c0_24 = arith.constant 0 : index
    %74 = vector.load %arg11[%c64, %c0_24] : memref<72x512xf32, #tpu.memory_space<vmem>>, vector<8x512xf32>
    tpu.vector_store %arg11[%c64, %c0_24], %73 {strides = array<i32>} : memref<72x512xf32, #tpu.memory_space<vmem>>, vector<8x512xf32>,
    %c0_25 = arith.constant 0 : index
    %c0_26 = arith.constant 0 : index
    %75 = vector.load %arg6[%c0_25, %c0_26] : memref<16x72xf32, #tpu.memory_space<vmem>>, vector<16x72xf32>
    %c0_27 = arith.constant 0 : index
    %c0_28 = arith.constant 0 : index
    %76 = vector.load %arg11[%c0_27, %c0_28] : memref<72x512xf32, #tpu.memory_space<vmem>>, vector<72x512xf32>
    %cst_29 = arith.constant dense<0.000000e+00> : vector<16x512xf32>
    %77 = tpu.matmul %75, %76, %cst_29 {dimension_numbers = #tpu.dot_dimension_numbers<[1], [0], [0], [1], [0, 0, 1, 1], [], []>} : vector<16x72xf32>, vector<72x512xf32>, vector<16x512xf32> -> vector<16x512xf32>
    %c0_30 = arith.constant 0 : index
    %c0_31 = arith.constant 0 : index
    %78 = vector.load %arg7[%c0_30, %c0_31] : memref<16x1xf32, #tpu.memory_space<vmem>>, vector<16x1xf32>
    %79 = vector.broadcast %78 : vector<16x1xf32> to vector<16x512xf32>
    %80 = arith.addf %77, %79 : vector<16x512xf32>
    %cst_32 = arith.constant 0.000000e+00 : f32
    %81 = vector.broadcast %cst_32 : f32 to vector<16x512xf32>
    %82 = arith.maximumf %80, %81 : vector<16x512xf32>
    %c0_33 = arith.constant 0 : index
    %c0_34 = arith.constant 0 : index
    %83 = vector.load %arg3[%c0_33, %c0_34] : memref<1x512xf32, #tpu.memory_space<vmem>>, vector<1x512xf32>
    %84 = vector.broadcast %83 : vector<1x512xf32> to vector<16x512xf32>
    %85 = arith.mulf %82, %84 : vector<16x512xf32>
    %c0_35 = arith.constant 0 : index
    %c0_36 = arith.constant 0 : index
    %86 = vector.load %arg12[%c0_35, %c0_36] : memref<16x512xf32, #tpu.memory_space<vmem>>, vector<16x512xf32>
    tpu.vector_store %arg12[%c0_35, %c0_36], %85 {strides = array<i32>} : memref<16x512xf32, #tpu.memory_space<vmem>>, vector<16x512xf32>,
    %c0_37 = arith.constant 0 : index
    %c0_38 = arith.constant 0 : index
    %87 = vector.load %arg12[%c0_37, %c0_38] : memref<16x512xf32, #tpu.memory_space<vmem>>, vector<16x384xf32>
    %c0_39 = arith.constant 0 : index
    %c0_40 = arith.constant 0 : index
    %88 = vector.load %arg13[%c0_39, %c0_40] : memref<400x384xf32, #tpu.memory_space<vmem>>, vector<16x384xf32>
    tpu.vector_store %arg13[%c0_39, %c0_40], %87 {strides = array<i32>} : memref<400x384xf32, #tpu.memory_space<vmem>>, vector<16x384xf32>,
    %c0_41 = arith.constant 0 : index
    %c1 = arith.constant 1 : index
    %89 = vector.load %arg12[%c0_41, %c1] : memref<16x512xf32, #tpu.memory_space<vmem>>, vector<16x384xf32>
    %c16_42 = arith.constant 16 : index
    %c0_43 = arith.constant 0 : index
    %90 = vector.load %arg13[%c16_42, %c0_43] : memref<400x384xf32, #tpu.memory_space<vmem>>, vector<16x384xf32>
    tpu.vector_store %arg13[%c16_42, %c0_43], %89 {strides = array<i32>} : memref<400x384xf32, #tpu.memory_space<vmem>>, vector<16x384xf32>,
    %c0_44 = arith.constant 0 : index
    %c2 = arith.constant 2 : index
    %91 = vector.load %arg12[%c0_44, %c2] : memref<16x512xf32, #tpu.memory_space<vmem>>, vector<16x384xf32>
    %c32_45 = arith.constant 32 : index
    %c0_46 = arith.constant 0 : index
    %92 = vector.load %arg13[%c32_45, %c0_46] : memref<400x384xf32, #tpu.memory_space<vmem>>, vector<16x384xf32>
    tpu.vector_store %arg13[%c32_45, %c0_46], %91 {strides = array<i32>} : memref<400x384xf32, #tpu.memory_space<vmem>>, vector<16x384xf32>,
    %c0_47 = arith.constant 0 : index
    %c3 = arith.constant 3 : index
    %93 = vector.load %arg12[%c0_47, %c3] : memref<16x512xf32, #tpu.memory_space<vmem>>, vector<16x384xf32>
    %c48_48 = arith.constant 48 : index
    %c0_49 = arith.constant 0 : index
    %94 = vector.load %arg13[%c48_48, %c0_49] : memref<400x384xf32, #tpu.memory_space<vmem>>, vector<16x384xf32>
    tpu.vector_store %arg13[%c48_48, %c0_49], %93 {strides = array<i32>} : memref<400x384xf32, #tpu.memory_space<vmem>>, vector<16x384xf32>,
    %c0_50 = arith.constant 0 : index
    %c4 = arith.constant 4 : index
    %95 = vector.load %arg12[%c0_50, %c4] : memref<16x512xf32, #tpu.memory_space<vmem>>, vector<16x384xf32>
    %c64_51 = arith.constant 64 : index
    %c0_52 = arith.constant 0 : index
    %96 = vector.load %arg13[%c64_51, %c0_52] : memref<400x384xf32, #tpu.memory_space<vmem>>, vector<16x384xf32>
    tpu.vector_store %arg13[%c64_51, %c0_52], %95 {strides = array<i32>} : memref<400x384xf32, #tpu.memory_space<vmem>>, vector<16x384xf32>,
    %c0_53 = arith.constant 0 : index
    %c24_54 = arith.constant 24 : index
    %97 = vector.load %arg12[%c0_53, %c24_54] : memref<16x512xf32, #tpu.memory_space<vmem>>, vector<16x384xf32>
    %c80 = arith.constant 80 : index
    %c0_55 = arith.constant 0 : index
    %98 = vector.load %arg13[%c80, %c0_55] : memref<400x384xf32, #tpu.memory_space<vmem>>, vector<16x384xf32>
    tpu.vector_store %arg13[%c80, %c0_55], %97 {strides = array<i32>} : memref<400x384xf32, #tpu.memory_space<vmem>>, vector<16x384xf32>,
    %c0_56 = arith.constant 0 : index
    %c25 = arith.constant 25 : index
    %99 = vector.load %arg12[%c0_56, %c25] : memref<16x512xf32, #tpu.memory_space<vmem>>, vector<16x384xf32>
    %c96 = arith.constant 96 : index
    %c0_57 = arith.constant 0 : index
    %100 = vector.load %arg13[%c96, %c0_57] : memref<400x384xf32, #tpu.memory_space<vmem>>, vector<16x384xf32>
    tpu.vector_store %arg13[%c96, %c0_57], %99 {strides = array<i32>} : memref<400x384xf32, #tpu.memory_space<vmem>>, vector<16x384xf32>,
    %c0_58 = arith.constant 0 : index
    %c26 = arith.constant 26 : index
    %101 = vector.load %arg12[%c0_58, %c26] : memref<16x512xf32, #tpu.memory_space<vmem>>, vector<16x384xf32>
    %c112 = arith.constant 112 : index
    %c0_59 = arith.constant 0 : index
    %102 = vector.load %arg13[%c112, %c0_59] : memref<400x384xf32, #tpu.memory_space<vmem>>, vector<16x384xf32>
    tpu.vector_store %arg13[%c112, %c0_59], %101 {strides = array<i32>} : memref<400x384xf32, #tpu.memory_space<vmem>>, vector<16x384xf32>,
    %c0_60 = arith.constant 0 : index
    %c27 = arith.constant 27 : index
    %103 = vector.load %arg12[%c0_60, %c27] : memref<16x512xf32, #tpu.memory_space<vmem>>, vector<16x384xf32>
    %c128 = arith.constant 128 : index
    %c0_61 = arith.constant 0 : index
    %104 = vector.load %arg13[%c128, %c0_61] : memref<400x384xf32, #tpu.memory_space<vmem>>, vector<16x384xf32>
    tpu.vector_store %arg13[%c128, %c0_61], %103 {strides = array<i32>} : memref<400x384xf32, #tpu.memory_space<vmem>>, vector<16x384xf32>,
    %c0_62 = arith.constant 0 : index
    %c28 = arith.constant 28 : index
    %105 = vector.load %arg12[%c0_62, %c28] : memref<16x512xf32, #tpu.memory_space<vmem>>, vector<16x384xf32>
    %c144 = arith.constant 144 : index
    %c0_63 = arith.constant 0 : index
    %106 = vector.load %arg13[%c144, %c0_63] : memref<400x384xf32, #tpu.memory_space<vmem>>, vector<16x384xf32>
    tpu.vector_store %arg13[%c144, %c0_63], %105 {strides = array<i32>} : memref<400x384xf32, #tpu.memory_space<vmem>>, vector<16x384xf32>,
    %c0_64 = arith.constant 0 : index
    %c48_65 = arith.constant 48 : index
    %107 = vector.load %arg12[%c0_64, %c48_65] : memref<16x512xf32, #tpu.memory_space<vmem>>, vector<16x384xf32>
    %c160 = arith.constant 160 : index
    %c0_66 = arith.constant 0 : index
    %108 = vector.load %arg13[%c160, %c0_66] : memref<400x384xf32, #tpu.memory_space<vmem>>, vector<16x384xf32>
    tpu.vector_store %arg13[%c160, %c0_66], %107 {strides = array<i32>} : memref<400x384xf32, #tpu.memory_space<vmem>>, vector<16x384xf32>,
    %c0_67 = arith.constant 0 : index
    %c49 = arith.constant 49 : index
    %109 = vector.load %arg12[%c0_67, %c49] : memref<16x512xf32, #tpu.memory_space<vmem>>, vector<16x384xf32>
    %c176 = arith.constant 176 : index
    %c0_68 = arith.constant 0 : index
    %110 = vector.load %arg13[%c176, %c0_68] : memref<400x384xf32, #tpu.memory_space<vmem>>, vector<16x384xf32>
    tpu.vector_store %arg13[%c176, %c0_68], %109 {strides = array<i32>} : memref<400x384xf32, #tpu.memory_space<vmem>>, vector<16x384xf32>,
    %c0_69 = arith.constant 0 : index
    %c50 = arith.constant 50 : index
    %111 = vector.load %arg12[%c0_69, %c50] : memref<16x512xf32, #tpu.memory_space<vmem>>, vector<16x384xf32>
    %c192 = arith.constant 192 : index
    %c0_70 = arith.constant 0 : index
    %112 = vector.load %arg13[%c192, %c0_70] : memref<400x384xf32, #tpu.memory_space<vmem>>, vector<16x384xf32>
    tpu.vector_store %arg13[%c192, %c0_70], %111 {strides = array<i32>} : memref<400x384xf32, #tpu.memory_space<vmem>>, vector<16x384xf32>,
    %c0_71 = arith.constant 0 : index
    %c51 = arith.constant 51 : index
    %113 = vector.load %arg12[%c0_71, %c51] : memref<16x512xf32, #tpu.memory_space<vmem>>, vector<16x384xf32>
    %c208 = arith.constant 208 : index
    %c0_72 = arith.constant 0 : index
    %114 = vector.load %arg13[%c208, %c0_72] : memref<400x384xf32, #tpu.memory_space<vmem>>, vector<16x384xf32>
    tpu.vector_store %arg13[%c208, %c0_72], %113 {strides = array<i32>} : memref<400x384xf32, #tpu.memory_space<vmem>>, vector<16x384xf32>,
    %c0_73 = arith.constant 0 : index
    %c52 = arith.constant 52 : index
    %115 = vector.load %arg12[%c0_73, %c52] : memref<16x512xf32, #tpu.memory_space<vmem>>, vector<16x384xf32>
    %c224 = arith.constant 224 : index
    %c0_74 = arith.constant 0 : index
    %116 = vector.load %arg13[%c224, %c0_74] : memref<400x384xf32, #tpu.memory_space<vmem>>, vector<16x384xf32>
    tpu.vector_store %arg13[%c224, %c0_74], %115 {strides = array<i32>} : memref<400x384xf32, #tpu.memory_space<vmem>>, vector<16x384xf32>,
    %c0_75 = arith.constant 0 : index
    %c72 = arith.constant 72 : index
    %117 = vector.load %arg12[%c0_75, %c72] : memref<16x512xf32, #tpu.memory_space<vmem>>, vector<16x384xf32>
    %c240 = arith.constant 240 : index
    %c0_76 = arith.constant 0 : index
    %118 = vector.load %arg13[%c240, %c0_76] : memref<400x384xf32, #tpu.memory_space<vmem>>, vector<16x384xf32>
    tpu.vector_store %arg13[%c240, %c0_76], %117 {strides = array<i32>} : memref<400x384xf32, #tpu.memory_space<vmem>>, vector<16x384xf32>,
    %c0_77 = arith.constant 0 : index
    %c73 = arith.constant 73 : index
    %119 = vector.load %arg12[%c0_77, %c73] : memref<16x512xf32, #tpu.memory_space<vmem>>, vector<16x384xf32>
    %c256 = arith.constant 256 : index
    %c0_78 = arith.constant 0 : index
    %120 = vector.load %arg13[%c256, %c0_78] : memref<400x384xf32, #tpu.memory_space<vmem>>, vector<16x384xf32>
    tpu.vector_store %arg13[%c256, %c0_78], %119 {strides = array<i32>} : memref<400x384xf32, #tpu.memory_space<vmem>>, vector<16x384xf32>,
    %c0_79 = arith.constant 0 : index
    %c74 = arith.constant 74 : index
    %121 = vector.load %arg12[%c0_79, %c74] : memref<16x512xf32, #tpu.memory_space<vmem>>, vector<16x384xf32>
    %c272 = arith.constant 272 : index
    %c0_80 = arith.constant 0 : index
    %122 = vector.load %arg13[%c272, %c0_80] : memref<400x384xf32, #tpu.memory_space<vmem>>, vector<16x384xf32>
    tpu.vector_store %arg13[%c272, %c0_80], %121 {strides = array<i32>} : memref<400x384xf32, #tpu.memory_space<vmem>>, vector<16x384xf32>,
    %c0_81 = arith.constant 0 : index
    %c75 = arith.constant 75 : index
    %123 = vector.load %arg12[%c0_81, %c75] : memref<16x512xf32, #tpu.memory_space<vmem>>, vector<16x384xf32>
    %c288 = arith.constant 288 : index
    %c0_82 = arith.constant 0 : index
    %124 = vector.load %arg13[%c288, %c0_82] : memref<400x384xf32, #tpu.memory_space<vmem>>, vector<16x384xf32>
    tpu.vector_store %arg13[%c288, %c0_82], %123 {strides = array<i32>} : memref<400x384xf32, #tpu.memory_space<vmem>>, vector<16x384xf32>,
    %c0_83 = arith.constant 0 : index
    %c76 = arith.constant 76 : index
    %125 = vector.load %arg12[%c0_83, %c76] : memref<16x512xf32, #tpu.memory_space<vmem>>, vector<16x384xf32>
    %c304 = arith.constant 304 : index
    %c0_84 = arith.constant 0 : index
    %126 = vector.load %arg13[%c304, %c0_84] : memref<400x384xf32, #tpu.memory_space<vmem>>, vector<16x384xf32>
    tpu.vector_store %arg13[%c304, %c0_84], %125 {strides = array<i32>} : memref<400x384xf32, #tpu.memory_space<vmem>>, vector<16x384xf32>,
    %c0_85 = arith.constant 0 : index
    %c96_86 = arith.constant 96 : index
    %127 = vector.load %arg12[%c0_85, %c96_86] : memref<16x512xf32, #tpu.memory_space<vmem>>, vector<16x384xf32>
    %c320 = arith.constant 320 : index
    %c0_87 = arith.constant 0 : index
    %128 = vector.load %arg13[%c320, %c0_87] : memref<400x384xf32, #tpu.memory_space<vmem>>, vector<16x384xf32>
    tpu.vector_store %arg13[%c320, %c0_87], %127 {strides = array<i32>} : memref<400x384xf32, #tpu.memory_space<vmem>>, vector<16x384xf32>,
    %c0_88 = arith.constant 0 : index
    %c97 = arith.constant 97 : index
    %129 = vector.load %arg12[%c0_88, %c97] : memref<16x512xf32, #tpu.memory_space<vmem>>, vector<16x384xf32>
    %c336 = arith.constant 336 : index
    %c0_89 = arith.constant 0 : index
    %130 = vector.load %arg13[%c336, %c0_89] : memref<400x384xf32, #tpu.memory_space<vmem>>, vector<16x384xf32>
    tpu.vector_store %arg13[%c336, %c0_89], %129 {strides = array<i32>} : memref<400x384xf32, #tpu.memory_space<vmem>>, vector<16x384xf32>,
    %c0_90 = arith.constant 0 : index
    %c98 = arith.constant 98 : index
    %131 = vector.load %arg12[%c0_90, %c98] : memref<16x512xf32, #tpu.memory_space<vmem>>, vector<16x384xf32>
    %c352 = arith.constant 352 : index
    %c0_91 = arith.constant 0 : index
    %132 = vector.load %arg13[%c352, %c0_91] : memref<400x384xf32, #tpu.memory_space<vmem>>, vector<16x384xf32>
    tpu.vector_store %arg13[%c352, %c0_91], %131 {strides = array<i32>} : memref<400x384xf32, #tpu.memory_space<vmem>>, vector<16x384xf32>,
    %c0_92 = arith.constant 0 : index
    %c99 = arith.constant 99 : index
    %133 = vector.load %arg12[%c0_92, %c99] : memref<16x512xf32, #tpu.memory_space<vmem>>, vector<16x384xf32>
    %c368 = arith.constant 368 : index
    %c0_93 = arith.constant 0 : index
    %134 = vector.load %arg13[%c368, %c0_93] : memref<400x384xf32, #tpu.memory_space<vmem>>, vector<16x384xf32>
    tpu.vector_store %arg13[%c368, %c0_93], %133 {strides = array<i32>} : memref<400x384xf32, #tpu.memory_space<vmem>>, vector<16x384xf32>,
    %c0_94 = arith.constant 0 : index
    %c100 = arith.constant 100 : index
    %135 = vector.load %arg12[%c0_94, %c100] : memref<16x512xf32, #tpu.memory_space<vmem>>, vector<16x384xf32>
    %c384 = arith.constant 384 : index
    %c0_95 = arith.constant 0 : index
    %136 = vector.load %arg13[%c384, %c0_95] : memref<400x384xf32, #tpu.memory_space<vmem>>, vector<16x384xf32>
    tpu.vector_store %arg13[%c384, %c0_95], %135 {strides = array<i32>} : memref<400x384xf32, #tpu.memory_space<vmem>>, vector<16x384xf32>,
    %c0_96 = arith.constant 0 : index
    %c0_97 = arith.constant 0 : index
    %137 = vector.load %arg8[%c0_96, %c0_97] : memref<16x400xf32, #tpu.memory_space<vmem>>, vector<16x400xf32>
    %c0_98 = arith.constant 0 : index
    %c0_99 = arith.constant 0 : index
    %138 = vector.load %arg13[%c0_98, %c0_99] : memref<400x384xf32, #tpu.memory_space<vmem>>, vector<400x384xf32>
    %cst_100 = arith.constant dense<0.000000e+00> : vector<16x384xf32>
    %139 = tpu.matmul %137, %138, %cst_100 {dimension_numbers = #tpu.dot_dimension_numbers<[1], [0], [0], [1], [0, 0, 1, 1], [], []>} : vector<16x400xf32>, vector<400x384xf32>, vector<16x384xf32> -> vector<16x384xf32>
    %c0_101 = arith.constant 0 : index
    %c0_102 = arith.constant 0 : index
    %140 = vector.load %arg9[%c0_101, %c0_102] : memref<16x1xf32, #tpu.memory_space<vmem>>, vector<16x1xf32>
    %141 = vector.broadcast %140 : vector<16x1xf32> to vector<16x384xf32>
    %142 = arith.addf %139, %141 : vector<16x384xf32>
    %cst_103 = arith.constant 0.000000e+00 : f32
    %143 = vector.broadcast %cst_103 : f32 to vector<16x384xf32>
    %144 = arith.maximumf %142, %143 : vector<16x384xf32>
    %c0_104 = arith.constant 0 : index
    %c8_105 = arith.constant 8 : index
    %c0_106 = arith.constant 0 : index
    %145 = vector.load %arg10[%c0_104, %c8_105, %c0_106] : memref<1x32x384xf32, #tpu.memory_space<vmem>>, vector<1x16x384xf32>
    %146 = vector.shape_cast %145 : vector<1x16x384xf32> to vector<16x384xf32>
    %147 = vector.shape_cast %144 : vector<16x384xf32> to vector<1x16x384xf32>
    tpu.vector_store %arg10[%c0_104, %c8_105, %c0_106], %147 {strides = array<i32>} : memref<1x32x384xf32, #tpu.memory_space<vmem>>, vector<1x16x384xf32>,
    return
  }
  func.func @transform_0(%arg0: i32) -> (i32, i32, i32) {
    %c0_i32 = arith.constant 0 : i32
    %c0_i32_0 = arith.constant 0 : i32
    %c0_i32_1 = arith.constant 0 : i32
    return %arg0, %c0_i32, %c0_i32_0 : i32, i32, i32
  }
  func.func @transform_1(%arg0: i32) -> (i32, i32) {
    %c0_i32 = arith.constant 0 : i32
    %c0_i32_0 = arith.constant 0 : i32
    %c0_i32_1 = arith.constant 0 : i32
    return %c0_i32, %c0_i32_0 : i32, i32
  }
  func.func @transform_2(%arg0: i32) -> (i32, i32) {
    %c0_i32 = arith.constant 0 : i32
    %c0_i32_0 = arith.constant 0 : i32
    %c0_i32_1 = arith.constant 0 : i32
    return %c0_i32, %c0_i32_0 : i32, i32
  }
  func.func @transform_3(%arg0: i32) -> (i32, i32) {
    %c0_i32 = arith.constant 0 : i32
    %c0_i32_0 = arith.constant 0 : i32
    %c0_i32_1 = arith.constant 0 : i32
    return %c0_i32, %c0_i32_0 : i32, i32
  }
  func.func @transform_4(%arg0: i32) -> (i32, i32) {
    %c0_i32 = arith.constant 0 : i32
    %c0_i32_0 = arith.constant 0 : i32
    %c0_i32_1 = arith.constant 0 : i32
    return %c0_i32, %c0_i32_0 : i32, i32
  }
  func.func @transform_5(%arg0: i32) -> (i32, i32) {
    %c0_i32 = arith.constant 0 : i32
    %c0_i32_0 = arith.constant 0 : i32
    %c0_i32_1 = arith.constant 0 : i32
    return %c0_i32, %c0_i32_0 : i32, i32
  }
  func.func @transform_6(%arg0: i32) -> (i32, i32) {
    %c0_i32 = arith.constant 0 : i32
    %c0_i32_0 = arith.constant 0 : i32
    %c0_i32_1 = arith.constant 0 : i32
    return %c0_i32, %c0_i32_0 : i32, i32
  }
  func.func @transform_7(%arg0: i32) -> (i32, i32) {
    %c0_i32 = arith.constant 0 : i32
    %c0_i32_0 = arith.constant 0 : i32
    %c0_i32_1 = arith.constant 0 : i32
    return %c0_i32, %c0_i32_0 : i32, i32
  }
  func.func @transform_8(%arg0: i32) -> (i32, i32) {
    %c0_i32 = arith.constant 0 : i32
    %c0_i32_0 = arith.constant 0 : i32
    %c0_i32_1 = arith.constant 0 : i32
    return %c0_i32, %c0_i32_0 : i32, i32
  }
  func.func @transform_9(%arg0: i32) -> (i32, i32, i32) {
    %c0_i32 = arith.constant 0 : i32
    %c0_i32_0 = arith.constant 0 : i32
    %c0_i32_1 = arith.constant 0 : i32
    return %arg0, %c0_i32, %c0_i32_0 : i32, i32, i32
  }
}

</mosaic_0001>

<llo_original>
// kernel: inception_block_forward.1
$region0: #{inception_block_forward.1}
  #allocation0 [shape = 'u32[]', space=smem, size = 0x4, offset = 0x4, fixed_abs, tag = 'smem constant byte address 0x4 - core index']
  #allocation1 [shape = 'u32[144,128]{1,0:T(1,128)}', space=vmem, size = 0x12000, scoped, tag = 'internal scratch']
  #allocation2 [shape = 'f32[72,512]{1,0:T(8,128)}', space=vmem, size = 0x24000, scoped, tag = 'scratch operand']
  #allocation3 [shape = 'f32[16,512]{1,0:T(8,128)}', space=vmem, size = 0x8000, scoped, tag = 'scratch operand']
  #allocation4 [shape = 'f32[400,384]{1,0:T(8,128)}', space=vmem, size = 0x96000, scoped, tag = 'scratch operand']
  %s0 = inlined_call_operand.vmem [shape: f32[2,8,640], index: 0, kind: input, shape index: {}]
  %s1 = inlined_call_operand.vmem [shape: f32[9,384], index: 1, kind: input, shape index: {}]
  %s2 = inlined_call_operand.vmem [shape: f32[1,512], index: 2, kind: input, shape index: {}]
  %s3 = inlined_call_operand.vmem [shape: f32[8,8], index: 3, kind: input, shape index: {}]
  %s4 = inlined_call_operand.vmem [shape: f32[8,1], index: 4, kind: input, shape index: {}]
  %s5 = inlined_call_operand.vmem [shape: f32[16,72], index: 5, kind: input, shape index: {}]
  %s6 = inlined_call_operand.vmem [shape: f32[16,1], index: 6, kind: input, shape index: {}]
  %s7 = inlined_call_operand.vmem [shape: f32[16,400], index: 7, kind: input, shape index: {}]
  %s8 = inlined_call_operand.vmem [shape: f32[16,1], index: 8, kind: input, shape index: {}]
  %s9 = inlined_call_operand.vmem [shape: f32[2,32,384], index: 9, kind: output, shape index: {}]
  %s10 = sld [smem:[#allocation0]]
  $region69: #{inception_block_forward.1} parent=0
    _
  %s12 = ssub.s32 1, %s10
  %s13 = scalar_select 0, %s12, %s10
  loop: start=0, step=1, limit=4
  $region2: #{inception_block_forward.1} parent=0 // loop_pre_header
    _
  $region3: #{inception_block_forward.1} parent=0 // loop_header
    %s15 = sphi 0, %s19
    %p16 = scmp.ge.s32.totalorder %s15, 4
    %s25 = sphi 0, %s27
    %s28 = sphi 0, %s25
    %s29 = sphi 0, %s28
    %s45 = sphi 0, %s29
    %s49 = sphi 0, %s49
    %s51 = sphi 0, %s49
    %s52 = sphi 0, %s51
    %s66 = sphi 0, %s52
    %s70 = sphi 0, %s70
    %s72 = sphi 0, %s70
    %s73 = sphi 0, %s72
    %s87 = sphi 0, %s73
    %s91 = sphi 0, %s91
    %s93 = sphi 0, %s91
    %s94 = sphi 0, %s93
    %s108 = sphi 0, %s94
    %s112 = sphi 0, %s112
    %s114 = sphi 0, %s112
    %s115 = sphi 0, %s114
    %s129 = sphi 0, %s115
    %s133 = sphi 0, %s133
    %s135 = sphi 0, %s133
    %s136 = sphi 0, %s135
    %s150 = sphi 0, %s136
    %s154 = sphi 0, %s154
    %s156 = sphi 0, %s154
    %s157 = sphi 0, %s156
    %s171 = sphi 0, %s157
    %s175 = sphi 0, %s175
    %s177 = sphi 0, %s175
    %s178 = sphi 0, %s177
    %s192 = sphi 0, %s178
    %s196 = sphi 0, %s196
    %s198 = sphi 0, %s196
    %s199 = sphi 0, %s198
    %s213 = sphi 0, %s199
    %s219 = sphi 0, %s221
    %s222 = sphi 0, %s219
    %s223 = sphi 0, %s222
    %s239 = sphi 0, %s223
  $region4: #{inception_block_forward.1} parent=0 // loop_header_branch
    %18 = sbr.rel (%p16) target = $region8
  $region5: #{inception_block_forward.1} parent=0 // loop_body
    %s20 = ssub.s32 %s15, 1
    %s21 = ssub.s32 %s15, 2
    %s22 = sadd.s32 %s15, 1
    %s23 = ssub.s32 %s15, %s22
    %p24 = scmp.eq.s32.totalorder %s23, 0
    %s26 = sadd.s32 %s25, 1
    %s27 = scalar_select %p24, %s25, %s26
    %p30 = pneg %p24
    %p31 = scmp.eq.s32.totalorder %s15, 1
    %p32 = por %p30, %p31
    %p33 = scmp.ne.s32.totalorder %s25, %s28
    %p34 = scmp.eq.s32.totalorder %s15, 0
    %p35 = por %p33, %p34
    %p36 = scmp.ne.s32.totalorder %s25, %s28
    %p37 = scmp.eq.s32.totalorder %s20, 1
    %p38 = por %p36, %p37
    %p39 = scmp.ne.s32.totalorder %s28, %s29
    %p40 = scmp.eq.s32.totalorder %s20, 0
    %p41 = por %p39, %p40
    %p42 = scmp.ne.s32.totalorder %s28, %s29
    %p43 = scmp.eq.s32.totalorder %s21, 1
    %p44 = por %p42, %p43
    %p46 = scmp.ne.s32.totalorder %s29, %s45
    %p47 = scmp.eq.s32.totalorder %s21, 0
    %p48 = por %p46, %p47
    %s50 = sadd.s32 %s49, 1
    %p53 = scmp.eq.s32.totalorder %s15, 1
    %p54 = scmp.ne.s32.totalorder %s49, %s51
    %p55 = scmp.eq.s32.totalorder %s15, 0
    %p56 = por %p54, %p55
    %p57 = scmp.ne.s32.totalorder %s49, %s51
    %p58 = scmp.eq.s32.totalorder %s20, 1
    %p59 = por %p57, %p58
    %p60 = scmp.ne.s32.totalorder %s51, %s52
    %p61 = scmp.eq.s32.totalorder %s20, 0
    %p62 = por %p60, %p61
    %p63 = scmp.ne.s32.totalorder %s51, %s52
    %p64 = scmp.eq.s32.totalorder %s21, 1
    %p65 = por %p63, %p64
    %p67 = scmp.ne.s32.totalorder %s52, %s66
    %p68 = scmp.eq.s32.totalorder %s21, 0
    %p69 = por %p67, %p68
    %s71 = sadd.s32 %s70, 1
    %p74 = scmp.eq.s32.totalorder %s15, 1
    %p75 = scmp.ne.s32.totalorder %s70, %s72
    %p76 = scmp.eq.s32.totalorder %s15, 0
    %p77 = por %p75, %p76
    %p78 = scmp.ne.s32.totalorder %s70, %s72
    %p79 = scmp.eq.s32.totalorder %s20, 1
    %p80 = por %p78, %p79
    %p81 = scmp.ne.s32.totalorder %s72, %s73
    %p82 = scmp.eq.s32.totalorder %s20, 0
    %p83 = por %p81, %p82
    %p84 = scmp.ne.s32.totalorder %s72, %s73
    %p85 = scmp.eq.s32.totalorder %s21, 1
    %p86 = por %p84, %p85
    %p88 = scmp.ne.s32.totalorder %s73, %s87
    %p89 = scmp.eq.s32.totalorder %s21, 0
    %p90 = por %p88, %p89
    %s92 = sadd.s32 %s91, 1
    %p95 = scmp.eq.s32.totalorder %s15, 1
    %p96 = scmp.ne.s32.totalorder %s91, %s93
    %p97 = scmp.eq.s32.totalorder %s15, 0
    %p98 = por %p96, %p97
    %p99 = scmp.ne.s32.totalorder %s91, %s93
    %p100 = scmp.eq.s32.totalorder %s20, 1
    %p101 = por %p99, %p100
    %p102 = scmp.ne.s32.totalorder %s93, %s94
    %p103 = scmp.eq.s32.totalorder %s20, 0
    %p104 = por %p102, %p103
    %p105 = scmp.ne.s32.totalorder %s93, %s94
    %p106 = scmp.eq.s32.totalorder %s21, 1
    %p107 = por %p105, %p106
    %p109 = scmp.ne.s32.totalorder %s94, %s108
    %p110 = scmp.eq.s32.totalorder %s21, 0
    %p111 = por %p109, %p110
    %s113 = sadd.s32 %s112, 1
    %p116 = scmp.eq.s32.totalorder %s15, 1
    %p117 = scmp.ne.s32.totalorder %s112, %s114
    %p118 = scmp.eq.s32.totalorder %s15, 0
    %p119 = por %p117, %p118
    %p120 = scmp.ne.s32.totalorder %s112, %s114
    %p121 = scmp.eq.s32.totalorder %s20, 1
    %p122 = por %p120, %p121
    %p123 = scmp.ne.s32.totalorder %s114, %s115
    %p124 = scmp.eq.s32.totalorder %s20, 0
    %p125 = por %p123, %p124
    %p126 = scmp.ne.s32.totalorder %s114, %s115
    %p127 = scmp.eq.s32.totalorder %s21, 1
    %p128 = por %p126, %p127
    %p130 = scmp.ne.s32.totalorder %s115, %s129
    %p131 = scmp.eq.s32.totalorder %s21, 0
    %p132 = por %p130, %p131
    %s134 = sadd.s32 %s133, 1
    %p137 = scmp.eq.s32.totalorder %s15, 1
    %p138 = scmp.ne.s32.totalorder %s133, %s135
    %p139 = scmp.eq.s32.totalorder %s15, 0
    %p140 = por %p138, %p139
    %p141 = scmp.ne.s32.totalorder %s133, %s135
    %p142 = scmp.eq.s32.totalorder %s20, 1
    %p143 = por %p141, %p142
    %p144 = scmp.ne.s32.totalorder %s135, %s136
    %p145 = scmp.eq.s32.totalorder %s20, 0
    %p146 = por %p144, %p145
    %p147 = scmp.ne.s32.totalorder %s135, %s136
    %p148 = scmp.eq.s32.totalorder %s21, 1
    %p149 = por %p147, %p148
    %p151 = scmp.ne.s32.totalorder %s136, %s150
    %p152 = scmp.eq.s32.totalorder %s21, 0
    %p153 = por %p151, %p152
    %s155 = sadd.s32 %s154, 1
    %p158 = scmp.eq.s32.totalorder %s15, 1
    %p159 = scmp.ne.s32.totalorder %s154, %s156
    %p160 = scmp.eq.s32.totalorder %s15, 0
    %p161 = por %p159, %p160
    %p162 = scmp.ne.s32.totalorder %s154, %s156
    %p163 = scmp.eq.s32.totalorder %s20, 1
    %p164 = por %p162, %p163
    %p165 = scmp.ne.s32.totalorder %s156, %s157
    %p166 = scmp.eq.s32.totalorder %s20, 0
    %p167 = por %p165, %p166
    %p168 = scmp.ne.s32.totalorder %s156, %s157
    %p169 = scmp.eq.s32.totalorder %s21, 1
    %p170 = por %p168, %p169
    %p172 = scmp.ne.s32.totalorder %s157, %s171
    %p173 = scmp.eq.s32.totalorder %s21, 0
    %p174 = por %p172, %p173
    %s176 = sadd.s32 %s175, 1
    %p179 = scmp.eq.s32.totalorder %s15, 1
    %p180 = scmp.ne.s32.totalorder %s175, %s177
    %p181 = scmp.eq.s32.totalorder %s15, 0
    %p182 = por %p180, %p181
    %p183 = scmp.ne.s32.totalorder %s175, %s177
    %p184 = scmp.eq.s32.totalorder %s20, 1
    %p185 = por %p183, %p184
    %p186 = scmp.ne.s32.totalorder %s177, %s178
    %p187 = scmp.eq.s32.totalorder %s20, 0
    %p188 = por %p186, %p187
    %p189 = scmp.ne.s32.totalorder %s177, %s178
    %p190 = scmp.eq.s32.totalorder %s21, 1
    %p191 = por %p189, %p190
    %p193 = scmp.ne.s32.totalorder %s178, %s192
    %p194 = scmp.eq.s32.totalorder %s21, 0
    %p195 = por %p193, %p194
    %s197 = sadd.s32 %s196, 1
    %p200 = scmp.eq.s32.totalorder %s15, 1
    %p201 = scmp.ne.s32.totalorder %s196, %s198
    %p202 = scmp.eq.s32.totalorder %s15, 0
    %p203 = por %p201, %p202
    %p204 = scmp.ne.s32.totalorder %s196, %s198
    %p205 = scmp.eq.s32.totalorder %s20, 1
    %p206 = por %p204, %p205
    %p207 = scmp.ne.s32.totalorder %s198, %s199
    %p208 = scmp.eq.s32.totalorder %s20, 0
    %p209 = por %p207, %p208
    %p210 = scmp.ne.s32.totalorder %s198, %s199
    %p211 = scmp.eq.s32.totalorder %s21, 1
    %p212 = por %p210, %p211
    %p214 = scmp.ne.s32.totalorder %s199, %s213
    %p215 = scmp.eq.s32.totalorder %s21, 0
    %p216 = por %p214, %p215
    %s217 = ssub.s32 %s15, %s22
    %p218 = scmp.eq.s32.totalorder %s217, 0
    %s220 = sadd.s32 %s219, 1
    %s221 = scalar_select %p218, %s219, %s220
    %p224 = pneg %p218
    %p225 = scmp.eq.s32.totalorder %s15, 1
    %p226 = por %p224, %p225
    %p227 = scmp.ne.s32.totalorder %s219, %s222
    %p228 = scmp.eq.s32.totalorder %s15, 0
    %p229 = por %p227, %p228
    %p230 = scmp.ne.s32.totalorder %s219, %s222
    %p231 = scmp.eq.s32.totalorder %s20, 1
    %p232 = por %p230, %p231
    %p233 = scmp.ne.s32.totalorder %s222, %s223
    %p234 = scmp.eq.s32.totalorder %s20, 0
    %p235 = por %p233, %p234
    %p236 = scmp.ne.s32.totalorder %s222, %s223
    %p237 = scmp.eq.s32.totalorder %s21, 1
    %p238 = por %p236, %p237
    %p240 = scmp.ne.s32.totalorder %s223, %s239
    %p241 = scmp.eq.s32.totalorder %s21, 0
    %p242 = por %p240, %p241
    %p243 = scmp.le.s32.totalorder 1, %s15
    %p244 = scmp.lt.s32.totalorder %s15, 3
    %p245 = pnand %p243, %p244
    %p246 = pneg %p245
    // Predicated region
    $region9: #{inception_block_forward.1} parent=5 // pred_check
      _
    $region10: #{inception_block_forward.1} parent=5 // pred_check_branch
      %248 = sbr.rel (%p245) target = $region12
    $region11: #{inception_block_forward.1} parent=5 // pred_region
      %s249 = ssub.s32 %s15, 1
      // Predicated region
      $region13: #{inception_block_forward.1} parent=11 // pred_check
        %p250 = pneg %p62
      $region14: #{inception_block_forward.1} parent=11 // pred_check_branch
        %252 = sbr.rel (%p250) target = $region16
      $region15: #{inception_block_forward.1} parent=11 // pred_region
        _
      $region16: #{inception_block_forward.1} parent=11 // pred_fallthru
        _
      // Predicated region
      $region17: #{inception_block_forward.1} parent=11 // pred_check
        %p253 = pneg %p83
      $region18: #{inception_block_forward.1} parent=11 // pred_check_branch
        %255 = sbr.rel (%p253) target = $region20
      $region19: #{inception_block_forward.1} parent=11 // pred_region
        _
      $region20: #{inception_block_forward.1} parent=11 // pred_fallthru
        _
      // Predicated region
      $region21: #{inception_block_forward.1} parent=11 // pred_check
        %p256 = pneg %p104
      $region22: #{inception_block_forward.1} parent=11 // pred_check_branch
        %258 = sbr.rel (%p256) target = $region24
      $region23: #{inception_block_forward.1} parent=11 // pred_region
        _
      $region24: #{inception_block_forward.1} parent=11 // pred_fallthru
        _
      // Predicated region
      $region25: #{inception_block_forward.1} parent=11 // pred_check
        %p259 = pneg %p125
      $region26: #{inception_block_forward.1} parent=11 // pred_check_branch
        %261 = sbr.rel (%p259) target = $region28
      $region27: #{inception_block_forward.1} parent=11 // pred_region
        _
      $region28: #{inception_block_forward.1} parent=11 // pred_fallthru
        _
      // Predicated region
      $region29: #{inception_block_forward.1} parent=11 // pred_check
        %p262 = pneg %p146
      $region30: #{inception_block_forward.1} parent=11 // pred_check_branch
        %264 = sbr.rel (%p262) target = $region32
      $region31: #{inception_block_forward.1} parent=11 // pred_region
        _
      $region32: #{inception_block_forward.1} parent=11 // pred_fallthru
        _
      // Predicated region
      $region33: #{inception_block_forward.1} parent=11 // pred_check
        %p265 = pneg %p167
      $region34: #{inception_block_forward.1} parent=11 // pred_check_branch
        %267 = sbr.rel (%p265) target = $region36
      $region35: #{inception_block_forward.1} parent=11 // pred_region
        _
      $region36: #{inception_block_forward.1} parent=11 // pred_fallthru
        _
      // Predicated region
      $region37: #{inception_block_forward.1} parent=11 // pred_check
        %p268 = pneg %p188
      $region38: #{inception_block_forward.1} parent=11 // pred_check_branch
        %270 = sbr.rel (%p268) target = $region40
      $region39: #{inception_block_forward.1} parent=11 // pred_region
        _
      $region40: #{inception_block_forward.1} parent=11 // pred_fallthru
        _
      // Predicated region
      $region41: #{inception_block_forward.1} parent=11 // pred_check
        %p271 = pneg %p209
      $region42: #{inception_block_forward.1} parent=11 // pred_check_branch
        %273 = sbr.rel (%p271) target = $region44
      $region43: #{inception_block_forward.1} parent=11 // pred_region
        _
      $region44: #{inception_block_forward.1} parent=11 // pred_fallthru
        _
    $region12: #{inception_block_forward.1} parent=5 // pred_fallthru
      _
    %p274 = scmp.lt.s32.totalorder %s15, 2
    // Predicated region
    $region45: #{inception_block_forward.1} parent=5 // pred_check
      %p275 = pneg %p274
    $region46: #{inception_block_forward.1} parent=5 // pred_check_branch
      %277 = sbr.rel (%p275) target = $region48
    $region47: #{inception_block_forward.1} parent=5 // pred_region
      // Predicated region
      $region49: #{inception_block_forward.1} parent=47 // pred_check
        %p278 = pneg %p35
      $region50: #{inception_block_forward.1} parent=47 // pred_check_branch
        %280 = sbr.rel (%p278) target = $region52
      $region51: #{inception_block_forward.1} parent=47 // pred_region
        %p281 = scmp.lt.s32.totalorder %s15, 1
        %s282 = scalar_select %p281, %s15, 1
        %s283 = smul.addr %s282, 5
        %s284 = smul.addr %s283, 8
        %s285 = scalar_lea.vmem %s0, %s284
      $region52: #{inception_block_forward.1} parent=47 // pred_fallthru
        _
    $region48: #{inception_block_forward.1} parent=5 // pred_fallthru
      _
    %p286 = scmp.le.s32.totalorder 1, %s15
    %p287 = scmp.lt.s32.totalorder %s15, 3
    %p288 = pnand %p286, %p287
    %p289 = pneg %p288
    // Predicated region
    $region53: #{inception_block_forward.1} parent=5 // pred_check
      _
    $region54: #{inception_block_forward.1} parent=5 // pred_check_branch
      %291 = sbr.rel (%p288) target = $region56
    $region55: #{inception_block_forward.1} parent=5 // pred_region
      %s292 = ssub.s32 %s15, 1
      %p293 = scmp.lt.s32.totalorder %s20, 1
      %s294 = scalar_select %p293, %s20, 1
      %s295 = smul.addr %s294, 5
      %s296 = smul.addr %s295, 8
      %s297 = scalar_lea.vmem %s0, %s296
      %p298 = pneg %p41
      %p299 = pneg %p38
      %p300 = pneg %p62
      %p301 = pneg %p59
      %p302 = pneg %p83
      %p303 = pneg %p80
      %p304 = pneg %p104
      %p305 = pneg %p101
      %p306 = pneg %p125
      %p307 = pneg %p122
      %p308 = pneg %p146
      %p309 = pneg %p143
      %p310 = pneg %p167
      %p311 = pneg %p164
      %p312 = pneg %p188
      %p313 = pneg %p185
      %p314 = pneg %p209
      %p315 = pneg %p206
      %p316 = pneg %p235
      %p317 = pneg %p232
      %p318 = scmp.lt.s32.totalorder %s20, 1
      %s319 = scalar_select %p318, %s20, 1
      %s320 = smul.addr %s319, 12
      %s321 = smul.addr %s320, 8
      %s322 = scalar_lea.vmem %s9, %s321
      %p323 = scmp.lt.s32.totalorder %s20, 1
      %s324 = scalar_select %p323, %s20, 1
      %s325 = smul.addr %s324, 5
      %s326 = smul.addr %s325, 8
      %s327 = scalar_lea.vmem %s0, %s326
      %p328 = scmp.lt.s32.totalorder %s20, 1
      %s329 = scalar_select %p328, %s20, 1
      %s330 = smul.addr %s329, 12
      %s331 = smul.addr %s330, 8
      %s332 = scalar_lea.vmem %s9, %s331
      %v333 = vld [vmem:[%s327] sm:$0xff]
      %v334 = vld [vmem:[%s327 + $0x8] sm:$0xff]
      %v335 = vld [vmem:[%s327 + $0x10] sm:$0xff]
      %v336 = vld [vmem:[%s327 + $0x18] sm:$0xff]
      %v337 = vld [vmem:[%s327 + $0x20] sm:$0xff]
      %v338 = vld [vmem:[%s3] sm:$0xff]
      %v339 = vld [vmem:[%s4] sm:$0xff]
      %341 = vset.pattern.permute.xlu0 0
      %342 = vperm.xlu0 %341, %v339
      %v343 = vpop.permute.xlu0 %342
      %349 = vrot.lane.b32.xlu0 %v333, 53
      %v350 = vpop.permute.xlu0 %349
      %351 = vrot.lane.b32.xlu0 %v334, 53
      %v352 = vpop.permute.xlu0 %351
      %353 = vrot.lane.b32.xlu0 %v335, 53
      %v354 = vpop.permute.xlu0 %353
      %355 = vrot.lane.b32.xlu0 %v336, 53
      %v356 = vpop.permute.xlu0 %355
      %vm357 = vcmask 433152
      %v358 = vsel %vm357, %v350, %v352
      %v359 = vsel %vm357, %v352, %v354
      %v360 = vsel %vm357, %v354, %v356
      %vm364 = vcmask 64512
      %v366 = vsel %vm364, %v338, 0
      %368 = vmatprep.subr.mxu0 0.0
      %369 = vmatpush1.msra.mxu0 0.0
      %370 = vmatprep.subr.mxu0 0.0
      %371 = vmatpush1.msra.mxu0 0.0
      %372 = vmatprep.subr.mxu0 0.0
      %373 = vmatpush1.msra.mxu0 0.0
      %374 = vmatprep.subr.mxu0 0.0
      %375 = vmatpush1.msra.mxu0 0.0
      %376 = vmatprep.subr.mxu0 0.0
      %377 = vmatpush1.msra.mxu0 0.0
      %378 = vmatprep.subr.mxu0 0.0
      %379 = vmatpush1.msra.mxu0 0.0
      %380 = vmatprep.subr.mxu0 0.0
      %381 = vmatpush1.msra.mxu0 0.0
      %382 = vmatprep.subr.mxu0 0.0
      %383 = vmatpush1.msra.mxu0 0.0
      %384 = vmatprep.subr.mxu0 0.0
      %385 = vmatpush1.msra.mxu0 0.0
      %386 = vmatprep.subr.mxu0 0.0
      %387 = vmatpush1.msra.mxu0 0.0
      %388 = vmatprep.subr.mxu0 0.0
      %389 = vmatpush1.msra.mxu0 0.0
      %390 = vmatprep.subr.mxu0 0.0
      %391 = vmatpush1.msra.mxu0 0.0
      %392 = vmatprep.subr.mxu0 0.0
      %393 = vmatpush1.msra.mxu0 0.0
      %394 = vmatprep.subr.mxu0 0.0
      %395 = vmatpush1.msra.mxu0 0.0
      %396 = vmatprep.subr.mxu0 0.0
      %397 = vmatpush1.msra.mxu0 0.0
      %398 = vmatprep.subr.mxu0 %v359
      %399 = vmatpush1.msra.mxu0 %v358
      %400 = vmatprep.subr.mxu0 0.0
      %401 = vmatpush2.msra.mxu0 0.0
      %402 = vmatprep.subr.mxu0 0.0
      %403 = vmatpush2.msra.mxu0 0.0
      %404 = vmatprep.subr.mxu0 0.0
      %405 = vmatpush2.msra.mxu0 0.0
      %406 = vmatprep.subr.mxu0 0.0
      %407 = vmatpush2.msra.mxu0 0.0
      %408 = vmatprep.subr.mxu0 0.0
      %409 = vmatpush2.msra.mxu0 0.0
      %410 = vmatprep.subr.mxu0 0.0
      %411 = vmatpush2.msra.mxu0 0.0
      %412 = vmatprep.subr.mxu0 0.0
      %413 = vmatpush2.msra.mxu0 0.0
      %414 = vmatprep.subr.mxu0 0.0
      %415 = vmatpush2.msra.mxu0 0.0
      %416 = vmatprep.subr.mxu0 0.0
      %417 = vmatpush2.msra.mxu0 0.0
      %418 = vmatprep.subr.mxu0 0.0
      %419 = vmatpush2.msra.mxu0 0.0
      %420 = vmatprep.subr.mxu0 0.0
      %421 = vmatpush2.msra.mxu0 0.0
      %422 = vmatprep.subr.mxu0 0.0
      %423 = vmatpush2.msra.mxu0 0.0
      %424 = vmatprep.subr.mxu0 0.0
      %425 = vmatpush2.msra.mxu0 0.0
      %426 = vmatprep.subr.mxu0 0.0
      %427 = vmatpush2.msra.mxu0 0.0
      %428 = vmatprep.subr.mxu0 0.0
      %429 = vmatpush2.msra.mxu0 0.0
      %430 = vmatprep.subr.mxu0 0.0
      %431 = vmatpush2.msra.mxu0 0.0
      %432 = vmatprep.mubr.f32.mxu0 0.0
      %433 = vmatmul.mubr.f32.gmra.mxu0 %v366
      %v434 = vpop.f32.mrf.mxu0
      %v435 = vadd.f32 %v343, %v434
      %v436 = vpop.f32.mrf.mxu0
      %v437 = vadd.f32 %v343, %v436
      %438 = vdwg.mxu0
      %439 = vmatprep.subr.mxu0 0.0
      %440 = vmatpush1.msra.mxu0 0.0
      %441 = vmatprep.subr.mxu0 0.0
      %442 = vmatpush1.msra.mxu0 0.0
      %443 = vmatprep.subr.mxu0 0.0
      %444 = vmatpush1.msra.mxu0 0.0
      %445 = vmatprep.subr.mxu0 0.0
      %446 = vmatpush1.msra.mxu0 0.0
      %447 = vmatprep.subr.mxu0 0.0
      %448 = vmatpush1.msra.mxu0 0.0
      %449 = vmatprep.subr.mxu0 0.0
      %450 = vmatpush1.msra.mxu0 0.0
      %451 = vmatprep.subr.mxu0 0.0
      %452 = vmatpush1.msra.mxu0 0.0
      %453 = vmatprep.subr.mxu0 0.0
      %454 = vmatpush1.msra.mxu0 0.0
      %455 = vmatprep.subr.mxu0 0.0
      %456 = vmatpush1.msra.mxu0 0.0
      %457 = vmatprep.subr.mxu0 0.0
      %458 = vmatpush1.msra.mxu0 0.0
      %459 = vmatprep.subr.mxu0 0.0
      %460 = vmatpush1.msra.mxu0 0.0
      %461 = vmatprep.subr.mxu0 0.0
      %462 = vmatpush1.msra.mxu0 0.0
      %463 = vmatprep.subr.mxu0 0.0
      %464 = vmatpush1.msra.mxu0 0.0
      %465 = vmatprep.subr.mxu0 0.0
      %466 = vmatpush1.msra.mxu0 0.0
      %467 = vmatprep.subr.mxu0 0.0
      %468 = vmatpush1.msra.mxu0 0.0
      %469 = vmatprep.subr.mxu0 0.0
      %470 = vmatpush1.msra.mxu0 %v360
      %471 = vmatprep.subr.mxu0 0.0
      %472 = vmatpush2.msra.mxu0 0.0
      %473 = vmatprep.subr.mxu0 0.0
      %474 = vmatpush2.msra.mxu0 0.0
      %475 = vmatprep.subr.mxu0 0.0
      %476 = vmatpush2.msra.mxu0 0.0
      %477 = vmatprep.subr.mxu0 0.0
      %478 = vmatpush2.msra.mxu0 0.0
      %479 = vmatprep.subr.mxu0 0.0
      %480 = vmatpush2.msra.mxu0 0.0
      %481 = vmatprep.subr.mxu0 0.0
      %482 = vmatpush2.msra.mxu0 0.0
      %483 = vmatprep.subr.mxu0 0.0
      %484 = vmatpush2.msra.mxu0 0.0
      %485 = vmatprep.subr.mxu0 0.0
      %486 = vmatpush2.msra.mxu0 0.0
      %487 = vmatprep.subr.mxu0 0.0
      %488 = vmatpush2.msra.mxu0 0.0
      %489 = vmatprep.subr.mxu0 0.0
      %490 = vmatpush2.msra.mxu0 0.0
      %491 = vmatprep.subr.mxu0 0.0
      %492 = vmatpush2.msra.mxu0 0.0
      %493 = vmatprep.subr.mxu0 0.0
      %494 = vmatpush2.msra.mxu0 0.0
      %495 = vmatprep.subr.mxu0 0.0
      %496 = vmatpush2.msra.mxu0 0.0
      %497 = vmatprep.subr.mxu0 0.0
      %498 = vmatpush2.msra.mxu0 0.0
      %499 = vmatprep.subr.mxu0 0.0
      %500 = vmatpush2.msra.mxu0 0.0
      %501 = vmatprep.subr.mxu0 0.0
      %502 = vmatpush2.msra.mxu0 0.0
      %503 = vmatprep.mubr.f32.mxu0 0.0
      %504 = vmatmul.mubr.f32.gmra.mxu0 %v366
      %v505 = vpop.f32.mrf.mxu0
      %v506 = vadd.f32 %v343, %v505
      %v507 = vpop.f32.mrf.mxu0
      %508 = vdwg.mxu0
      %v509 = vmax.f32 %v435, 0.0
      %v510 = vmax.f32 %v437, 0.0
      %v511 = vmax.f32 %v506, 0.0
      %512 = vst [vmem:[%s332] sm:$0xff] %v509
      %513 = vst [vmem:[%s332 + $0x8] sm:$0xff] %v510
      %514 = vst [vmem:[%s332 + $0x10] sm:$0xff] %v511
      %v515 = vld [vmem:[%s1] sm:$0xff]
      %v516 = vld [vmem:[%s1 + $0x8] sm:$0xff]
      %v517 = vld [vmem:[%s1 + $0x10] sm:$0xff]
      %v518 = vld [vmem:[%s1 + $0x18] sm:$0x1]
      %v519 = vld [vmem:[%s1 + $0x20] sm:$0x1]
      %v520 = vld [vmem:[%s1 + $0x28] sm:$0x1]
      %v521 = vlaneseq
      %v522 = vshrl.u32 %v521, 7
      %v523 = vsub.s32 0, %v522
      %v524 = vrot.slane %v515, %v523
      %v525 = vlaneseq
      %v526 = vshrl.u32 %v525, 7
      %v527 = vsub.s32 0, %v526
      %v528 = vrot.slane %v516, %v527
      %v529 = vlaneseq
      %v530 = vshrl.u32 %v529, 7
      %v531 = vsub.s32 0, %v530
      %v532 = vrot.slane %v517, %v531
      %536 = vrot.lane.b32.xlu0 %v524, 50
      %v537 = vpop.permute.xlu0 %536
      %538 = vrot.lane.b32.xlu0 %v528, 50
      %v539 = vpop.permute.xlu0 %538
      %540 = vrot.lane.b32.xlu0 %v532, 50
      %v541 = vpop.permute.xlu0 %540
      %vm542 = vcmask 408576
      %v543 = vsel %vm542, %v537, %v539
      %v544 = vsel %vm542, %v539, %v541
      %v549 = vadd.f32 %v333, %v537
      %v550 = vadd.f32 %v334, %v543
      %v551 = vadd.f32 %v335, %v544
      %v552 = vadd.f32 %v336, %v541
      %557 = vrot.lane.b32.xlu0 %v549, 25
      %v558 = vpop.permute.xlu0 %557
      %559 = vrot.lane.b32.xlu0 %v550, 25
      %v560 = vpop.permute.xlu0 %559
      %561 = vrot.lane.b32.xlu0 %v551, 25
      %v562 = vpop.permute.xlu0 %561
      %563 = vrot.lane.b32.xlu0 %v552, 25
      %v564 = vpop.permute.xlu0 %563
      %vm565 = vcmask 203776
      %v566 = vsel %vm565, %v558, %v560
      %v567 = vsel %vm565, %v560, %v562
      %v568 = vsel %vm565, %v562, %v564
      %v573 = vmax.f32 %v333, %v558
      %v574 = vmax.f32 %v334, %v566
      %v575 = vmax.f32 %v335, %v567
      %v576 = vmax.f32 %v336, %v568
      %v577 = vlaneseq
      %v578 = vshrl.u32 %v577, 7
      %v579 = vsub.s32 1, %v578
      %v580 = vrot.slane %v515, %v579
      %v581 = vlaneseq
      %v582 = vshrl.u32 %v581, 7
      %v583 = vsub.s32 1, %v582
      %v584 = vrot.slane %v516, %v583
      %v585 = vlaneseq
      %v586 = vshrl.u32 %v585, 7
      %v587 = vsub.s32 1, %v586
      %v588 = vrot.slane %v517, %v587
      %592 = vrot.lane.b32.xlu0 %v580, 51
      %v593 = vpop.permute.xlu0 %592
      %594 = vrot.lane.b32.xlu0 %v584, 51
      %v595 = vpop.permute.xlu0 %594
      %596 = vrot.lane.b32.xlu0 %v588, 51
      %v597 = vpop.permute.xlu0 %596
      %vm598 = vcmask 416768
      %v599 = vsel %vm598, %v593, %v595
      %v600 = vsel %vm598, %v595, %v597
      %v605 = vadd.f32 %v333, %v593
      %v606 = vadd.f32 %v334, %v599
      %v607 = vadd.f32 %v335, %v600
      %v608 = vadd.f32 %v336, %v597
      %613 = vrot.lane.b32.xlu0 %v605, 24
      %v614 = vpop.permute.xlu0 %613
      %615 = vrot.lane.b32.xlu0 %v606, 24
      %v616 = vpop.permute.xlu0 %615
      %617 = vrot.lane.b32.xlu0 %v607, 24
      %v618 = vpop.permute.xlu0 %617
      %619 = vrot.lane.b32.xlu0 %v608, 24
      %v620 = vpop.permute.xlu0 %619
      %vm621 = vcmask 195584
      %v622 = vsel %vm621, %v614, %v616
      %v623 = vsel %vm621, %v616, %v618
      %v624 = vsel %vm621, %v618, %v620
      %v629 = vmax.f32 %v573, %v614
      %v630 = vmax.f32 %v574, %v622
      %v631 = vmax.f32 %v575, %v623
      %v632 = vmax.f32 %v576, %v624
      %v633 = vlaneseq
      %v634 = vshrl.u32 %v633, 7
      %v635 = vsub.s32 2, %v634
      %v636 = vrot.slane %v515, %v635
      %v637 = vlaneseq
      %v638 = vshrl.u32 %v637, 7
      %v639 = vsub.s32 2, %v638
      %v640 = vrot.slane %v516, %v639
      %v641 = vlaneseq
      %v642 = vshrl.u32 %v641, 7
      %v643 = vsub.s32 2, %v642
      %v644 = vrot.slane %v517, %v643
      %648 = vrot.lane.b32.xlu0 %v636, 52
      %v649 = vpop.permute.xlu0 %648
      %650 = vrot.lane.b32.xlu0 %v640, 52
      %v651 = vpop.permute.xlu0 %650
      %652 = vrot.lane.b32.xlu0 %v644, 52
      %v653 = vpop.permute.xlu0 %652
      %vm654 = vcmask 424960
      %v655 = vsel %vm654, %v649, %v651
      %v656 = vsel %vm654, %v651, %v653
      %v661 = vadd.f32 %v333, %v649
      %v662 = vadd.f32 %v334, %v655
      %v663 = vadd.f32 %v335, %v656
      %v664 = vadd.f32 %v336, %v653
      %669 = vrot.lane.b32.xlu0 %v661, 23
      %v670 = vpop.permute.xlu0 %669
      %671 = vrot.lane.b32.xlu0 %v662, 23
      %v672 = vpop.permute.xlu0 %671
      %673 = vrot.lane.b32.xlu0 %v663, 23
      %v674 = vpop.permute.xlu0 %673
      %675 = vrot.lane.b32.xlu0 %v664, 23
      %v676 = vpop.permute.xlu0 %675
      %vm677 = vcmask 187392
      %v678 = vsel %vm677, %v670, %v672
      %v679 = vsel %vm677, %v672, %v674
      %v680 = vsel %vm677, %v674, %v676
      %v685 = vmax.f32 %v629, %v670
      %v686 = vmax.f32 %v630, %v678
      %v687 = vmax.f32 %v631, %v679
      %v688 = vmax.f32 %v632, %v680
      %v689 = vlaneseq
      %v690 = vshrl.u32 %v689, 7
      %v691 = vsub.s32 3, %v690
      %v692 = vrot.slane %v515, %v691
      %v693 = vlaneseq
      %v694 = vshrl.u32 %v693, 7
      %v695 = vsub.s32 3, %v694
      %v696 = vrot.slane %v516, %v695
      %v697 = vlaneseq
      %v698 = vshrl.u32 %v697, 7
      %v699 = vsub.s32 3, %v698
      %v700 = vrot.slane %v517, %v699
      %704 = vrot.lane.b32.xlu0 %v692, 74
      %v705 = vpop.permute.xlu0 %704
      %706 = vrot.lane.b32.xlu0 %v696, 74
      %v707 = vpop.permute.xlu0 %706
      %708 = vrot.lane.b32.xlu0 %v700, 74
      %v709 = vpop.permute.xlu0 %708
      %vm710 = vcmask 605184
      %v711 = vsel %vm710, %v705, %v707
      %v712 = vsel %vm710, %v707, %v709
      %v717 = vadd.f32 %v333, %v705
      %v718 = vadd.f32 %v334, %v711
      %v719 = vadd.f32 %v335, %v712
      %v720 = vadd.f32 %v336, %v709
      %725 = vrot.lane.b32.xlu0 %v717, 1
      %v726 = vpop.permute.xlu0 %725
      %727 = vrot.lane.b32.xlu0 %v718, 1
      %v728 = vpop.permute.xlu0 %727
      %729 = vrot.lane.b32.xlu0 %v719, 1
      %v730 = vpop.permute.xlu0 %729
      %731 = vrot.lane.b32.xlu0 %v720, 1
      %v732 = vpop.permute.xlu0 %731
      %vm733 = vcmask 7168
      %v734 = vsel %vm733, %v726, %v728
      %v735 = vsel %vm733, %v728, %v730
      %v736 = vsel %vm733, %v730, %v732
      %v741 = vmax.f32 %v685, %v726
      %v742 = vmax.f32 %v686, %v734
      %v743 = vmax.f32 %v687, %v735
      %v744 = vmax.f32 %v688, %v736
      %v745 = vlaneseq
      %v746 = vshrl.u32 %v745, 7
      %v747 = vsub.s32 5, %v746
      %v748 = vrot.slane %v515, %v747
      %v749 = vlaneseq
      %v750 = vshrl.u32 %v749, 7
      %v751 = vsub.s32 5, %v750
      %v752 = vrot.slane %v516, %v751
      %v753 = vlaneseq
      %v754 = vshrl.u32 %v753, 7
      %v755 = vsub.s32 5, %v754
      %v756 = vrot.slane %v517, %v755
      %760 = vrot.lane.b32.xlu0 %v748, 76
      %v761 = vpop.permute.xlu0 %760
      %762 = vrot.lane.b32.xlu0 %v752, 76
      %v763 = vpop.permute.xlu0 %762
      %764 = vrot.lane.b32.xlu0 %v756, 76
      %v765 = vpop.permute.xlu0 %764
      %vm766 = vcmask 621568
      %v767 = vsel %vm766, %v761, %v763
      %v768 = vsel %vm766, %v763, %v765
      %v773 = vadd.f32 %v333, %v761
      %v774 = vadd.f32 %v334, %v767
      %v775 = vadd.f32 %v335, %v768
      %v776 = vadd.f32 %v336, %v765
      %781 = vrot.lane.b32.xlu0 %v773, 127
      %v782 = vpop.permute.xlu0 %781
      %783 = vrot.lane.b32.xlu0 %v774, 127
      %v784 = vpop.permute.xlu0 %783
      %785 = vrot.lane.b32.xlu0 %v775, 127
      %v786 = vpop.permute.xlu0 %785
      %787 = vrot.lane.b32.xlu0 %v776, 127
      %v788 = vpop.permute.xlu0 %787
      %vm789 = vcmask 1039360
      %v790 = vsel %vm789, %v782, %v784
      %v791 = vsel %vm789, %v784, %v786
      %v792 = vsel %vm789, %v786, %v788
      %v797 = vmax.f32 %v741, %v790
      %v798 = vmax.f32 %v742, %v791
      %v799 = vmax.f32 %v743, %v792
      %v800 = vmax.f32 %v744, %v788
      %v801 = vlaneseq
      %v802 = vshrl.u32 %v801, 7
      %v803 = vsub.s32 6, %v802
      %v804 = vrot.slane %v515, %v803
      %v805 = vlaneseq
      %v806 = vshrl.u32 %v805, 7
      %v807 = vsub.s32 6, %v806
      %v808 = vrot.slane %v516, %v807
      %v809 = vlaneseq
      %v810 = vshrl.u32 %v809, 7
      %v811 = vsub.s32 6, %v810
      %v812 = vrot.slane %v517, %v811
      %816 = vrot.lane.b32.xlu0 %v804, 98
      %v817 = vpop.permute.xlu0 %816
      %818 = vrot.lane.b32.xlu0 %v808, 98
      %v819 = vpop.permute.xlu0 %818
      %820 = vrot.lane.b32.xlu0 %v812, 98
      %v821 = vpop.permute.xlu0 %820
      %vm822 = vcmask 801792
      %v823 = vsel %vm822, %v817, %v819
      %v824 = vsel %vm822, %v819, %v821
      %v829 = vadd.f32 %v333, %v817
      %v830 = vadd.f32 %v334, %v823
      %v831 = vadd.f32 %v335, %v824
      %v832 = vadd.f32 %v336, %v821
      %837 = vrot.lane.b32.xlu0 %v829, 105
      %v838 = vpop.permute.xlu0 %837
      %839 = vrot.lane.b32.xlu0 %v830, 105
      %v840 = vpop.permute.xlu0 %839
      %841 = vrot.lane.b32.xlu0 %v831, 105
      %v842 = vpop.permute.xlu0 %841
      %843 = vrot.lane.b32.xlu0 %v832, 105
      %v844 = vpop.permute.xlu0 %843
      %vm845 = vcmask 859136
      %v846 = vsel %vm845, %v838, %v840
      %v847 = vsel %vm845, %v840, %v842
      %v848 = vsel %vm845, %v842, %v844
      %v853 = vmax.f32 %v797, %v846
      %v854 = vmax.f32 %v798, %v847
      %v855 = vmax.f32 %v799, %v848
      %v856 = vmax.f32 %v800, %v844
      %v857 = vlaneseq
      %v858 = vshrl.u32 %v857, 7
      %v859 = vsub.s32 7, %v858
      %v860 = vrot.slane %v515, %v859
      %v861 = vlaneseq
      %v862 = vshrl.u32 %v861, 7
      %v863 = vsub.s32 7, %v862
      %v864 = vrot.slane %v516, %v863
      %v865 = vlaneseq
      %v866 = vshrl.u32 %v865, 7
      %v867 = vsub.s32 7, %v866
      %v868 = vrot.slane %v517, %v867
      %872 = vrot.lane.b32.xlu0 %v860, 99
      %v873 = vpop.permute.xlu0 %872
      %874 = vrot.lane.b32.xlu0 %v864, 99
      %v875 = vpop.permute.xlu0 %874
      %876 = vrot.lane.b32.xlu0 %v868, 99
      %v877 = vpop.permute.xlu0 %876
      %vm878 = vcmask 809984
      %v879 = vsel %vm878, %v873, %v875
      %v880 = vsel %vm878, %v875, %v877
      %v885 = vadd.f32 %v333, %v873
      %v886 = vadd.f32 %v334, %v879
      %v887 = vadd.f32 %v335, %v880
      %v888 = vadd.f32 %v336, %v877
      %893 = vrot.lane.b32.xlu0 %v885, 104
      %v894 = vpop.permute.xlu0 %893
      %895 = vrot.lane.b32.xlu0 %v886, 104
      %v896 = vpop.permute.xlu0 %895
      %897 = vrot.lane.b32.xlu0 %v887, 104
      %v898 = vpop.permute.xlu0 %897
      %899 = vrot.lane.b32.xlu0 %v888, 104
      %v900 = vpop.permute.xlu0 %899
      %vm901 = vcmask 850944
      %v902 = vsel %vm901, %v894, %v896
      %v903 = vsel %vm901, %v896, %v898
      %v904 = vsel %vm901, %v898, %v900
      %v909 = vmax.f32 %v853, %v902
      %v910 = vmax.f32 %v854, %v903
      %v911 = vmax.f32 %v855, %v904
      %v912 = vmax.f32 %v856, %v900
      %v913 = vlaneseq
      %v914 = vshrl.u32 %v913, 7
      %v915 = vsub.s32 0, %v914
      %v916 = vrot.slane %v518, %v915
      %v917 = vlaneseq
      %v918 = vshrl.u32 %v917, 7
      %v919 = vsub.s32 0, %v918
      %v920 = vrot.slane %v519, %v919
      %v921 = vlaneseq
      %v922 = vshrl.u32 %v921, 7
      %v923 = vsub.s32 0, %v922
      %v924 = vrot.slane %v520, %v923
      %928 = vrot.lane.b32.xlu0 %v916, 100
      %v929 = vpop.permute.xlu0 %928
      %930 = vrot.lane.b32.xlu0 %v920, 100
      %v931 = vpop.permute.xlu0 %930
      %932 = vrot.lane.b32.xlu0 %v924, 100
      %v933 = vpop.permute.xlu0 %932
      %vm934 = vcmask 818176
      %v935 = vsel %vm934, %v929, %v931
      %v936 = vsel %vm934, %v931, %v933
      %v941 = vadd.f32 %v333, %v929
      %v942 = vadd.f32 %v334, %v935
      %v943 = vadd.f32 %v335, %v936
      %v944 = vadd.f32 %v336, %v933
      %949 = vrot.lane.b32.xlu0 %v941, 103
      %v950 = vpop.permute.xlu0 %949
      %951 = vrot.lane.b32.xlu0 %v942, 103
      %v952 = vpop.permute.xlu0 %951
      %953 = vrot.lane.b32.xlu0 %v943, 103
      %v954 = vpop.permute.xlu0 %953
      %955 = vrot.lane.b32.xlu0 %v944, 103
      %v956 = vpop.permute.xlu0 %955
      %vm957 = vcmask 842752
      %v958 = vsel %vm957, %v950, %v952
      %v959 = vsel %vm957, %v952, %v954
      %v960 = vsel %vm957, %v954, %v956
      %v965 = vmax.f32 %v909, %v958
      %v966 = vmax.f32 %v910, %v959
      %v967 = vmax.f32 %v911, %v960
      %v968 = vmax.f32 %v912, %v956
      %973 = vrot.lane.b32.xlu0 %v965, 53
      %v974 = vpop.permute.xlu0 %973
      %975 = vrot.lane.b32.xlu0 %v966, 53
      %v976 = vpop.permute.xlu0 %975
      %977 = vrot.lane.b32.xlu0 %v967, 53
      %v978 = vpop.permute.xlu0 %977
      %979 = vrot.lane.b32.xlu0 %v968, 53
      %v980 = vpop.permute.xlu0 %979
      %v981 = vsel %vm357, %v974, %v976
      %v982 = vsel %vm357, %v976, %v978
      %v983 = vsel %vm357, %v978, %v980
      %987 = vst [vmem:[%s332 + $0x48] sm:$0xff] %v981
      %988 = vst [vmem:[%s332 + $0x50] sm:$0xff] %v982
      %989 = vst [vmem:[%s332 + $0x58] sm:$0xff] %v983
      %990 = vst [vmem:[#allocation2] sm:$0xff] %v333
      %991 = vst [vmem:[#allocation2 + $0x8] sm:$0xff] %v334
      %992 = vst [vmem:[#allocation2 + $0x10] sm:$0xff] %v335
      %993 = vst [vmem:[#allocation2 + $0x18] sm:$0xff] %v336
      %995 = vrot.lane.b32.xlu0 %v333, 127
      %v996 = vpop.permute.xlu0 %995
      %997 = vrot.lane.b32.xlu0 %v334, 127
      %v998 = vpop.permute.xlu0 %997
      %999 = vrot.lane.b32.xlu0 %v335, 127
      %v1000 = vpop.permute.xlu0 %999
      %1001 = vrot.lane.b32.xlu0 %v336, 127
      %v1002 = vpop.permute.xlu0 %1001
      %1003 = vrot.lane.b32.xlu0 %v337, 127
      %v1004 = vpop.permute.xlu0 %1003
      %v1005 = vsel %vm789, %v996, %v998
      %v1006 = vsel %vm789, %v998, %v1000
      %v1007 = vsel %vm789, %v1000, %v1002
      %v1008 = vsel %vm789, %v1002, %v1004
      %1013 = vst [vmem:[#allocation2 + $0x20] sm:$0xff] %v1005
      %1014 = vst [vmem:[#allocation2 + $0x28] sm:$0xff] %v1006
      %1015 = vst [vmem:[#allocation2 + $0x30] sm:$0xff] %v1007
      %1016 = vst [vmem:[#allocation2 + $0x38] sm:$0xff] %v1008
      %1017 = vrot.lane.b32.xlu0 %v333, 126
      %v1018 = vpop.permute.xlu0 %1017
      %1019 = vrot.lane.b32.xlu0 %v334, 126
      %v1020 = vpop.permute.xlu0 %1019
      %1021 = vrot.lane.b32.xlu0 %v335, 126
      %v1022 = vpop.permute.xlu0 %1021
      %1023 = vrot.lane.b32.xlu0 %v336, 126
      %v1024 = vpop.permute.xlu0 %1023
      %1025 = vrot.lane.b32.xlu0 %v337, 126
      %v1026 = vpop.permute.xlu0 %1025
      %vm1027 = vcmask 1031168
      %v1028 = vsel %vm1027, %v1018, %v1020
      %v1029 = vsel %vm1027, %v1020, %v1022
      %v1030 = vsel %vm1027, %v1022, %v1024
      %v1031 = vsel %vm1027, %v1024, %v1026
      %1036 = vst [vmem:[#allocation2 + $0x40] sm:$0xff] %v1028
      %1037 = vst [vmem:[#allocation2 + $0x48] sm:$0xff] %v1029
      %1038 = vst [vmem:[#allocation2 + $0x50] sm:$0xff] %v1030
      %1039 = vst [vmem:[#allocation2 + $0x58] sm:$0xff] %v1031
      %1040 = vrot.lane.b32.xlu0 %v333, 104
      %v1041 = vpop.permute.xlu0 %1040
      %1042 = vrot.lane.b32.xlu0 %v334, 104
      %v1043 = vpop.permute.xlu0 %1042
      %1044 = vrot.lane.b32.xlu0 %v335, 104
      %v1045 = vpop.permute.xlu0 %1044
      %1046 = vrot.lane.b32.xlu0 %v336, 104
      %v1047 = vpop.permute.xlu0 %1046
      %1048 = vrot.lane.b32.xlu0 %v337, 104
      %v1049 = vpop.permute.xlu0 %1048
      %v1050 = vsel %vm901, %v1041, %v1043
      %v1051 = vsel %vm901, %v1043, %v1045
      %v1052 = vsel %vm901, %v1045, %v1047
      %v1053 = vsel %vm901, %v1047, %v1049
      %1058 = vst [vmem:[#allocation2 + $0x60] sm:$0xff] %v1050
      %1059 = vst [vmem:[#allocation2 + $0x68] sm:$0xff] %v1051
      %1060 = vst [vmem:[#allocation2 + $0x70] sm:$0xff] %v1052
      %1061 = vst [vmem:[#allocation2 + $0x78] sm:$0xff] %v1053
      %1062 = vrot.lane.b32.xlu0 %v333, 103
      %v1063 = vpop.permute.xlu0 %1062
      %1064 = vrot.lane.b32.xlu0 %v334, 103
      %v1065 = vpop.permute.xlu0 %1064
      %1066 = vrot.lane.b32.xlu0 %v335, 103
      %v1067 = vpop.permute.xlu0 %1066
      %1068 = vrot.lane.b32.xlu0 %v336, 103
      %v1069 = vpop.permute.xlu0 %1068
      %1070 = vrot.lane.b32.xlu0 %v337, 103
      %v1071 = vpop.permute.xlu0 %1070
      %v1072 = vsel %vm957, %v1063, %v1065
      %v1073 = vsel %vm957, %v1065, %v1067
      %v1074 = vsel %vm957, %v1067, %v1069
      %v1075 = vsel %vm957, %v1069, %v1071
      %1080 = vst [vmem:[#allocation2 + $0x80] sm:$0xff] %v1072
      %1081 = vst [vmem:[#allocation2 + $0x88] sm:$0xff] %v1073
      %1082 = vst [vmem:[#allocation2 + $0x90] sm:$0xff] %v1074
      %1083 = vst [vmem:[#allocation2 + $0x98] sm:$0xff] %v1075
      %1084 = vrot.lane.b32.xlu0 %v333, 102
      %v1085 = vpop.permute.xlu0 %1084
      %1086 = vrot.lane.b32.xlu0 %v334, 102
      %v1087 = vpop.permute.xlu0 %1086
      %1088 = vrot.lane.b32.xlu0 %v335, 102
      %v1089 = vpop.permute.xlu0 %1088
      %1090 = vrot.lane.b32.xlu0 %v336, 102
      %v1091 = vpop.permute.xlu0 %1090
      %1092 = vrot.lane.b32.xlu0 %v337, 102
      %v1093 = vpop.permute.xlu0 %1092
      %vm1094 = vcmask 834560
      %v1095 = vsel %vm1094, %v1085, %v1087
      %v1096 = vsel %vm1094, %v1087, %v1089
      %v1097 = vsel %vm1094, %v1089, %v1091
      %v1098 = vsel %vm1094, %v1091, %v1093
      %1103 = vst [vmem:[#allocation2 + $0xa0] sm:$0xff] %v1095
      %1104 = vst [vmem:[#allocation2 + $0xa8] sm:$0xff] %v1096
      %1105 = vst [vmem:[#allocation2 + $0xb0] sm:$0xff] %v1097
      %1106 = vst [vmem:[#allocation2 + $0xb8] sm:$0xff] %v1098
      %1107 = vrot.lane.b32.xlu0 %v333, 80
      %v1108 = vpop.permute.xlu0 %1107
      %1109 = vrot.lane.b32.xlu0 %v334, 80
      %v1110 = vpop.permute.xlu0 %1109
      %1111 = vrot.lane.b32.xlu0 %v335, 80
      %v1112 = vpop.permute.xlu0 %1111
      %1113 = vrot.lane.b32.xlu0 %v336, 80
      %v1114 = vpop.permute.xlu0 %1113
      %1115 = vrot.lane.b32.xlu0 %v337, 80
      %v1116 = vpop.permute.xlu0 %1115
      %vm1117 = vcmask 654336
      %v1118 = vsel %vm1117, %v1108, %v1110
      %v1119 = vsel %vm1117, %v1110, %v1112
      %v1120 = vsel %vm1117, %v1112, %v1114
      %v1121 = vsel %vm1117, %v1114, %v1116
      %1126 = vst [vmem:[#allocation2 + $0xc0] sm:$0xff] %v1118
      %1127 = vst [vmem:[#allocation2 + $0xc8] sm:$0xff] %v1119
      %1128 = vst [vmem:[#allocation2 + $0xd0] sm:$0xff] %v1120
      %1129 = vst [vmem:[#allocation2 + $0xd8] sm:$0xff] %v1121
      %1130 = vrot.lane.b32.xlu0 %v333, 79
      %v1131 = vpop.permute.xlu0 %1130
      %1132 = vrot.lane.b32.xlu0 %v334, 79
      %v1133 = vpop.permute.xlu0 %1132
      %1134 = vrot.lane.b32.xlu0 %v335, 79
      %v1135 = vpop.permute.xlu0 %1134
      %1136 = vrot.lane.b32.xlu0 %v336, 79
      %v1137 = vpop.permute.xlu0 %1136
      %1138 = vrot.lane.b32.xlu0 %v337, 79
      %v1139 = vpop.permute.xlu0 %1138
      %vm1140 = vcmask 646144
      %v1141 = vsel %vm1140, %v1131, %v1133
      %v1142 = vsel %vm1140, %v1133, %v1135
      %v1143 = vsel %vm1140, %v1135, %v1137
      %v1144 = vsel %vm1140, %v1137, %v1139
      %1149 = vst [vmem:[#allocation2 + $0xe0] sm:$0xff] %v1141
      %1150 = vst [vmem:[#allocation2 + $0xe8] sm:$0xff] %v1142
      %1151 = vst [vmem:[#allocation2 + $0xf0] sm:$0xff] %v1143
      %1152 = vst [vmem:[#allocation2 + $0xf8] sm:$0xff] %v1144
      %1153 = vrot.lane.b32.xlu0 %v333, 78
      %v1154 = vpop.permute.xlu0 %1153
      %1155 = vrot.lane.b32.xlu0 %v334, 78
      %v1156 = vpop.permute.xlu0 %1155
      %1157 = vrot.lane.b32.xlu0 %v335, 78
      %v1158 = vpop.permute.xlu0 %1157
      %1159 = vrot.lane.b32.xlu0 %v336, 78
      %v1160 = vpop.permute.xlu0 %1159
      %1161 = vrot.lane.b32.xlu0 %v337, 78
      %v1162 = vpop.permute.xlu0 %1161
      %vm1163 = vcmask 637952
      %v1164 = vsel %vm1163, %v1154, %v1156
      %v1165 = vsel %vm1163, %v1156, %v1158
      %v1166 = vsel %vm1163, %v1158, %v1160
      %v1167 = vsel %vm1163, %v1160, %v1162
      %1172 = vst [vmem:[#allocation2 + $0x100] sm:$0xff] %v1164
      %1173 = vst [vmem:[#allocation2 + $0x108] sm:$0xff] %v1165
      %1174 = vst [vmem:[#allocation2 + $0x110] sm:$0xff] %v1166
      %1175 = vst [vmem:[#allocation2 + $0x118] sm:$0xff] %v1167
      %v1176 = vld [vmem:[%s5] sm:$0xff]
      %v1177 = vld [vmem:[%s5 + $0x8] sm:$0xff]
      %v1178 = vld [vmem:[#allocation2] sm:$0xff]
      %v1179 = vld [vmem:[#allocation2 + $0x8] sm:$0xff]
      %v1180 = vld [vmem:[#allocation2 + $0x10] sm:$0xff]
      %v1181 = vld [vmem:[#allocation2 + $0x18] sm:$0xff]
      %v1182 = vld [vmem:[#allocation2 + $0x20] sm:$0xff]
      %v1183 = vld [vmem:[#allocation2 + $0x28] sm:$0xff]
      %v1184 = vld [vmem:[#allocation2 + $0x30] sm:$0xff]
      %v1185 = vld [vmem:[#allocation2 + $0x38] sm:$0xff]
      %v1186 = vld [vmem:[#allocation2 + $0x40] sm:$0xff]
      %v1187 = vld [vmem:[#allocation2 + $0x48] sm:$0xff]
      %v1188 = vld [vmem:[#allocation2 + $0x50] sm:$0xff]
      %v1189 = vld [vmem:[#allocation2 + $0x58] sm:$0xff]
      %v1190 = vld [vmem:[#allocation2 + $0x60] sm:$0xff]
      %v1191 = vld [vmem:[#allocation2 + $0x68] sm:$0xff]
      %v1192 = vld [vmem:[#allocation2 + $0x70] sm:$0xff]
      %v1193 = vld [vmem:[#allocation2 + $0x78] sm:$0xff]
      %v1194 = vld [vmem:[#allocation2 + $0x80] sm:$0xff]
      %v1195 = vld [vmem:[#allocation2 + $0x88] sm:$0xff]
      %v1196 = vld [vmem:[#allocation2 + $0x90] sm:$0xff]
      %v1197 = vld [vmem:[#allocation2 + $0x98] sm:$0xff]
      %v1198 = vld [vmem:[#allocation2 + $0xa0] sm:$0xff]
      %v1199 = vld [vmem:[#allocation2 + $0xa8] sm:$0xff]
      %v1200 = vld [vmem:[#allocation2 + $0xb0] sm:$0xff]
      %v1201 = vld [vmem:[#allocation2 + $0xb8] sm:$0xff]
      %v1202 = vld [vmem:[#allocation2 + $0xc0] sm:$0xff]
      %v1203 = vld [vmem:[#allocation2 + $0xc8] sm:$0xff]
      %v1204 = vld [vmem:[#allocation2 + $0xd0] sm:$0xff]
      %v1205 = vld [vmem:[#allocation2 + $0xd8] sm:$0xff]
      %v1206 = vld [vmem:[#allocation2 + $0xe0] sm:$0xff]
      %v1207 = vld [vmem:[#allocation2 + $0xe8] sm:$0xff]
      %v1208 = vld [vmem:[#allocation2 + $0xf0] sm:$0xff]
      %v1209 = vld [vmem:[#allocation2 + $0xf8] sm:$0xff]
      %v1210 = vld [vmem:[#allocation2 + $0x100] sm:$0xff]
      %v1211 = vld [vmem:[#allocation2 + $0x108] sm:$0xff]
      %v1212 = vld [vmem:[#allocation2 + $0x110] sm:$0xff]
      %v1213 = vld [vmem:[#allocation2 + $0x118] sm:$0xff]
      %v1214 = vld [vmem:[%s6] sm:$0xff]
      %v1215 = vld [vmem:[%s6 + $0x8] sm:$0xff]
      %1217 = vset.pattern.permute.xlu0 0
      %1218 = vperm.xlu0 %1217, %v1214
      %v1219 = vpop.permute.xlu0 %1218
      %1222 = vset.pattern.permute.xlu0 0
      %1223 = vperm.xlu0 %1222, %v1215
      %v1224 = vpop.permute.xlu0 %1223
      %vm1226 = vcmask 588800
      %v1228 = vsel %vm1226, %v1176, 0
      %v1231 = vsel %vm1226, %v1177, 0
      %1233 = vmatprep.subr.mxu0 0.0
      %1234 = vmatpush1.msra.mxu0 0.0
      %1235 = vmatprep.subr.mxu0 0.0
      %1236 = vmatpush1.msra.mxu0 0.0
      %1237 = vmatprep.subr.mxu0 0.0
      %1238 = vmatpush1.msra.mxu0 0.0
      %1239 = vmatprep.subr.mxu0 0.0
      %1240 = vmatpush1.msra.mxu0 0.0
      %1241 = vmatprep.subr.mxu0 0.0
      %1242 = vmatpush1.msra.mxu0 0.0
      %1243 = vmatprep.subr.mxu0 0.0
      %1244 = vmatpush1.msra.mxu0 0.0
      %1245 = vmatprep.subr.mxu0 0.0
      %1246 = vmatpush1.msra.mxu0 0.0
      %1247 = vmatprep.subr.mxu0 %v1211
      %1248 = vmatpush1.msra.mxu0 %v1210
      %1249 = vmatprep.subr.mxu0 %v1207
      %1250 = vmatpush1.msra.mxu0 %v1206
      %1251 = vmatprep.subr.mxu0 %v1203
      %1252 = vmatpush1.msra.mxu0 %v1202
      %1253 = vmatprep.subr.mxu0 %v1199
      %1254 = vmatpush1.msra.mxu0 %v1198
      %1255 = vmatprep.subr.mxu0 %v1195
      %1256 = vmatpush1.msra.mxu0 %v1194
      %1257 = vmatprep.subr.mxu0 %v1191
      %1258 = vmatpush1.msra.mxu0 %v1190
      %1259 = vmatprep.subr.mxu0 %v1187
      %1260 = vmatpush1.msra.mxu0 %v1186
      %1261 = vmatprep.subr.mxu0 %v1183
      %1262 = vmatpush1.msra.mxu0 %v1182
      %1263 = vmatprep.subr.mxu0 %v1179
      %1264 = vmatpush1.msra.mxu0 %v1178
      %1265 = vmatprep.subr.mxu0 0.0
      %1266 = vmatpush2.msra.mxu0 0.0
      %1267 = vmatprep.subr.mxu0 0.0
      %1268 = vmatpush2.msra.mxu0 0.0
      %1269 = vmatprep.subr.mxu0 0.0
      %1270 = vmatpush2.msra.mxu0 0.0
      %1271 = vmatprep.subr.mxu0 0.0
      %1272 = vmatpush2.msra.mxu0 0.0
      %1273 = vmatprep.subr.mxu0 0.0
      %1274 = vmatpush2.msra.mxu0 0.0
      %1275 = vmatprep.subr.mxu0 0.0
      %1276 = vmatpush2.msra.mxu0 0.0
      %1277 = vmatprep.subr.mxu0 0.0
      %1278 = vmatpush2.msra.mxu0 0.0
      %1279 = vmatprep.subr.mxu0 0.0
      %1280 = vmatpush2.msra.mxu0 0.0
      %1281 = vmatprep.subr.mxu0 0.0
      %1282 = vmatpush2.msra.mxu0 0.0
      %1283 = vmatprep.subr.mxu0 0.0
      %1284 = vmatpush2.msra.mxu0 0.0
      %1285 = vmatprep.subr.mxu0 0.0
      %1286 = vmatpush2.msra.mxu0 0.0
      %1287 = vmatprep.subr.mxu0 0.0
      %1288 = vmatpush2.msra.mxu0 0.0
      %1289 = vmatprep.subr.mxu0 0.0
      %1290 = vmatpush2.msra.mxu0 0.0
      %1291 = vmatprep.subr.mxu0 0.0
      %1292 = vmatpush2.msra.mxu0 0.0
      %1293 = vmatprep.subr.mxu0 0.0
      %1294 = vmatpush2.msra.mxu0 0.0
      %1295 = vmatprep.subr.mxu0 0.0
      %1296 = vmatpush2.msra.mxu0 0.0
      %1297 = vmatprep.mubr.f32.mxu0 0.0
      %1298 = vmatmul.mubr.f32.gmra.mxu0 %v1228
      %v1299 = vpop.f32.mrf.mxu0
      %v1300 = vadd.f32 %v1219, %v1299
      %v1301 = vpop.f32.mrf.mxu0
      %v1302 = vadd.f32 %v1219, %v1301
      %1303 = vmatprep.mubr.f32.mxu0 0.0
      %1304 = vmatmul.mubr.f32.gmra.mxu0 %v1231
      %v1305 = vpop.f32.mrf.mxu0
      %v1306 = vadd.f32 %v1224, %v1305
      %v1307 = vpop.f32.mrf.mxu0
      %v1308 = vadd.f32 %v1224, %v1307
      %1309 = vdwg.mxu0
      %1310 = vmatprep.subr.mxu0 0.0
      %1311 = vmatpush1.msra.mxu0 0.0
      %1312 = vmatprep.subr.mxu0 0.0
      %1313 = vmatpush1.msra.mxu0 0.0
      %1314 = vmatprep.subr.mxu0 0.0
      %1315 = vmatpush1.msra.mxu0 0.0
      %1316 = vmatprep.subr.mxu0 0.0
      %1317 = vmatpush1.msra.mxu0 0.0
      %1318 = vmatprep.subr.mxu0 0.0
      %1319 = vmatpush1.msra.mxu0 0.0
      %1320 = vmatprep.subr.mxu0 0.0
      %1321 = vmatpush1.msra.mxu0 0.0
      %1322 = vmatprep.subr.mxu0 0.0
      %1323 = vmatpush1.msra.mxu0 0.0
      %1324 = vmatprep.subr.mxu0 %v1213
      %1325 = vmatpush1.msra.mxu0 %v1212
      %1326 = vmatprep.subr.mxu0 %v1209
      %1327 = vmatpush1.msra.mxu0 %v1208
      %1328 = vmatprep.subr.mxu0 %v1205
      %1329 = vmatpush1.msra.mxu0 %v1204
      %1330 = vmatprep.subr.mxu0 %v1201
      %1331 = vmatpush1.msra.mxu0 %v1200
      %1332 = vmatprep.subr.mxu0 %v1197
      %1333 = vmatpush1.msra.mxu0 %v1196
      %1334 = vmatprep.subr.mxu0 %v1193
      %1335 = vmatpush1.msra.mxu0 %v1192
      %1336 = vmatprep.subr.mxu0 %v1189
      %1337 = vmatpush1.msra.mxu0 %v1188
      %1338 = vmatprep.subr.mxu0 %v1185
      %1339 = vmatpush1.msra.mxu0 %v1184
      %1340 = vmatprep.subr.mxu0 %v1181
      %1341 = vmatpush1.msra.mxu0 %v1180
      %1342 = vmatprep.subr.mxu0 0.0
      %1343 = vmatpush2.msra.mxu0 0.0
      %1344 = vmatprep.subr.mxu0 0.0
      %1345 = vmatpush2.msra.mxu0 0.0
      %1346 = vmatprep.subr.mxu0 0.0
      %1347 = vmatpush2.msra.mxu0 0.0
      %1348 = vmatprep.subr.mxu0 0.0
      %1349 = vmatpush2.msra.mxu0 0.0
      %1350 = vmatprep.subr.mxu0 0.0
      %1351 = vmatpush2.msra.mxu0 0.0
      %1352 = vmatprep.subr.mxu0 0.0
      %1353 = vmatpush2.msra.mxu0 0.0
      %1354 = vmatprep.subr.mxu0 0.0
      %1355 = vmatpush2.msra.mxu0 0.0
      %1356 = vmatprep.subr.mxu0 0.0
      %1357 = vmatpush2.msra.mxu0 0.0
      %1358 = vmatprep.subr.mxu0 0.0
      %1359 = vmatpush2.msra.mxu0 0.0
      %1360 = vmatprep.subr.mxu0 0.0
      %1361 = vmatpush2.msra.mxu0 0.0
      %1362 = vmatprep.subr.mxu0 0.0
      %1363 = vmatpush2.msra.mxu0 0.0
      %1364 = vmatprep.subr.mxu0 0.0
      %1365 = vmatpush2.msra.mxu0 0.0
      %1366 = vmatprep.subr.mxu0 0.0
      %1367 = vmatpush2.msra.mxu0 0.0
      %1368 = vmatprep.subr.mxu0 0.0
      %1369 = vmatpush2.msra.mxu0 0.0
      %1370 = vmatprep.subr.mxu0 0.0
      %1371 = vmatpush2.msra.mxu0 0.0
      %1372 = vmatprep.subr.mxu0 0.0
      %1373 = vmatpush2.msra.mxu0 0.0
      %1374 = vmatprep.mubr.f32.mxu0 0.0
      %1375 = vmatmul.mubr.f32.gmra.mxu0 %v1228
      %v1376 = vpop.f32.mrf.mxu0
      %v1377 = vadd.f32 %v1219, %v1376
      %v1378 = vpop.f32.mrf.mxu0
      %v1379 = vadd.f32 %v1219, %v1378
      %1380 = vmatprep.mubr.f32.mxu0 0.0
      %1381 = vmatmul.mubr.f32.gmra.mxu0 %v1231
      %v1382 = vpop.f32.mrf.mxu0
      %v1383 = vadd.f32 %v1224, %v1382
      %v1384 = vpop.f32.mrf.mxu0
      %v1385 = vadd.f32 %v1224, %v1384
      %1386 = vdwg.mxu0
      %v1387 = vmax.f32 %v1300, 0.0
      %v1388 = vmax.f32 %v1302, 0.0
      %v1389 = vmax.f32 %v1377, 0.0
      %v1390 = vmax.f32 %v1379, 0.0
      %v1391 = vmax.f32 %v1306, 0.0
      %v1392 = vmax.f32 %v1308, 0.0
      %v1393 = vmax.f32 %v1383, 0.0
      %v1394 = vmax.f32 %v1385, 0.0
      %v1395 = vld [vmem:[%s2] sm:$0xf]
      %v1397 = vlaneseq
      %v1398 = vshrl.u32 %v1397, 7
      %v1399 = vsub.s32 0, %v1398
      %v1400 = vrot.slane %v1395, %v1399
      %v1401 = vlaneseq
      %v1402 = vshrl.u32 %v1401, 7
      %v1403 = vsub.s32 1, %v1402
      %v1404 = vrot.slane %v1395, %v1403
      %v1405 = vlaneseq
      %v1406 = vshrl.u32 %v1405, 7
      %v1407 = vsub.s32 2, %v1406
      %v1408 = vrot.slane %v1395, %v1407
      %v1409 = vlaneseq
      %v1410 = vshrl.u32 %v1409, 7
      %v1411 = vsub.s32 3, %v1410
      %v1412 = vrot.slane %v1395, %v1411
      %v1417 = vmul.f32 %v1387, %v1400
      %v1418 = vmul.f32 %v1388, %v1404
      %v1419 = vmul.f32 %v1389, %v1408
      %v1420 = vmul.f32 %v1390, %v1412
      %v1421 = vmul.f32 %v1391, %v1400
      %v1422 = vmul.f32 %v1392, %v1404
      %v1423 = vmul.f32 %v1393, %v1408
      %v1424 = vmul.f32 %v1394, %v1412
      %1425 = vst [vmem:[#allocation3] sm:$0xff] %v1417
      %1426 = vst [vmem:[#allocation3 + $0x8] sm:$0xff] %v1418
      %1427 = vst [vmem:[#allocation3 + $0x10] sm:$0xff] %v1419
      %1428 = vst [vmem:[#allocation3 + $0x18] sm:$0xff] %v1420
      %1429 = vst [vmem:[#allocation3 + $0x20] sm:$0xff] %v1421
      %1430 = vst [vmem:[#allocation3 + $0x28] sm:$0xff] %v1422
      %1431 = vst [vmem:[#allocation3 + $0x30] sm:$0xff] %v1423
      %1432 = vst [vmem:[#allocation3 + $0x38] sm:$0xff] %v1424
      %v1433 = vld [vmem:[#allocation3] sm:$0xff]
      %v1434 = vld [vmem:[#allocation3 + $0x8] sm:$0xff]
      %v1435 = vld [vmem:[#allocation3 + $0x10] sm:$0xff]
      %v1436 = vld [vmem:[#allocation3 + $0x20] sm:$0xff]
      %v1437 = vld [vmem:[#allocation3 + $0x28] sm:$0xff]
      %v1438 = vld [vmem:[#allocation3 + $0x30] sm:$0xff]
      %1439 = vst [vmem:[#allocation4] sm:$0xff] %v1433
      %1440 = vst [vmem:[#allocation4 + $0x8] sm:$0xff] %v1434
      %1441 = vst [vmem:[#allocation4 + $0x10] sm:$0xff] %v1435
      %1442 = vst [vmem:[#allocation4 + $0x18] sm:$0xff] %v1436
      %1443 = vst [vmem:[#allocation4 + $0x20] sm:$0xff] %v1437
      %1444 = vst [vmem:[#allocation4 + $0x28] sm:$0xff] %v1438
      %v1445 = vld [vmem:[#allocation3] sm:$0xff]
      %v1446 = vld [vmem:[#allocation3 + $0x8] sm:$0xff]
      %v1447 = vld [vmem:[#allocation3 + $0x10] sm:$0xff]
      %v1448 = vld [vmem:[#allocation3 + $0x18] sm:$0xff]
      %v1449 = vld [vmem:[#allocation3 + $0x20] sm:$0xff]
      %v1450 = vld [vmem:[#allocation3 + $0x28] sm:$0xff]
      %v1451 = vld [vmem:[#allocation3 + $0x30] sm:$0xff]
      %v1452 = vld [vmem:[#allocation3 + $0x38] sm:$0xff]
      %1461 = vrot.lane.b32.xlu0 %v1445, 127
      %v1462 = vpop.permute.xlu0 %1461
      %1463 = vrot.lane.b32.xlu0 %v1446, 127
      %v1464 = vpop.permute.xlu0 %1463
      %1465 = vrot.lane.b32.xlu0 %v1447, 127
      %v1466 = vpop.permute.xlu0 %1465
      %1467 = vrot.lane.b32.xlu0 %v1448, 127
      %v1468 = vpop.permute.xlu0 %1467
      %1469 = vrot.lane.b32.xlu0 %v1449, 127
      %v1470 = vpop.permute.xlu0 %1469
      %1471 = vrot.lane.b32.xlu0 %v1450, 127
      %v1472 = vpop.permute.xlu0 %1471
      %1473 = vrot.lane.b32.xlu0 %v1451, 127
      %v1474 = vpop.permute.xlu0 %1473
      %1475 = vrot.lane.b32.xlu0 %v1452, 127
      %v1476 = vpop.permute.xlu0 %1475
      %v1477 = vsel %vm789, %v1462, %v1464
      %v1478 = vsel %vm789, %v1464, %v1466
      %v1479 = vsel %vm789, %v1466, %v1468
      %v1480 = vsel %vm789, %v1470, %v1472
      %v1481 = vsel %vm789, %v1472, %v1474
      %v1482 = vsel %vm789, %v1474, %v1476
      %1489 = vst [vmem:[#allocation4 + $0x30] sm:$0xff] %v1477
      %1490 = vst [vmem:[#allocation4 + $0x38] sm:$0xff] %v1478
      %1491 = vst [vmem:[#allocation4 + $0x40] sm:$0xff] %v1479
      %1492 = vst [vmem:[#allocation4 + $0x48] sm:$0xff] %v1480
      %1493 = vst [vmem:[#allocation4 + $0x50] sm:$0xff] %v1481
      %1494 = vst [vmem:[#allocation4 + $0x58] sm:$0xff] %v1482
      %v1495 = vld [vmem:[#allocation3] sm:$0xff]
      %v1496 = vld [vmem:[#allocation3 + $0x8] sm:$0xff]
      %v1497 = vld [vmem:[#allocation3 + $0x10] sm:$0xff]
      %v1498 = vld [vmem:[#allocation3 + $0x18] sm:$0xff]
      %v1499 = vld [vmem:[#allocation3 + $0x20] sm:$0xff]
      %v1500 = vld [vmem:[#allocation3 + $0x28] sm:$0xff]
      %v1501 = vld [vmem:[#allocation3 + $0x30] sm:$0xff]
      %v1502 = vld [vmem:[#allocation3 + $0x38] sm:$0xff]
      %1511 = vrot.lane.b32.xlu0 %v1495, 126
      %v1512 = vpop.permute.xlu0 %1511
      %1513 = vrot.lane.b32.xlu0 %v1496, 126
      %v1514 = vpop.permute.xlu0 %1513
      %1515 = vrot.lane.b32.xlu0 %v1497, 126
      %v1516 = vpop.permute.xlu0 %1515
      %1517 = vrot.lane.b32.xlu0 %v1498, 126
      %v1518 = vpop.permute.xlu0 %1517
      %1519 = vrot.lane.b32.xlu0 %v1499, 126
      %v1520 = vpop.permute.xlu0 %1519
      %1521 = vrot.lane.b32.xlu0 %v1500, 126
      %v1522 = vpop.permute.xlu0 %1521
      %1523 = vrot.lane.b32.xlu0 %v1501, 126
      %v1524 = vpop.permute.xlu0 %1523
      %1525 = vrot.lane.b32.xlu0 %v1502, 126
      %v1526 = vpop.permute.xlu0 %1525
      %v1527 = vsel %vm1027, %v1512, %v1514
      %v1528 = vsel %vm1027, %v1514, %v1516
      %v1529 = vsel %vm1027, %v1516, %v1518
      %v1530 = vsel %vm1027, %v1520, %v1522
      %v1531 = vsel %vm1027, %v1522, %v1524
      %v1532 = vsel %vm1027, %v1524, %v1526
      %1539 = vst [vmem:[#allocation4 + $0x60] sm:$0xff] %v1527
      %1540 = vst [vmem:[#allocation4 + $0x68] sm:$0xff] %v1528
      %1541 = vst [vmem:[#allocation4 + $0x70] sm:$0xff] %v1529
      %1542 = vst [vmem:[#allocation4 + $0x78] sm:$0xff] %v1530
      %1543 = vst [vmem:[#allocation4 + $0x80] sm:$0xff] %v1531
      %1544 = vst [vmem:[#allocation4 + $0x88] sm:$0xff] %v1532
      %v1545 = vld [vmem:[#allocation3] sm:$0xff]
      %v1546 = vld [vmem:[#allocation3 + $0x8] sm:$0xff]
      %v1547 = vld [vmem:[#allocation3 + $0x10] sm:$0xff]
      %v1548 = vld [vmem:[#allocation3 + $0x18] sm:$0xff]
      %v1549 = vld [vmem:[#allocation3 + $0x20] sm:$0xff]
      %v1550 = vld [vmem:[#allocation3 + $0x28] sm:$0xff]
      %v1551 = vld [vmem:[#allocation3 + $0x30] sm:$0xff]
      %v1552 = vld [vmem:[#allocation3 + $0x38] sm:$0xff]
      %1561 = vrot.lane.b32.xlu0 %v1545, 125
      %v1562 = vpop.permute.xlu0 %1561
      %1563 = vrot.lane.b32.xlu0 %v1546, 125
      %v1564 = vpop.permute.xlu0 %1563
      %1565 = vrot.lane.b32.xlu0 %v1547, 125
      %v1566 = vpop.permute.xlu0 %1565
      %1567 = vrot.lane.b32.xlu0 %v1548, 125
      %v1568 = vpop.permute.xlu0 %1567
      %1569 = vrot.lane.b32.xlu0 %v1549, 125
      %v1570 = vpop.permute.xlu0 %1569
      %1571 = vrot.lane.b32.xlu0 %v1550, 125
      %v1572 = vpop.permute.xlu0 %1571
      %1573 = vrot.lane.b32.xlu0 %v1551, 125
      %v1574 = vpop.permute.xlu0 %1573
      %1575 = vrot.lane.b32.xlu0 %v1552, 125
      %v1576 = vpop.permute.xlu0 %1575
      %vm1577 = vcmask 1022976
      %v1578 = vsel %vm1577, %v1562, %v1564
      %v1579 = vsel %vm1577, %v1564, %v1566
      %v1580 = vsel %vm1577, %v1566, %v1568
      %v1581 = vsel %vm1577, %v1570, %v1572
      %v1582 = vsel %vm1577, %v1572, %v1574
      %v1583 = vsel %vm1577, %v1574, %v1576
      %1590 = vst [vmem:[#allocation4 + $0x90] sm:$0xff] %v1578
      %1591 = vst [vmem:[#allocation4 + $0x98] sm:$0xff] %v1579
      %1592 = vst [vmem:[#allocation4 + $0xa0] sm:$0xff] %v1580
      %1593 = vst [vmem:[#allocation4 + $0xa8] sm:$0xff] %v1581
      %1594 = vst [vmem:[#allocation4 + $0xb0] sm:$0xff] %v1582
      %1595 = vst [vmem:[#allocation4 + $0xb8] sm:$0xff] %v1583
      %v1596 = vld [vmem:[#allocation3] sm:$0xff]
      %v1597 = vld [vmem:[#allocation3 + $0x8] sm:$0xff]
      %v1598 = vld [vmem:[#allocation3 + $0x10] sm:$0xff]
      %v1599 = vld [vmem:[#allocation3 + $0x18] sm:$0xff]
      %v1600 = vld [vmem:[#allocation3 + $0x20] sm:$0xff]
      %v1601 = vld [vmem:[#allocation3 + $0x28] sm:$0xff]
      %v1602 = vld [vmem:[#allocation3 + $0x30] sm:$0xff]
      %v1603 = vld [vmem:[#allocation3 + $0x38] sm:$0xff]
      %1612 = vrot.lane.b32.xlu0 %v1596, 124
      %v1613 = vpop.permute.xlu0 %1612
      %1614 = vrot.lane.b32.xlu0 %v1597, 124
      %v1615 = vpop.permute.xlu0 %1614
      %1616 = vrot.lane.b32.xlu0 %v1598, 124
      %v1617 = vpop.permute.xlu0 %1616
      %1618 = vrot.lane.b32.xlu0 %v1599, 124
      %v1619 = vpop.permute.xlu0 %1618
      %1620 = vrot.lane.b32.xlu0 %v1600, 124
      %v1621 = vpop.permute.xlu0 %1620
      %1622 = vrot.lane.b32.xlu0 %v1601, 124
      %v1623 = vpop.permute.xlu0 %1622
      %1624 = vrot.lane.b32.xlu0 %v1602, 124
      %v1625 = vpop.permute.xlu0 %1624
      %1626 = vrot.lane.b32.xlu0 %v1603, 124
      %v1627 = vpop.permute.xlu0 %1626
      %vm1628 = vcmask 1014784
      %v1629 = vsel %vm1628, %v1613, %v1615
      %v1630 = vsel %vm1628, %v1615, %v1617
      %v1631 = vsel %vm1628, %v1617, %v1619
      %v1632 = vsel %vm1628, %v1621, %v1623
      %v1633 = vsel %vm1628, %v1623, %v1625
      %v1634 = vsel %vm1628, %v1625, %v1627
      %1641 = vst [vmem:[#allocation4 + $0xc0] sm:$0xff] %v1629
      %1642 = vst [vmem:[#allocation4 + $0xc8] sm:$0xff] %v1630
      %1643 = vst [vmem:[#allocation4 + $0xd0] sm:$0xff] %v1631
      %1644 = vst [vmem:[#allocation4 + $0xd8] sm:$0xff] %v1632
      %1645 = vst [vmem:[#allocation4 + $0xe0] sm:$0xff] %v1633
      %1646 = vst [vmem:[#allocation4 + $0xe8] sm:$0xff] %v1634
      %v1647 = vld [vmem:[#allocation3] sm:$0xff]
      %v1648 = vld [vmem:[#allocation3 + $0x8] sm:$0xff]
      %v1649 = vld [vmem:[#allocation3 + $0x10] sm:$0xff]
      %v1650 = vld [vmem:[#allocation3 + $0x18] sm:$0xff]
      %v1651 = vld [vmem:[#allocation3 + $0x20] sm:$0xff]
      %v1652 = vld [vmem:[#allocation3 + $0x28] sm:$0xff]
      %v1653 = vld [vmem:[#allocation3 + $0x30] sm:$0xff]
      %v1654 = vld [vmem:[#allocation3 + $0x38] sm:$0xff]
      %1663 = vrot.lane.b32.xlu0 %v1647, 104
      %v1664 = vpop.permute.xlu0 %1663
      %1665 = vrot.lane.b32.xlu0 %v1648, 104
      %v1666 = vpop.permute.xlu0 %1665
      %1667 = vrot.lane.b32.xlu0 %v1649, 104
      %v1668 = vpop.permute.xlu0 %1667
      %1669 = vrot.lane.b32.xlu0 %v1650, 104
      %v1670 = vpop.permute.xlu0 %1669
      %1671 = vrot.lane.b32.xlu0 %v1651, 104
      %v1672 = vpop.permute.xlu0 %1671
      %1673 = vrot.lane.b32.xlu0 %v1652, 104
      %v1674 = vpop.permute.xlu0 %1673
      %1675 = vrot.lane.b32.xlu0 %v1653, 104
      %v1676 = vpop.permute.xlu0 %1675
      %1677 = vrot.lane.b32.xlu0 %v1654, 104
      %v1678 = vpop.permute.xlu0 %1677
      %v1679 = vsel %vm901, %v1664, %v1666
      %v1680 = vsel %vm901, %v1666, %v1668
      %v1681 = vsel %vm901, %v1668, %v1670
      %v1682 = vsel %vm901, %v1672, %v1674
      %v1683 = vsel %vm901, %v1674, %v1676
      %v1684 = vsel %vm901, %v1676, %v1678
      %1691 = vst [vmem:[#allocation4 + $0xf0] sm:$0xff] %v1679
      %1692 = vst [vmem:[#allocation4 + $0xf8] sm:$0xff] %v1680
      %1693 = vst [vmem:[#allocation4 + $0x100] sm:$0xff] %v1681
      %1694 = vst [vmem:[#allocation4 + $0x108] sm:$0xff] %v1682
      %1695 = vst [vmem:[#allocation4 + $0x110] sm:$0xff] %v1683
      %1696 = vst [vmem:[#allocation4 + $0x118] sm:$0xff] %v1684
      %v1697 = vld [vmem:[#allocation3] sm:$0xff]
      %v1698 = vld [vmem:[#allocation3 + $0x8] sm:$0xff]
      %v1699 = vld [vmem:[#allocation3 + $0x10] sm:$0xff]
      %v1700 = vld [vmem:[#allocation3 + $0x18] sm:$0xff]
      %v1701 = vld [vmem:[#allocation3 + $0x20] sm:$0xff]
      %v1702 = vld [vmem:[#allocation3 + $0x28] sm:$0xff]
      %v1703 = vld [vmem:[#allocation3 + $0x30] sm:$0xff]
      %v1704 = vld [vmem:[#allocation3 + $0x38] sm:$0xff]
      %1713 = vrot.lane.b32.xlu0 %v1697, 103
      %v1714 = vpop.permute.xlu0 %1713
      %1715 = vrot.lane.b32.xlu0 %v1698, 103
      %v1716 = vpop.permute.xlu0 %1715
      %1717 = vrot.lane.b32.xlu0 %v1699, 103
      %v1718 = vpop.permute.xlu0 %1717
      %1719 = vrot.lane.b32.xlu0 %v1700, 103
      %v1720 = vpop.permute.xlu0 %1719
      %1721 = vrot.lane.b32.xlu0 %v1701, 103
      %v1722 = vpop.permute.xlu0 %1721
      %1723 = vrot.lane.b32.xlu0 %v1702, 103
      %v1724 = vpop.permute.xlu0 %1723
      %1725 = vrot.lane.b32.xlu0 %v1703, 103
      %v1726 = vpop.permute.xlu0 %1725
      %1727 = vrot.lane.b32.xlu0 %v1704, 103
      %v1728 = vpop.permute.xlu0 %1727
      %v1729 = vsel %vm957, %v1714, %v1716
      %v1730 = vsel %vm957, %v1716, %v1718
      %v1731 = vsel %vm957, %v1718, %v1720
      %v1732 = vsel %vm957, %v1722, %v1724
      %v1733 = vsel %vm957, %v1724, %v1726
      %v1734 = vsel %vm957, %v1726, %v1728
      %1741 = vst [vmem:[#allocation4 + $0x120] sm:$0xff] %v1729
      %1742 = vst [vmem:[#allocation4 + $0x128] sm:$0xff] %v1730
      %1743 = vst [vmem:[#allocation4 + $0x130] sm:$0xff] %v1731
      %1744 = vst [vmem:[#allocation4 + $0x138] sm:$0xff] %v1732
      %1745 = vst [vmem:[#allocation4 + $0x140] sm:$0xff] %v1733
      %1746 = vst [vmem:[#allocation4 + $0x148] sm:$0xff] %v1734
      %v1747 = vld [vmem:[#allocation3] sm:$0xff]
      %v1748 = vld [vmem:[#allocation3 + $0x8] sm:$0xff]
      %v1749 = vld [vmem:[#allocation3 + $0x10] sm:$0xff]
      %v1750 = vld [vmem:[#allocation3 + $0x18] sm:$0xff]
      %v1751 = vld [vmem:[#allocation3 + $0x20] sm:$0xff]
      %v1752 = vld [vmem:[#allocation3 + $0x28] sm:$0xff]
      %v1753 = vld [vmem:[#allocation3 + $0x30] sm:$0xff]
      %v1754 = vld [vmem:[#allocation3 + $0x38] sm:$0xff]
      %1763 = vrot.lane.b32.xlu0 %v1747, 102
      %v1764 = vpop.permute.xlu0 %1763
      %1765 = vrot.lane.b32.xlu0 %v1748, 102
      %v1766 = vpop.permute.xlu0 %1765
      %1767 = vrot.lane.b32.xlu0 %v1749, 102
      %v1768 = vpop.permute.xlu0 %1767
      %1769 = vrot.lane.b32.xlu0 %v1750, 102
      %v1770 = vpop.permute.xlu0 %1769
      %1771 = vrot.lane.b32.xlu0 %v1751, 102
      %v1772 = vpop.permute.xlu0 %1771
      %1773 = vrot.lane.b32.xlu0 %v1752, 102
      %v1774 = vpop.permute.xlu0 %1773
      %1775 = vrot.lane.b32.xlu0 %v1753, 102
      %v1776 = vpop.permute.xlu0 %1775
      %1777 = vrot.lane.b32.xlu0 %v1754, 102
      %v1778 = vpop.permute.xlu0 %1777
      %v1779 = vsel %vm1094, %v1764, %v1766
      %v1780 = vsel %vm1094, %v1766, %v1768
      %v1781 = vsel %vm1094, %v1768, %v1770
      %v1782 = vsel %vm1094, %v1772, %v1774
      %v1783 = vsel %vm1094, %v1774, %v1776
      %v1784 = vsel %vm1094, %v1776, %v1778
      %1791 = vst [vmem:[#allocation4 + $0x150] sm:$0xff] %v1779
      %1792 = vst [vmem:[#allocation4 + $0x158] sm:$0xff] %v1780
      %1793 = vst [vmem:[#allocation4 + $0x160] sm:$0xff] %v1781
      %1794 = vst [vmem:[#allocation4 + $0x168] sm:$0xff] %v1782
      %1795 = vst [vmem:[#allocation4 + $0x170] sm:$0xff] %v1783
      %1796 = vst [vmem:[#allocation4 + $0x178] sm:$0xff] %v1784
      %v1797 = vld [vmem:[#allocation3] sm:$0xff]
      %v1798 = vld [vmem:[#allocation3 + $0x8] sm:$0xff]
      %v1799 = vld [vmem:[#allocation3 + $0x10] sm:$0xff]
      %v1800 = vld [vmem:[#allocation3 + $0x18] sm:$0xff]
      %v1801 = vld [vmem:[#allocation3 + $0x20] sm:$0xff]
      %v1802 = vld [vmem:[#allocation3 + $0x28] sm:$0xff]
      %v1803 = vld [vmem:[#allocation3 + $0x30] sm:$0xff]
      %v1804 = vld [vmem:[#allocation3 + $0x38] sm:$0xff]
      %1813 = vrot.lane.b32.xlu0 %v1797, 101
      %v1814 = vpop.permute.xlu0 %1813
      %1815 = vrot.lane.b32.xlu0 %v1798, 101
      %v1816 = vpop.permute.xlu0 %1815
      %1817 = vrot.lane.b32.xlu0 %v1799, 101
      %v1818 = vpop.permute.xlu0 %1817
      %1819 = vrot.lane.b32.xlu0 %v1800, 101
      %v1820 = vpop.permute.xlu0 %1819
      %1821 = vrot.lane.b32.xlu0 %v1801, 101
      %v1822 = vpop.permute.xlu0 %1821
      %1823 = vrot.lane.b32.xlu0 %v1802, 101
      %v1824 = vpop.permute.xlu0 %1823
      %1825 = vrot.lane.b32.xlu0 %v1803, 101
      %v1826 = vpop.permute.xlu0 %1825
      %1827 = vrot.lane.b32.xlu0 %v1804, 101
      %v1828 = vpop.permute.xlu0 %1827
      %vm1829 = vcmask 826368
      %v1830 = vsel %vm1829, %v1814, %v1816
      %v1831 = vsel %vm1829, %v1816, %v1818
      %v1832 = vsel %vm1829, %v1818, %v1820
      %v1833 = vsel %vm1829, %v1822, %v1824
      %v1834 = vsel %vm1829, %v1824, %v1826
      %v1835 = vsel %vm1829, %v1826, %v1828
      %1842 = vst [vmem:[#allocation4 + $0x180] sm:$0xff] %v1830
      %1843 = vst [vmem:[#allocation4 + $0x188] sm:$0xff] %v1831
      %1844 = vst [vmem:[#allocation4 + $0x190] sm:$0xff] %v1832
      %1845 = vst [vmem:[#allocation4 + $0x198] sm:$0xff] %v1833
      %1846 = vst [vmem:[#allocation4 + $0x1a0] sm:$0xff] %v1834
      %1847 = vst [vmem:[#allocation4 + $0x1a8] sm:$0xff] %v1835
      %v1848 = vld [vmem:[#allocation3] sm:$0xff]
      %v1849 = vld [vmem:[#allocation3 + $0x8] sm:$0xff]
      %v1850 = vld [vmem:[#allocation3 + $0x10] sm:$0xff]
      %v1851 = vld [vmem:[#allocation3 + $0x18] sm:$0xff]
      %v1852 = vld [vmem:[#allocation3 + $0x20] sm:$0xff]
      %v1853 = vld [vmem:[#allocation3 + $0x28] sm:$0xff]
      %v1854 = vld [vmem:[#allocation3 + $0x30] sm:$0xff]
      %v1855 = vld [vmem:[#allocation3 + $0x38] sm:$0xff]
      %1864 = vrot.lane.b32.xlu0 %v1848, 100
      %v1865 = vpop.permute.xlu0 %1864
      %1866 = vrot.lane.b32.xlu0 %v1849, 100
      %v1867 = vpop.permute.xlu0 %1866
      %1868 = vrot.lane.b32.xlu0 %v1850, 100
      %v1869 = vpop.permute.xlu0 %1868
      %1870 = vrot.lane.b32.xlu0 %v1851, 100
      %v1871 = vpop.permute.xlu0 %1870
      %1872 = vrot.lane.b32.xlu0 %v1852, 100
      %v1873 = vpop.permute.xlu0 %1872
      %1874 = vrot.lane.b32.xlu0 %v1853, 100
      %v1875 = vpop.permute.xlu0 %1874
      %1876 = vrot.lane.b32.xlu0 %v1854, 100
      %v1877 = vpop.permute.xlu0 %1876
      %1878 = vrot.lane.b32.xlu0 %v1855, 100
      %v1879 = vpop.permute.xlu0 %1878
      %v1880 = vsel %vm934, %v1865, %v1867
      %v1881 = vsel %vm934, %v1867, %v1869
      %v1882 = vsel %vm934, %v1869, %v1871
      %v1883 = vsel %vm934, %v1873, %v1875
      %v1884 = vsel %vm934, %v1875, %v1877
      %v1885 = vsel %vm934, %v1877, %v1879
      %1892 = vst [vmem:[#allocation4 + $0x1b0] sm:$0xff] %v1880
      %1893 = vst [vmem:[#allocation4 + $0x1b8] sm:$0xff] %v1881
      %1894 = vst [vmem:[#allocation4 + $0x1c0] sm:$0xff] %v1882
      %1895 = vst [vmem:[#allocation4 + $0x1c8] sm:$0xff] %v1883
      %1896 = vst [vmem:[#allocation4 + $0x1d0] sm:$0xff] %v1884
      %1897 = vst [vmem:[#allocation4 + $0x1d8] sm:$0xff] %v1885
      %v1898 = vld [vmem:[#allocation3] sm:$0xff]
      %v1899 = vld [vmem:[#allocation3 + $0x8] sm:$0xff]
      %v1900 = vld [vmem:[#allocation3 + $0x10] sm:$0xff]
      %v1901 = vld [vmem:[#allocation3 + $0x18] sm:$0xff]
      %v1902 = vld [vmem:[#allocation3 + $0x20] sm:$0xff]
      %v1903 = vld [vmem:[#allocation3 + $0x28] sm:$0xff]
      %v1904 = vld [vmem:[#allocation3 + $0x30] sm:$0xff]
      %v1905 = vld [vmem:[#allocation3 + $0x38] sm:$0xff]
      %1914 = vrot.lane.b32.xlu0 %v1898, 80
      %v1915 = vpop.permute.xlu0 %1914
      %1916 = vrot.lane.b32.xlu0 %v1899, 80
      %v1917 = vpop.permute.xlu0 %1916
      %1918 = vrot.lane.b32.xlu0 %v1900, 80
      %v1919 = vpop.permute.xlu0 %1918
      %1920 = vrot.lane.b32.xlu0 %v1901, 80
      %v1921 = vpop.permute.xlu0 %1920
      %1922 = vrot.lane.b32.xlu0 %v1902, 80
      %v1923 = vpop.permute.xlu0 %1922
      %1924 = vrot.lane.b32.xlu0 %v1903, 80
      %v1925 = vpop.permute.xlu0 %1924
      %1926 = vrot.lane.b32.xlu0 %v1904, 80
      %v1927 = vpop.permute.xlu0 %1926
      %1928 = vrot.lane.b32.xlu0 %v1905, 80
      %v1929 = vpop.permute.xlu0 %1928
      %v1930 = vsel %vm1117, %v1915, %v1917
      %v1931 = vsel %vm1117, %v1917, %v1919
      %v1932 = vsel %vm1117, %v1919, %v1921
      %v1933 = vsel %vm1117, %v1923, %v1925
      %v1934 = vsel %vm1117, %v1925, %v1927
      %v1935 = vsel %vm1117, %v1927, %v1929
      %1942 = vst [vmem:[#allocation4 + $0x1e0] sm:$0xff] %v1930
      %1943 = vst [vmem:[#allocation4 + $0x1e8] sm:$0xff] %v1931
      %1944 = vst [vmem:[#allocation4 + $0x1f0] sm:$0xff] %v1932
      %1945 = vst [vmem:[#allocation4 + $0x1f8] sm:$0xff] %v1933
      %1946 = vst [vmem:[#allocation4 + $0x200] sm:$0xff] %v1934
      %1947 = vst [vmem:[#allocation4 + $0x208] sm:$0xff] %v1935
      %v1948 = vld [vmem:[#allocation3] sm:$0xff]
      %v1949 = vld [vmem:[#allocation3 + $0x8] sm:$0xff]
      %v1950 = vld [vmem:[#allocation3 + $0x10] sm:$0xff]
      %v1951 = vld [vmem:[#allocation3 + $0x18] sm:$0xff]
      %v1952 = vld [vmem:[#allocation3 + $0x20] sm:$0xff]
      %v1953 = vld [vmem:[#allocation3 + $0x28] sm:$0xff]
      %v1954 = vld [vmem:[#allocation3 + $0x30] sm:$0xff]
      %v1955 = vld [vmem:[#allocation3 + $0x38] sm:$0xff]
      %1964 = vrot.lane.b32.xlu0 %v1948, 79
      %v1965 = vpop.permute.xlu0 %1964
      %1966 = vrot.lane.b32.xlu0 %v1949, 79
      %v1967 = vpop.permute.xlu0 %1966
      %1968 = vrot.lane.b32.xlu0 %v1950, 79
      %v1969 = vpop.permute.xlu0 %1968
      %1970 = vrot.lane.b32.xlu0 %v1951, 79
      %v1971 = vpop.permute.xlu0 %1970
      %1972 = vrot.lane.b32.xlu0 %v1952, 79
      %v1973 = vpop.permute.xlu0 %1972
      %1974 = vrot.lane.b32.xlu0 %v1953, 79
      %v1975 = vpop.permute.xlu0 %1974
      %1976 = vrot.lane.b32.xlu0 %v1954, 79
      %v1977 = vpop.permute.xlu0 %1976
      %1978 = vrot.lane.b32.xlu0 %v1955, 79
      %v1979 = vpop.permute.xlu0 %1978
      %v1980 = vsel %vm1140, %v1965, %v1967
      %v1981 = vsel %vm1140, %v1967, %v1969
      %v1982 = vsel %vm1140, %v1969, %v1971
      %v1983 = vsel %vm1140, %v1973, %v1975
      %v1984 = vsel %vm1140, %v1975, %v1977
      %v1985 = vsel %vm1140, %v1977, %v1979
      %1992 = vst [vmem:[#allocation4 + $0x210] sm:$0xff] %v1980
      %1993 = vst [vmem:[#allocation4 + $0x218] sm:$0xff] %v1981
      %1994 = vst [vmem:[#allocation4 + $0x220] sm:$0xff] %v1982
      %1995 = vst [vmem:[#allocation4 + $0x228] sm:$0xff] %v1983
      %1996 = vst [vmem:[#allocation4 + $0x230] sm:$0xff] %v1984
      %1997 = vst [vmem:[#allocation4 + $0x238] sm:$0xff] %v1985
      %v1998 = vld [vmem:[#allocation3] sm:$0xff]
      %v1999 = vld [vmem:[#allocation3 + $0x8] sm:$0xff]
      %v2000 = vld [vmem:[#allocation3 + $0x10] sm:$0xff]
      %v2001 = vld [vmem:[#allocation3 + $0x18] sm:$0xff]
      %v2002 = vld [vmem:[#allocation3 + $0x20] sm:$0xff]
      %v2003 = vld [vmem:[#allocation3 + $0x28] sm:$0xff]
      %v2004 = vld [vmem:[#allocation3 + $0x30] sm:$0xff]
      %v2005 = vld [vmem:[#allocation3 + $0x38] sm:$0xff]
      %2014 = vrot.lane.b32.xlu0 %v1998, 78
      %v2015 = vpop.permute.xlu0 %2014
      %2016 = vrot.lane.b32.xlu0 %v1999, 78
      %v2017 = vpop.permute.xlu0 %2016
      %2018 = vrot.lane.b32.xlu0 %v2000, 78
      %v2019 = vpop.permute.xlu0 %2018
      %2020 = vrot.lane.b32.xlu0 %v2001, 78
      %v2021 = vpop.permute.xlu0 %2020
      %2022 = vrot.lane.b32.xlu0 %v2002, 78
      %v2023 = vpop.permute.xlu0 %2022
      %2024 = vrot.lane.b32.xlu0 %v2003, 78
      %v2025 = vpop.permute.xlu0 %2024
      %2026 = vrot.lane.b32.xlu0 %v2004, 78
      %v2027 = vpop.permute.xlu0 %2026
      %2028 = vrot.lane.b32.xlu0 %v2005, 78
      %v2029 = vpop.permute.xlu0 %2028
      %v2030 = vsel %vm1163, %v2015, %v2017
      %v2031 = vsel %vm1163, %v2017, %v2019
      %v2032 = vsel %vm1163, %v2019, %v2021
      %v2033 = vsel %vm1163, %v2023, %v2025
      %v2034 = vsel %vm1163, %v2025, %v2027
      %v2035 = vsel %vm1163, %v2027, %v2029
      %2042 = vst [vmem:[#allocation4 + $0x240] sm:$0xff] %v2030
      %2043 = vst [vmem:[#allocation4 + $0x248] sm:$0xff] %v2031
      %2044 = vst [vmem:[#allocation4 + $0x250] sm:$0xff] %v2032
      %2045 = vst [vmem:[#allocation4 + $0x258] sm:$0xff] %v2033
      %2046 = vst [vmem:[#allocation4 + $0x260] sm:$0xff] %v2034
      %2047 = vst [vmem:[#allocation4 + $0x268] sm:$0xff] %v2035
      %v2048 = vld [vmem:[#allocation3] sm:$0xff]
      %v2049 = vld [vmem:[#allocation3 + $0x8] sm:$0xff]
      %v2050 = vld [vmem:[#allocation3 + $0x10] sm:$0xff]
      %v2051 = vld [vmem:[#allocation3 + $0x18] sm:$0xff]
      %v2052 = vld [vmem:[#allocation3 + $0x20] sm:$0xff]
      %v2053 = vld [vmem:[#allocation3 + $0x28] sm:$0xff]
      %v2054 = vld [vmem:[#allocation3 + $0x30] sm:$0xff]
      %v2055 = vld [vmem:[#allocation3 + $0x38] sm:$0xff]
      %2064 = vrot.lane.b32.xlu0 %v2048, 77
      %v2065 = vpop.permute.xlu0 %2064
      %2066 = vrot.lane.b32.xlu0 %v2049, 77
      %v2067 = vpop.permute.xlu0 %2066
      %2068 = vrot.lane.b32.xlu0 %v2050, 77
      %v2069 = vpop.permute.xlu0 %2068
      %2070 = vrot.lane.b32.xlu0 %v2051, 77
      %v2071 = vpop.permute.xlu0 %2070
      %2072 = vrot.lane.b32.xlu0 %v2052, 77
      %v2073 = vpop.permute.xlu0 %2072
      %2074 = vrot.lane.b32.xlu0 %v2053, 77
      %v2075 = vpop.permute.xlu0 %2074
      %2076 = vrot.lane.b32.xlu0 %v2054, 77
      %v2077 = vpop.permute.xlu0 %2076
      %2078 = vrot.lane.b32.xlu0 %v2055, 77
      %v2079 = vpop.permute.xlu0 %2078
      %vm2080 = vcmask 629760
      %v2081 = vsel %vm2080, %v2065, %v2067
      %v2082 = vsel %vm2080, %v2067, %v2069
      %v2083 = vsel %vm2080, %v2069, %v2071
      %v2084 = vsel %vm2080, %v2073, %v2075
      %v2085 = vsel %vm2080, %v2075, %v2077
      %v2086 = vsel %vm2080, %v2077, %v2079
      %2093 = vst [vmem:[#allocation4 + $0x270] sm:$0xff] %v2081
      %2094 = vst [vmem:[#allocation4 + $0x278] sm:$0xff] %v2082
      %2095 = vst [vmem:[#allocation4 + $0x280] sm:$0xff] %v2083
      %2096 = vst [vmem:[#allocation4 + $0x288] sm:$0xff] %v2084
      %2097 = vst [vmem:[#allocation4 + $0x290] sm:$0xff] %v2085
      %2098 = vst [vmem:[#allocation4 + $0x298] sm:$0xff] %v2086
      %v2099 = vld [vmem:[#allocation3] sm:$0xff]
      %v2100 = vld [vmem:[#allocation3 + $0x8] sm:$0xff]
      %v2101 = vld [vmem:[#allocation3 + $0x10] sm:$0xff]
      %v2102 = vld [vmem:[#allocation3 + $0x18] sm:$0xff]
      %v2103 = vld [vmem:[#allocation3 + $0x20] sm:$0xff]
      %v2104 = vld [vmem:[#allocation3 + $0x28] sm:$0xff]
      %v2105 = vld [vmem:[#allocation3 + $0x30] sm:$0xff]
      %v2106 = vld [vmem:[#allocation3 + $0x38] sm:$0xff]
      %2115 = vrot.lane.b32.xlu0 %v2099, 76
      %v2116 = vpop.permute.xlu0 %2115
      %2117 = vrot.lane.b32.xlu0 %v2100, 76
      %v2118 = vpop.permute.xlu0 %2117
      %2119 = vrot.lane.b32.xlu0 %v2101, 76
      %v2120 = vpop.permute.xlu0 %2119
      %2121 = vrot.lane.b32.xlu0 %v2102, 76
      %v2122 = vpop.permute.xlu0 %2121
      %2123 = vrot.lane.b32.xlu0 %v2103, 76
      %v2124 = vpop.permute.xlu0 %2123
      %2125 = vrot.lane.b32.xlu0 %v2104, 76
      %v2126 = vpop.permute.xlu0 %2125
      %2127 = vrot.lane.b32.xlu0 %v2105, 76
      %v2128 = vpop.permute.xlu0 %2127
      %2129 = vrot.lane.b32.xlu0 %v2106, 76
      %v2130 = vpop.permute.xlu0 %2129
      %v2131 = vsel %vm766, %v2116, %v2118
      %v2132 = vsel %vm766, %v2118, %v2120
      %v2133 = vsel %vm766, %v2120, %v2122
      %v2134 = vsel %vm766, %v2124, %v2126
      %v2135 = vsel %vm766, %v2126, %v2128
      %v2136 = vsel %vm766, %v2128, %v2130
      %2143 = vst [vmem:[#allocation4 + $0x2a0] sm:$0xff] %v2131
      %2144 = vst [vmem:[#allocation4 + $0x2a8] sm:$0xff] %v2132
      %2145 = vst [vmem:[#allocation4 + $0x2b0] sm:$0xff] %v2133
      %2146 = vst [vmem:[#allocation4 + $0x2b8] sm:$0xff] %v2134
      %2147 = vst [vmem:[#allocation4 + $0x2c0] sm:$0xff] %v2135
      %2148 = vst [vmem:[#allocation4 + $0x2c8] sm:$0xff] %v2136
      %v2149 = vld [vmem:[#allocation3] sm:$0xff]
      %v2150 = vld [vmem:[#allocation3 + $0x8] sm:$0xff]
      %v2151 = vld [vmem:[#allocation3 + $0x10] sm:$0xff]
      %v2152 = vld [vmem:[#allocation3 + $0x18] sm:$0xff]
      %v2153 = vld [vmem:[#allocation3 + $0x20] sm:$0xff]
      %v2154 = vld [vmem:[#allocation3 + $0x28] sm:$0xff]
      %v2155 = vld [vmem:[#allocation3 + $0x30] sm:$0xff]
      %v2156 = vld [vmem:[#allocation3 + $0x38] sm:$0xff]
      %2165 = vrot.lane.b32.xlu0 %v2149, 56
      %v2166 = vpop.permute.xlu0 %2165
      %2167 = vrot.lane.b32.xlu0 %v2150, 56
      %v2168 = vpop.permute.xlu0 %2167
      %2169 = vrot.lane.b32.xlu0 %v2151, 56
      %v2170 = vpop.permute.xlu0 %2169
      %2171 = vrot.lane.b32.xlu0 %v2152, 56
      %v2172 = vpop.permute.xlu0 %2171
      %2173 = vrot.lane.b32.xlu0 %v2153, 56
      %v2174 = vpop.permute.xlu0 %2173
      %2175 = vrot.lane.b32.xlu0 %v2154, 56
      %v2176 = vpop.permute.xlu0 %2175
      %2177 = vrot.lane.b32.xlu0 %v2155, 56
      %v2178 = vpop.permute.xlu0 %2177
      %2179 = vrot.lane.b32.xlu0 %v2156, 56
      %v2180 = vpop.permute.xlu0 %2179
      %vm2181 = vcmask 457728
      %v2182 = vsel %vm2181, %v2166, %v2168
      %v2183 = vsel %vm2181, %v2168, %v2170
      %v2184 = vsel %vm2181, %v2170, %v2172
      %v2185 = vsel %vm2181, %v2174, %v2176
      %v2186 = vsel %vm2181, %v2176, %v2178
      %v2187 = vsel %vm2181, %v2178, %v2180
      %2194 = vst [vmem:[#allocation4 + $0x2d0] sm:$0xff] %v2182
      %2195 = vst [vmem:[#allocation4 + $0x2d8] sm:$0xff] %v2183
      %2196 = vst [vmem:[#allocation4 + $0x2e0] sm:$0xff] %v2184
      %2197 = vst [vmem:[#allocation4 + $0x2e8] sm:$0xff] %v2185
      %2198 = vst [vmem:[#allocation4 + $0x2f0] sm:$0xff] %v2186
      %2199 = vst [vmem:[#allocation4 + $0x2f8] sm:$0xff] %v2187
      %v2200 = vld [vmem:[#allocation3] sm:$0xff]
      %v2201 = vld [vmem:[#allocation3 + $0x8] sm:$0xff]
      %v2202 = vld [vmem:[#allocation3 + $0x10] sm:$0xff]
      %v2203 = vld [vmem:[#allocation3 + $0x18] sm:$0xff]
      %v2204 = vld [vmem:[#allocation3 + $0x20] sm:$0xff]
      %v2205 = vld [vmem:[#allocation3 + $0x28] sm:$0xff]
      %v2206 = vld [vmem:[#allocation3 + $0x30] sm:$0xff]
      %v2207 = vld [vmem:[#allocation3 + $0x38] sm:$0xff]
      %2216 = vrot.lane.b32.xlu0 %v2200, 55
      %v2217 = vpop.permute.xlu0 %2216
      %2218 = vrot.lane.b32.xlu0 %v2201, 55
      %v2219 = vpop.permute.xlu0 %2218
      %2220 = vrot.lane.b32.xlu0 %v2202, 55
      %v2221 = vpop.permute.xlu0 %2220
      %2222 = vrot.lane.b32.xlu0 %v2203, 55
      %v2223 = vpop.permute.xlu0 %2222
      %2224 = vrot.lane.b32.xlu0 %v2204, 55
      %v2225 = vpop.permute.xlu0 %2224
      %2226 = vrot.lane.b32.xlu0 %v2205, 55
      %v2227 = vpop.permute.xlu0 %2226
      %2228 = vrot.lane.b32.xlu0 %v2206, 55
      %v2229 = vpop.permute.xlu0 %2228
      %2230 = vrot.lane.b32.xlu0 %v2207, 55
      %v2231 = vpop.permute.xlu0 %2230
      %vm2232 = vcmask 449536
      %v2233 = vsel %vm2232, %v2217, %v2219
      %v2234 = vsel %vm2232, %v2219, %v2221
      %v2235 = vsel %vm2232, %v2221, %v2223
      %v2236 = vsel %vm2232, %v2225, %v2227
      %v2237 = vsel %vm2232, %v2227, %v2229
      %v2238 = vsel %vm2232, %v2229, %v2231
      %2245 = vst [vmem:[#allocation4 + $0x300] sm:$0xff] %v2233
      %2246 = vst [vmem:[#allocation4 + $0x308] sm:$0xff] %v2234
      %2247 = vst [vmem:[#allocation4 + $0x310] sm:$0xff] %v2235
      %2248 = vst [vmem:[#allocation4 + $0x318] sm:$0xff] %v2236
      %2249 = vst [vmem:[#allocation4 + $0x320] sm:$0xff] %v2237
      %2250 = vst [vmem:[#allocation4 + $0x328] sm:$0xff] %v2238
      %v2251 = vld [vmem:[#allocation3] sm:$0xff]
      %v2252 = vld [vmem:[#allocation3 + $0x8] sm:$0xff]
      %v2253 = vld [vmem:[#allocation3 + $0x10] sm:$0xff]
      %v2254 = vld [vmem:[#allocation3 + $0x18] sm:$0xff]
      %v2255 = vld [vmem:[#allocation3 + $0x20] sm:$0xff]
      %v2256 = vld [vmem:[#allocation3 + $0x28] sm:$0xff]
      %v2257 = vld [vmem:[#allocation3 + $0x30] sm:$0xff]
      %v2258 = vld [vmem:[#allocation3 + $0x38] sm:$0xff]
      %2267 = vrot.lane.b32.xlu0 %v2251, 54
      %v2268 = vpop.permute.xlu0 %2267
      %2269 = vrot.lane.b32.xlu0 %v2252, 54
      %v2270 = vpop.permute.xlu0 %2269
      %2271 = vrot.lane.b32.xlu0 %v2253, 54
      %v2272 = vpop.permute.xlu0 %2271
      %2273 = vrot.lane.b32.xlu0 %v2254, 54
      %v2274 = vpop.permute.xlu0 %2273
      %2275 = vrot.lane.b32.xlu0 %v2255, 54
      %v2276 = vpop.permute.xlu0 %2275
      %2277 = vrot.lane.b32.xlu0 %v2256, 54
      %v2278 = vpop.permute.xlu0 %2277
      %2279 = vrot.lane.b32.xlu0 %v2257, 54
      %v2280 = vpop.permute.xlu0 %2279
      %2281 = vrot.lane.b32.xlu0 %v2258, 54
      %v2282 = vpop.permute.xlu0 %2281
      %vm2283 = vcmask 441344
      %v2284 = vsel %vm2283, %v2268, %v2270
      %v2285 = vsel %vm2283, %v2270, %v2272
      %v2286 = vsel %vm2283, %v2272, %v2274
      %v2287 = vsel %vm2283, %v2276, %v2278
      %v2288 = vsel %vm2283, %v2278, %v2280
      %v2289 = vsel %vm2283, %v2280, %v2282
      %2296 = vst [vmem:[#allocation4 + $0x330] sm:$0xff] %v2284
      %2297 = vst [vmem:[#allocation4 + $0x338] sm:$0xff] %v2285
      %2298 = vst [vmem:[#allocation4 + $0x340] sm:$0xff] %v2286
      %2299 = vst [vmem:[#allocation4 + $0x348] sm:$0xff] %v2287
      %2300 = vst [vmem:[#allocation4 + $0x350] sm:$0xff] %v2288
      %2301 = vst [vmem:[#allocation4 + $0x358] sm:$0xff] %v2289
      %v2302 = vld [vmem:[#allocation3] sm:$0xff]
      %v2303 = vld [vmem:[#allocation3 + $0x8] sm:$0xff]
      %v2304 = vld [vmem:[#allocation3 + $0x10] sm:$0xff]
      %v2305 = vld [vmem:[#allocation3 + $0x18] sm:$0xff]
      %v2306 = vld [vmem:[#allocation3 + $0x20] sm:$0xff]
      %v2307 = vld [vmem:[#allocation3 + $0x28] sm:$0xff]
      %v2308 = vld [vmem:[#allocation3 + $0x30] sm:$0xff]
      %v2309 = vld [vmem:[#allocation3 + $0x38] sm:$0xff]
      %2318 = vrot.lane.b32.xlu0 %v2302, 53
      %v2319 = vpop.permute.xlu0 %2318
      %2320 = vrot.lane.b32.xlu0 %v2303, 53
      %v2321 = vpop.permute.xlu0 %2320
      %2322 = vrot.lane.b32.xlu0 %v2304, 53
      %v2323 = vpop.permute.xlu0 %2322
      %2324 = vrot.lane.b32.xlu0 %v2305, 53
      %v2325 = vpop.permute.xlu0 %2324
      %2326 = vrot.lane.b32.xlu0 %v2306, 53
      %v2327 = vpop.permute.xlu0 %2326
      %2328 = vrot.lane.b32.xlu0 %v2307, 53
      %v2329 = vpop.permute.xlu0 %2328
      %2330 = vrot.lane.b32.xlu0 %v2308, 53
      %v2331 = vpop.permute.xlu0 %2330
      %2332 = vrot.lane.b32.xlu0 %v2309, 53
      %v2333 = vpop.permute.xlu0 %2332
      %v2334 = vsel %vm357, %v2319, %v2321
      %v2335 = vsel %vm357, %v2321, %v2323
      %v2336 = vsel %vm357, %v2323, %v2325
      %v2337 = vsel %vm357, %v2327, %v2329
      %v2338 = vsel %vm357, %v2329, %v2331
      %v2339 = vsel %vm357, %v2331, %v2333
      %2346 = vst [vmem:[#allocation4 + $0x360] sm:$0xff] %v2334
      %2347 = vst [vmem:[#allocation4 + $0x368] sm:$0xff] %v2335
      %2348 = vst [vmem:[#allocation4 + $0x370] sm:$0xff] %v2336
      %2349 = vst [vmem:[#allocation4 + $0x378] sm:$0xff] %v2337
      %2350 = vst [vmem:[#allocation4 + $0x380] sm:$0xff] %v2338
      %2351 = vst [vmem:[#allocation4 + $0x388] sm:$0xff] %v2339
      %v2352 = vld [vmem:[#allocation3] sm:$0xff]
      %v2353 = vld [vmem:[#allocation3 + $0x8] sm:$0xff]
      %v2354 = vld [vmem:[#allocation3 + $0x10] sm:$0xff]
      %v2355 = vld [vmem:[#allocation3 + $0x18] sm:$0xff]
      %v2356 = vld [vmem:[#allocation3 + $0x20] sm:$0xff]
      %v2357 = vld [vmem:[#allocation3 + $0x28] sm:$0xff]
      %v2358 = vld [vmem:[#allocation3 + $0x30] sm:$0xff]
      %v2359 = vld [vmem:[#allocation3 + $0x38] sm:$0xff]
      %2368 = vrot.lane.b32.xlu0 %v2352, 52
      %v2369 = vpop.permute.xlu0 %2368
      %2370 = vrot.lane.b32.xlu0 %v2353, 52
      %v2371 = vpop.permute.xlu0 %2370
      %2372 = vrot.lane.b32.xlu0 %v2354, 52
      %v2373 = vpop.permute.xlu0 %2372
      %2374 = vrot.lane.b32.xlu0 %v2355, 52
      %v2375 = vpop.permute.xlu0 %2374
      %2376 = vrot.lane.b32.xlu0 %v2356, 52
      %v2377 = vpop.permute.xlu0 %2376
      %2378 = vrot.lane.b32.xlu0 %v2357, 52
      %v2379 = vpop.permute.xlu0 %2378
      %2380 = vrot.lane.b32.xlu0 %v2358, 52
      %v2381 = vpop.permute.xlu0 %2380
      %2382 = vrot.lane.b32.xlu0 %v2359, 52
      %v2383 = vpop.permute.xlu0 %2382
      %v2384 = vsel %vm654, %v2369, %v2371
      %v2385 = vsel %vm654, %v2371, %v2373
      %v2386 = vsel %vm654, %v2373, %v2375
      %v2387 = vsel %vm654, %v2377, %v2379
      %v2388 = vsel %vm654, %v2379, %v2381
      %v2389 = vsel %vm654, %v2381, %v2383
      %2396 = vst [vmem:[#allocation4 + $0x390] sm:$0xff] %v2384
      %2397 = vst [vmem:[#allocation4 + $0x398] sm:$0xff] %v2385
      %2398 = vst [vmem:[#allocation4 + $0x3a0] sm:$0xff] %v2386
      %2399 = vst [vmem:[#allocation4 + $0x3a8] sm:$0xff] %v2387
      %2400 = vst [vmem:[#allocation4 + $0x3b0] sm:$0xff] %v2388
      %2401 = vst [vmem:[#allocation4 + $0x3b8] sm:$0xff] %v2389
      %v2402 = vld [vmem:[#allocation3] sm:$0xff]
      %v2403 = vld [vmem:[#allocation3 + $0x8] sm:$0xff]
      %v2404 = vld [vmem:[#allocation3 + $0x10] sm:$0xff]
      %v2405 = vld [vmem:[#allocation3 + $0x18] sm:$0xff]
      %v2406 = vld [vmem:[#allocation3 + $0x20] sm:$0xff]
      %v2407 = vld [vmem:[#allocation3 + $0x28] sm:$0xff]
      %v2408 = vld [vmem:[#allocation3 + $0x30] sm:$0xff]
      %v2409 = vld [vmem:[#allocation3 + $0x38] sm:$0xff]
      %2418 = vrot.lane.b32.xlu0 %v2402, 32
      %v2419 = vpop.permute.xlu0 %2418
      %2420 = vrot.lane.b32.xlu0 %v2403, 32
      %v2421 = vpop.permute.xlu0 %2420
      %2422 = vrot.lane.b32.xlu0 %v2404, 32
      %v2423 = vpop.permute.xlu0 %2422
      %2424 = vrot.lane.b32.xlu0 %v2405, 32
      %v2425 = vpop.permute.xlu0 %2424
      %2426 = vrot.lane.b32.xlu0 %v2406, 32
      %v2427 = vpop.permute.xlu0 %2426
      %2428 = vrot.lane.b32.xlu0 %v2407, 32
      %v2429 = vpop.permute.xlu0 %2428
      %2430 = vrot.lane.b32.xlu0 %v2408, 32
      %v2431 = vpop.permute.xlu0 %2430
      %2432 = vrot.lane.b32.xlu0 %v2409, 32
      %v2433 = vpop.permute.xlu0 %2432
      %vm2434 = vcmask 261120
      %v2435 = vsel %vm2434, %v2419, %v2421
      %v2436 = vsel %vm2434, %v2421, %v2423
      %v2437 = vsel %vm2434, %v2423, %v2425
      %v2438 = vsel %vm2434, %v2427, %v2429
      %v2439 = vsel %vm2434, %v2429, %v2431
      %v2440 = vsel %vm2434, %v2431, %v2433
      %2447 = vst [vmem:[#allocation4 + $0x3c0] sm:$0xff] %v2435
      %2448 = vst [vmem:[#allocation4 + $0x3c8] sm:$0xff] %v2436
      %2449 = vst [vmem:[#allocation4 + $0x3d0] sm:$0xff] %v2437
      %2450 = vst [vmem:[#allocation4 + $0x3d8] sm:$0xff] %v2438
      %2451 = vst [vmem:[#allocation4 + $0x3e0] sm:$0xff] %v2439
      %2452 = vst [vmem:[#allocation4 + $0x3e8] sm:$0xff] %v2440
      %v2453 = vld [vmem:[#allocation3] sm:$0xff]
      %v2454 = vld [vmem:[#allocation3 + $0x8] sm:$0xff]
      %v2455 = vld [vmem:[#allocation3 + $0x10] sm:$0xff]
      %v2456 = vld [vmem:[#allocation3 + $0x18] sm:$0xff]
      %v2457 = vld [vmem:[#allocation3 + $0x20] sm:$0xff]
      %v2458 = vld [vmem:[#allocation3 + $0x28] sm:$0xff]
      %v2459 = vld [vmem:[#allocation3 + $0x30] sm:$0xff]
      %v2460 = vld [vmem:[#allocation3 + $0x38] sm:$0xff]
      %2469 = vrot.lane.b32.xlu0 %v2453, 31
      %v2470 = vpop.permute.xlu0 %2469
      %2471 = vrot.lane.b32.xlu0 %v2454, 31
      %v2472 = vpop.permute.xlu0 %2471
      %2473 = vrot.lane.b32.xlu0 %v2455, 31
      %v2474 = vpop.permute.xlu0 %2473
      %2475 = vrot.lane.b32.xlu0 %v2456, 31
      %v2476 = vpop.permute.xlu0 %2475
      %2477 = vrot.lane.b32.xlu0 %v2457, 31
      %v2478 = vpop.permute.xlu0 %2477
      %2479 = vrot.lane.b32.xlu0 %v2458, 31
      %v2480 = vpop.permute.xlu0 %2479
      %2481 = vrot.lane.b32.xlu0 %v2459, 31
      %v2482 = vpop.permute.xlu0 %2481
      %2483 = vrot.lane.b32.xlu0 %v2460, 31
      %v2484 = vpop.permute.xlu0 %2483
      %vm2485 = vcmask 252928
      %v2486 = vsel %vm2485, %v2470, %v2472
      %v2487 = vsel %vm2485, %v2472, %v2474
      %v2488 = vsel %vm2485, %v2474, %v2476
      %v2489 = vsel %vm2485, %v2478, %v2480
      %v2490 = vsel %vm2485, %v2480, %v2482
      %v2491 = vsel %vm2485, %v2482, %v2484
      %2498 = vst [vmem:[#allocation4 + $0x3f0] sm:$0xff] %v2486
      %2499 = vst [vmem:[#allocation4 + $0x3f8] sm:$0xff] %v2487
      %2500 = vst [vmem:[#allocation4 + $0x400] sm:$0xff] %v2488
      %2501 = vst [vmem:[#allocation4 + $0x408] sm:$0xff] %v2489
      %2502 = vst [vmem:[#allocation4 + $0x410] sm:$0xff] %v2490
      %2503 = vst [vmem:[#allocation4 + $0x418] sm:$0xff] %v2491
      %v2504 = vld [vmem:[#allocation3] sm:$0xff]
      %v2505 = vld [vmem:[#allocation3 + $0x8] sm:$0xff]
      %v2506 = vld [vmem:[#allocation3 + $0x10] sm:$0xff]
      %v2507 = vld [vmem:[#allocation3 + $0x18] sm:$0xff]
      %v2508 = vld [vmem:[#allocation3 + $0x20] sm:$0xff]
      %v2509 = vld [vmem:[#allocation3 + $0x28] sm:$0xff]
      %v2510 = vld [vmem:[#allocation3 + $0x30] sm:$0xff]
      %v2511 = vld [vmem:[#allocation3 + $0x38] sm:$0xff]
      %2520 = vrot.lane.b32.xlu0 %v2504, 30
      %v2521 = vpop.permute.xlu0 %2520
      %2522 = vrot.lane.b32.xlu0 %v2505, 30
      %v2523 = vpop.permute.xlu0 %2522
      %2524 = vrot.lane.b32.xlu0 %v2506, 30
      %v2525 = vpop.permute.xlu0 %2524
      %2526 = vrot.lane.b32.xlu0 %v2507, 30
      %v2527 = vpop.permute.xlu0 %2526
      %2528 = vrot.lane.b32.xlu0 %v2508, 30
      %v2529 = vpop.permute.xlu0 %2528
      %2530 = vrot.lane.b32.xlu0 %v2509, 30
      %v2531 = vpop.permute.xlu0 %2530
      %2532 = vrot.lane.b32.xlu0 %v2510, 30
      %v2533 = vpop.permute.xlu0 %2532
      %2534 = vrot.lane.b32.xlu0 %v2511, 30
      %v2535 = vpop.permute.xlu0 %2534
      %vm2536 = vcmask 244736
      %v2537 = vsel %vm2536, %v2521, %v2523
      %v2538 = vsel %vm2536, %v2523, %v2525
      %v2539 = vsel %vm2536, %v2525, %v2527
      %v2540 = vsel %vm2536, %v2529, %v2531
      %v2541 = vsel %vm2536, %v2531, %v2533
      %v2542 = vsel %vm2536, %v2533, %v2535
      %2549 = vst [vmem:[#allocation4 + $0x420] sm:$0xff] %v2537
      %2550 = vst [vmem:[#allocation4 + $0x428] sm:$0xff] %v2538
      %2551 = vst [vmem:[#allocation4 + $0x430] sm:$0xff] %v2539
      %2552 = vst [vmem:[#allocation4 + $0x438] sm:$0xff] %v2540
      %2553 = vst [vmem:[#allocation4 + $0x440] sm:$0xff] %v2541
      %2554 = vst [vmem:[#allocation4 + $0x448] sm:$0xff] %v2542
      %v2555 = vld [vmem:[#allocation3] sm:$0xff]
      %v2556 = vld [vmem:[#allocation3 + $0x8] sm:$0xff]
      %v2557 = vld [vmem:[#allocation3 + $0x10] sm:$0xff]
      %v2558 = vld [vmem:[#allocation3 + $0x18] sm:$0xff]
      %v2559 = vld [vmem:[#allocation3 + $0x20] sm:$0xff]
      %v2560 = vld [vmem:[#allocation3 + $0x28] sm:$0xff]
      %v2561 = vld [vmem:[#allocation3 + $0x30] sm:$0xff]
      %v2562 = vld [vmem:[#allocation3 + $0x38] sm:$0xff]
      %2571 = vrot.lane.b32.xlu0 %v2555, 29
      %v2572 = vpop.permute.xlu0 %2571
      %2573 = vrot.lane.b32.xlu0 %v2556, 29
      %v2574 = vpop.permute.xlu0 %2573
      %2575 = vrot.lane.b32.xlu0 %v2557, 29
      %v2576 = vpop.permute.xlu0 %2575
      %2577 = vrot.lane.b32.xlu0 %v2558, 29
      %v2578 = vpop.permute.xlu0 %2577
      %2579 = vrot.lane.b32.xlu0 %v2559, 29
      %v2580 = vpop.permute.xlu0 %2579
      %2581 = vrot.lane.b32.xlu0 %v2560, 29
      %v2582 = vpop.permute.xlu0 %2581
      %2583 = vrot.lane.b32.xlu0 %v2561, 29
      %v2584 = vpop.permute.xlu0 %2583
      %2585 = vrot.lane.b32.xlu0 %v2562, 29
      %v2586 = vpop.permute.xlu0 %2585
      %vm2587 = vcmask 236544
      %v2588 = vsel %vm2587, %v2572, %v2574
      %v2589 = vsel %vm2587, %v2574, %v2576
      %v2590 = vsel %vm2587, %v2576, %v2578
      %v2591 = vsel %vm2587, %v2580, %v2582
      %v2592 = vsel %vm2587, %v2582, %v2584
      %v2593 = vsel %vm2587, %v2584, %v2586
      %2600 = vst [vmem:[#allocation4 + $0x450] sm:$0xff] %v2588
      %2601 = vst [vmem:[#allocation4 + $0x458] sm:$0xff] %v2589
      %2602 = vst [vmem:[#allocation4 + $0x460] sm:$0xff] %v2590
      %2603 = vst [vmem:[#allocation4 + $0x468] sm:$0xff] %v2591
      %2604 = vst [vmem:[#allocation4 + $0x470] sm:$0xff] %v2592
      %2605 = vst [vmem:[#allocation4 + $0x478] sm:$0xff] %v2593
      %v2606 = vld [vmem:[#allocation3] sm:$0xff]
      %v2607 = vld [vmem:[#allocation3 + $0x8] sm:$0xff]
      %v2608 = vld [vmem:[#allocation3 + $0x10] sm:$0xff]
      %v2609 = vld [vmem:[#allocation3 + $0x18] sm:$0xff]
      %v2610 = vld [vmem:[#allocation3 + $0x20] sm:$0xff]
      %v2611 = vld [vmem:[#allocation3 + $0x28] sm:$0xff]
      %v2612 = vld [vmem:[#allocation3 + $0x30] sm:$0xff]
      %v2613 = vld [vmem:[#allocation3 + $0x38] sm:$0xff]
      %2622 = vrot.lane.b32.xlu0 %v2606, 28
      %v2623 = vpop.permute.xlu0 %2622
      %2624 = vrot.lane.b32.xlu0 %v2607, 28
      %v2625 = vpop.permute.xlu0 %2624
      %2626 = vrot.lane.b32.xlu0 %v2608, 28
      %v2627 = vpop.permute.xlu0 %2626
      %2628 = vrot.lane.b32.xlu0 %v2609, 28
      %v2629 = vpop.permute.xlu0 %2628
      %2630 = vrot.lane.b32.xlu0 %v2610, 28
      %v2631 = vpop.permute.xlu0 %2630
      %2632 = vrot.lane.b32.xlu0 %v2611, 28
      %v2633 = vpop.permute.xlu0 %2632
      %2634 = vrot.lane.b32.xlu0 %v2612, 28
      %v2635 = vpop.permute.xlu0 %2634
      %2636 = vrot.lane.b32.xlu0 %v2613, 28
      %v2637 = vpop.permute.xlu0 %2636
      %vm2638 = vcmask 228352
      %v2639 = vsel %vm2638, %v2623, %v2625
      %v2640 = vsel %vm2638, %v2625, %v2627
      %v2641 = vsel %vm2638, %v2627, %v2629
      %v2642 = vsel %vm2638, %v2631, %v2633
      %v2643 = vsel %vm2638, %v2633, %v2635
      %v2644 = vsel %vm2638, %v2635, %v2637
      %2651 = vst [vmem:[#allocation4 + $0x480] sm:$0xff] %v2639
      %2652 = vst [vmem:[#allocation4 + $0x488] sm:$0xff] %v2640
      %2653 = vst [vmem:[#allocation4 + $0x490] sm:$0xff] %v2641
      %2654 = vst [vmem:[#allocation4 + $0x498] sm:$0xff] %v2642
      %2655 = vst [vmem:[#allocation4 + $0x4a0] sm:$0xff] %v2643
      %2656 = vst [vmem:[#allocation4 + $0x4a8] sm:$0xff] %v2644
      %v2657 = vld [vmem:[%s7] sm:$0xff]
      %v2658 = vld [vmem:[%s7 + $0x8] sm:$0xff]
      %v2659 = vld [vmem:[%s7 + $0x10] sm:$0xff]
      %v2660 = vld [vmem:[%s7 + $0x18] sm:$0xff]
      %v2661 = vld [vmem:[%s7 + $0x20] sm:$0xff]
      %v2662 = vld [vmem:[%s7 + $0x28] sm:$0xff]
      %v2663 = vld [vmem:[%s7 + $0x30] sm:$0xff]
      %v2664 = vld [vmem:[%s7 + $0x38] sm:$0xff]
      %v2665 = vld [vmem:[#allocation4] sm:$0xff]
      %v2666 = vld [vmem:[#allocation4 + $0x8] sm:$0xff]
      %v2667 = vld [vmem:[#allocation4 + $0x10] sm:$0xff]
      %v2668 = vld [vmem:[#allocation4 + $0x18] sm:$0xff]
      %v2669 = vld [vmem:[#allocation4 + $0x20] sm:$0xff]
      %v2670 = vld [vmem:[#allocation4 + $0x28] sm:$0xff]
      %v2671 = vld [vmem:[#allocation4 + $0x30] sm:$0xff]
      %v2672 = vld [vmem:[#allocation4 + $0x38] sm:$0xff]
      %v2673 = vld [vmem:[#allocation4 + $0x40] sm:$0xff]
      %v2674 = vld [vmem:[#allocation4 + $0x48] sm:$0xff]
      %v2675 = vld [vmem:[#allocation4 + $0x50] sm:$0xff]
      %v2676 = vld [vmem:[#allocation4 + $0x58] sm:$0xff]
      %v2677 = vld [vmem:[#allocation4 + $0x60] sm:$0xff]
      %v2678 = vld [vmem:[#allocation4 + $0x68] sm:$0xff]
      %v2679 = vld [vmem:[#allocation4 + $0x70] sm:$0xff]
      %v2680 = vld [vmem:[#allocation4 + $0x78] sm:$0xff]
      %v2681 = vld [vmem:[#allocation4 + $0x80] sm:$0xff]
      %v2682 = vld [vmem:[#allocation4 + $0x88] sm:$0xff]
      %v2683 = vld [vmem:[#allocation4 + $0x90] sm:$0xff]
      %v2684 = vld [vmem:[#allocation4 + $0x98] sm:$0xff]
      %v2685 = vld [vmem:[#allocation4 + $0xa0] sm:$0xff]
      %v2686 = vld [vmem:[#allocation4 + $0xa8] sm:$0xff]
      %v2687 = vld [vmem:[#allocation4 + $0xb0] sm:$0xff]
      %v2688 = vld [vmem:[#allocation4 + $0xb8] sm:$0xff]
      %v2689 = vld [vmem:[#allocation4 + $0xc0] sm:$0xff]
      %v2690 = vld [vmem:[#allocation4 + $0xc8] sm:$0xff]
      %v2691 = vld [vmem:[#allocation4 + $0xd0] sm:$0xff]
      %v2692 = vld [vmem:[#allocation4 + $0xd8] sm:$0xff]
      %v2693 = vld [vmem:[#allocation4 + $0xe0] sm:$0xff]
      %v2694 = vld [vmem:[#allocation4 + $0xe8] sm:$0xff]
      %v2695 = vld [vmem:[#allocation4 + $0xf0] sm:$0xff]
      %v2696 = vld [vmem:[#allocation4 + $0xf8] sm:$0xff]
      %v2697 = vld [vmem:[#allocation4 + $0x100] sm:$0xff]
      %v2698 = vld [vmem:[#allocation4 + $0x108] sm:$0xff]
      %v2699 = vld [vmem:[#allocation4 + $0x110] sm:$0xff]
      %v2700 = vld [vmem:[#allocation4 + $0x118] sm:$0xff]
      %v2701 = vld [vmem:[#allocation4 + $0x120] sm:$0xff]
      %v2702 = vld [vmem:[#allocation4 + $0x128] sm:$0xff]
      %v2703 = vld [vmem:[#allocation4 + $0x130] sm:$0xff]
      %v2704 = vld [vmem:[#allocation4 + $0x138] sm:$0xff]
      %v2705 = vld [vmem:[#allocation4 + $0x140] sm:$0xff]
      %v2706 = vld [vmem:[#allocation4 + $0x148] sm:$0xff]
      %v2707 = vld [vmem:[#allocation4 + $0x150] sm:$0xff]
      %v2708 = vld [vmem:[#allocation4 + $0x158] sm:$0xff]
      %v2709 = vld [vmem:[#allocation4 + $0x160] sm:$0xff]
      %v2710 = vld [vmem:[#allocation4 + $0x168] sm:$0xff]
      %v2711 = vld [vmem:[#allocation4 + $0x170] sm:$0xff]
      %v2712 = vld [vmem:[#allocation4 + $0x178] sm:$0xff]
      %v2713 = vld [vmem:[#allocation4 + $0x180] sm:$0xff]
      %v2714 = vld [vmem:[#allocation4 + $0x188] sm:$0xff]
      %v2715 = vld [vmem:[#allocation4 + $0x190] sm:$0xff]
      %v2716 = vld [vmem:[#allocation4 + $0x198] sm:$0xff]
      %v2717 = vld [vmem:[#allocation4 + $0x1a0] sm:$0xff]
      %v2718 = vld [vmem:[#allocation4 + $0x1a8] sm:$0xff]
      %v2719 = vld [vmem:[#allocation4 + $0x1b0] sm:$0xff]
      %v2720 = vld [vmem:[#allocation4 + $0x1b8] sm:$0xff]
      %v2721 = vld [vmem:[#allocation4 + $0x1c0] sm:$0xff]
      %v2722 = vld [vmem:[#allocation4 + $0x1c8] sm:$0xff]
      %v2723 = vld [vmem:[#allocation4 + $0x1d0] sm:$0xff]
      %v2724 = vld [vmem:[#allocation4 + $0x1d8] sm:$0xff]
      %v2725 = vld [vmem:[#allocation4 + $0x1e0] sm:$0xff]
      %v2726 = vld [vmem:[#allocation4 + $0x1e8] sm:$0xff]
      %v2727 = vld [vmem:[#allocation4 + $0x1f0] sm:$0xff]
      %v2728 = vld [vmem:[#allocation4 + $0x1f8] sm:$0xff]
      %v2729 = vld [vmem:[#allocation4 + $0x200] sm:$0xff]
      %v2730 = vld [vmem:[#allocation4 + $0x208] sm:$0xff]
      %v2731 = vld [vmem:[#allocation4 + $0x210] sm:$0xff]
      %v2732 = vld [vmem:[#allocation4 + $0x218] sm:$0xff]
      %v2733 = vld [vmem:[#allocation4 + $0x220] sm:$0xff]
      %v2734 = vld [vmem:[#allocation4 + $0x228] sm:$0xff]
      %v2735 = vld [vmem:[#allocation4 + $0x230] sm:$0xff]
      %v2736 = vld [vmem:[#allocation4 + $0x238] sm:$0xff]
      %v2737 = vld [vmem:[#allocation4 + $0x240] sm:$0xff]
      %v2738 = vld [vmem:[#allocation4 + $0x248] sm:$0xff]
      %v2739 = vld [vmem:[#allocation4 + $0x250] sm:$0xff]
      %v2740 = vld [vmem:[#allocation4 + $0x258] sm:$0xff]
      %v2741 = vld [vmem:[#allocation4 + $0x260] sm:$0xff]
      %v2742 = vld [vmem:[#allocation4 + $0x268] sm:$0xff]
      %v2743 = vld [vmem:[#allocation4 + $0x270] sm:$0xff]
      %v2744 = vld [vmem:[#allocation4 + $0x278] sm:$0xff]
      %v2745 = vld [vmem:[#allocation4 + $0x280] sm:$0xff]
      %v2746 = vld [vmem:[#allocation4 + $0x288] sm:$0xff]
      %v2747 = vld [vmem:[#allocation4 + $0x290] sm:$0xff]
      %v2748 = vld [vmem:[#allocation4 + $0x298] sm:$0xff]
      %v2749 = vld [vmem:[#allocation4 + $0x2a0] sm:$0xff]
      %v2750 = vld [vmem:[#allocation4 + $0x2a8] sm:$0xff]
      %v2751 = vld [vmem:[#allocation4 + $0x2b0] sm:$0xff]
      %v2752 = vld [vmem:[#allocation4 + $0x2b8] sm:$0xff]
      %v2753 = vld [vmem:[#allocation4 + $0x2c0] sm:$0xff]
      %v2754 = vld [vmem:[#allocation4 + $0x2c8] sm:$0xff]
      %v2755 = vld [vmem:[#allocation4 + $0x2d0] sm:$0xff]
      %v2756 = vld [vmem:[#allocation4 + $0x2d8] sm:$0xff]
      %v2757 = vld [vmem:[#allocation4 + $0x2e0] sm:$0xff]
      %v2758 = vld [vmem:[#allocation4 + $0x2e8] sm:$0xff]
      %v2759 = vld [vmem:[#allocation4 + $0x2f0] sm:$0xff]
      %v2760 = vld [vmem:[#allocation4 + $0x2f8] sm:$0xff]
      %v2761 = vld [vmem:[#allocation4 + $0x300] sm:$0xff]
      %v2762 = vld [vmem:[#allocation4 + $0x308] sm:$0xff]
      %v2763 = vld [vmem:[#allocation4 + $0x310] sm:$0xff]
      %v2764 = vld [vmem:[#allocation4 + $0x318] sm:$0xff]
      %v2765 = vld [vmem:[#allocation4 + $0x320] sm:$0xff]
      %v2766 = vld [vmem:[#allocation4 + $0x328] sm:$0xff]
      %v2767 = vld [vmem:[#allocation4 + $0x330] sm:$0xff]
      %v2768 = vld [vmem:[#allocation4 + $0x338] sm:$0xff]
      %v2769 = vld [vmem:[#allocation4 + $0x340] sm:$0xff]
      %v2770 = vld [vmem:[#allocation4 + $0x348] sm:$0xff]
      %v2771 = vld [vmem:[#allocation4 + $0x350] sm:$0xff]
      %v2772 = vld [vmem:[#allocation4 + $0x358] sm:$0xff]
      %v2773 = vld [vmem:[#allocation4 + $0x360] sm:$0xff]
      %v2774 = vld [vmem:[#allocation4 + $0x368] sm:$0xff]
      %v2775 = vld [vmem:[#allocation4 + $0x370] sm:$0xff]
      %v2776 = vld [vmem:[#allocation4 + $0x378] sm:$0xff]
      %v2777 = vld [vmem:[#allocation4 + $0x380] sm:$0xff]
      %v2778 = vld [vmem:[#allocation4 + $0x388] sm:$0xff]
      %v2779 = vld [vmem:[#allocation4 + $0x390] sm:$0xff]
      %v2780 = vld [vmem:[#allocation4 + $0x398] sm:$0xff]
      %v2781 = vld [vmem:[#allocation4 + $0x3a0] sm:$0xff]
      %v2782 = vld [vmem:[#allocation4 + $0x3a8] sm:$0xff]
      %v2783 = vld [vmem:[#allocation4 + $0x3b0] sm:$0xff]
      %v2784 = vld [vmem:[#allocation4 + $0x3b8] sm:$0xff]
      %v2785 = vld [vmem:[#allocation4 + $0x3c0] sm:$0xff]
      %v2786 = vld [vmem:[#allocation4 + $0x3c8] sm:$0xff]
      %v2787 = vld [vmem:[#allocation4 + $0x3d0] sm:$0xff]
      %v2788 = vld [vmem:[#allocation4 + $0x3d8] sm:$0xff]
      %v2789 = vld [vmem:[#allocation4 + $0x3e0] sm:$0xff]
      %v2790 = vld [vmem:[#allocation4 + $0x3e8] sm:$0xff]
      %v2791 = vld [vmem:[#allocation4 + $0x3f0] sm:$0xff]
      %v2792 = vld [vmem:[#allocation4 + $0x3f8] sm:$0xff]
      %v2793 = vld [vmem:[#allocation4 + $0x400] sm:$0xff]
      %v2794 = vld [vmem:[#allocation4 + $0x408] sm:$0xff]
      %v2795 = vld [vmem:[#allocation4 + $0x410] sm:$0xff]
      %v2796 = vld [vmem:[#allocation4 + $0x418] sm:$0xff]
      %v2797 = vld [vmem:[#allocation4 + $0x420] sm:$0xff]
      %v2798 = vld [vmem:[#allocation4 + $0x428] sm:$0xff]
      %v2799 = vld [vmem:[#allocation4 + $0x430] sm:$0xff]
      %v2800 = vld [vmem:[#allocation4 + $0x438] sm:$0xff]
      %v2801 = vld [vmem:[#allocation4 + $0x440] sm:$0xff]
      %v2802 = vld [vmem:[#allocation4 + $0x448] sm:$0xff]
      %v2803 = vld [vmem:[#allocation4 + $0x450] sm:$0xff]
      %v2804 = vld [vmem:[#allocation4 + $0x458] sm:$0xff]
      %v2805 = vld [vmem:[#allocation4 + $0x460] sm:$0xff]
      %v2806 = vld [vmem:[#allocation4 + $0x468] sm:$0xff]
      %v2807 = vld [vmem:[#allocation4 + $0x470] sm:$0xff]
      %v2808 = vld [vmem:[#allocation4 + $0x478] sm:$0xff]
      %v2809 = vld [vmem:[#allocation4 + $0x480] sm:$0xff]
      %v2810 = vld [vmem:[#allocation4 + $0x488] sm:$0xff]
      %v2811 = vld [vmem:[#allocation4 + $0x490] sm:$0xff]
      %v2812 = vld [vmem:[#allocation4 + $0x498] sm:$0xff]
      %v2813 = vld [vmem:[#allocation4 + $0x4a0] sm:$0xff]
      %v2814 = vld [vmem:[#allocation4 + $0x4a8] sm:$0xff]
      %v2815 = vld [vmem:[%s8] sm:$0xff]
      %v2816 = vld [vmem:[%s8 + $0x8] sm:$0xff]
      %2818 = vset.pattern.permute.xlu0 0
      %2819 = vperm.xlu0 %2818, %v2815
      %v2820 = vpop.permute.xlu0 %2819
      %2823 = vset.pattern.permute.xlu0 0
      %2824 = vperm.xlu0 %2823, %v2816
      %v2825 = vpop.permute.xlu0 %2824
      %vm2827 = vcmask 130048
      %v2829 = vsel %vm2827, %v2660, 0
      %v2832 = vsel %vm2827, %v2664, 0
      %2834 = vmatprep.subr.mxu0 %v2711
      %2835 = vmatpush1.msra.mxu0 %v2710
      %2836 = vmatprep.subr.mxu0 %v2708
      %2837 = vmatpush1.msra.mxu0 %v2707
      %2838 = vmatprep.subr.mxu0 %v2705
      %2839 = vmatpush1.msra.mxu0 %v2704
      %2840 = vmatprep.subr.mxu0 %v2702
      %2841 = vmatpush1.msra.mxu0 %v2701
      %2842 = vmatprep.subr.mxu0 %v2699
      %2843 = vmatpush1.msra.mxu0 %v2698
      %2844 = vmatprep.subr.mxu0 %v2696
      %2845 = vmatpush1.msra.mxu0 %v2695
      %2846 = vmatprep.subr.mxu0 %v2693
      %2847 = vmatpush1.msra.mxu0 %v2692
      %2848 = vmatprep.subr.mxu0 %v2690
      %2849 = vmatpush1.msra.mxu0 %v2689
      %2850 = vmatprep.subr.mxu0 %v2687
      %2851 = vmatpush1.msra.mxu0 %v2686
      %2852 = vmatprep.subr.mxu0 %v2684
      %2853 = vmatpush1.msra.mxu0 %v2683
      %2854 = vmatprep.subr.mxu0 %v2681
      %2855 = vmatpush1.msra.mxu0 %v2680
      %2856 = vmatprep.subr.mxu0 %v2678
      %2857 = vmatpush1.msra.mxu0 %v2677
      %2858 = vmatprep.subr.mxu0 %v2675
      %2859 = vmatpush1.msra.mxu0 %v2674
      %2860 = vmatprep.subr.mxu0 %v2672
      %2861 = vmatpush1.msra.mxu0 %v2671
      %2862 = vmatprep.subr.mxu0 %v2669
      %2863 = vmatpush1.msra.mxu0 %v2668
      %2864 = vmatprep.subr.mxu0 %v2666
      %2865 = vmatpush1.msra.mxu0 %v2665
      %2866 = vmatprep.subr.mxu0 %v2759
      %2867 = vmatpush2.msra.mxu0 %v2758
      %2868 = vmatprep.subr.mxu0 %v2756
      %2869 = vmatpush2.msra.mxu0 %v2755
      %2870 = vmatprep.subr.mxu0 %v2753
      %2871 = vmatpush2.msra.mxu0 %v2752
      %2872 = vmatprep.subr.mxu0 %v2750
      %2873 = vmatpush2.msra.mxu0 %v2749
      %2874 = vmatprep.subr.mxu0 %v2747
      %2875 = vmatpush2.msra.mxu0 %v2746
      %2876 = vmatprep.subr.mxu0 %v2744
      %2877 = vmatpush2.msra.mxu0 %v2743
      %2878 = vmatprep.subr.mxu0 %v2741
      %2879 = vmatpush2.msra.mxu0 %v2740
      %2880 = vmatprep.subr.mxu0 %v2738
      %2881 = vmatpush2.msra.mxu0 %v2737
      %2882 = vmatprep.subr.mxu0 %v2735
      %2883 = vmatpush2.msra.mxu0 %v2734
      %2884 = vmatprep.subr.mxu0 %v2732
      %2885 = vmatpush2.msra.mxu0 %v2731
      %2886 = vmatprep.subr.mxu0 %v2729
      %2887 = vmatpush2.msra.mxu0 %v2728
      %2888 = vmatprep.subr.mxu0 %v2726
      %2889 = vmatpush2.msra.mxu0 %v2725
      %2890 = vmatprep.subr.mxu0 %v2723
      %2891 = vmatpush2.msra.mxu0 %v2722
      %2892 = vmatprep.subr.mxu0 %v2720
      %2893 = vmatpush2.msra.mxu0 %v2719
      %2894 = vmatprep.subr.mxu0 %v2717
      %2895 = vmatpush2.msra.mxu0 %v2716
      %2896 = vmatprep.subr.mxu0 %v2714
      %2897 = vmatpush2.msra.mxu0 %v2713
      %2898 = vmatprep.mubr.f32.mxu0 %v2658
      %2899 = vmatmul.mubr.f32.gmra.mxu0 %v2657
      %v2900 = vpop.f32.mrf.mxu0
      %v2901 = vadd.f32 %v2820, %v2900
      %v2902 = vpop.f32.mrf.mxu0
      %v2903 = vadd.f32 %v2820, %v2902
      %2904 = vmatprep.mubr.f32.mxu0 %v2662
      %2905 = vmatmul.mubr.f32.gmra.mxu0 %v2661
      %v2906 = vpop.f32.mrf.mxu0
      %v2907 = vadd.f32 %v2825, %v2906
      %v2908 = vpop.f32.mrf.mxu0
      %v2909 = vadd.f32 %v2825, %v2908
      %2910 = vdwg.mxu0
      %2911 = vmatprep.subr.mxu0 %v2807
      %2912 = vmatpush1.msra.mxu0 %v2806
      %2913 = vmatprep.subr.mxu0 %v2804
      %2914 = vmatpush1.msra.mxu0 %v2803
      %2915 = vmatprep.subr.mxu0 %v2801
      %2916 = vmatpush1.msra.mxu0 %v2800
      %2917 = vmatprep.subr.mxu0 %v2798
      %2918 = vmatpush1.msra.mxu0 %v2797
      %2919 = vmatprep.subr.mxu0 %v2795
      %2920 = vmatpush1.msra.mxu0 %v2794
      %2921 = vmatprep.subr.mxu0 %v2792
      %2922 = vmatpush1.msra.mxu0 %v2791
      %2923 = vmatprep.subr.mxu0 %v2789
      %2924 = vmatpush1.msra.mxu0 %v2788
      %2925 = vmatprep.subr.mxu0 %v2786
      %2926 = vmatpush1.msra.mxu0 %v2785
      %2927 = vmatprep.subr.mxu0 %v2783
      %2928 = vmatpush1.msra.mxu0 %v2782
      %2929 = vmatprep.subr.mxu0 %v2780
      %2930 = vmatpush1.msra.mxu0 %v2779
      %2931 = vmatprep.subr.mxu0 %v2777
      %2932 = vmatpush1.msra.mxu0 %v2776
      %2933 = vmatprep.subr.mxu0 %v2774
      %2934 = vmatpush1.msra.mxu0 %v2773
      %2935 = vmatprep.subr.mxu0 %v2771
      %2936 = vmatpush1.msra.mxu0 %v2770
      %2937 = vmatprep.subr.mxu0 %v2768
      %2938 = vmatpush1.msra.mxu0 %v2767
      %2939 = vmatprep.subr.mxu0 %v2765
      %2940 = vmatpush1.msra.mxu0 %v2764
      %2941 = vmatprep.subr.mxu0 %v2762
      %2942 = vmatpush1.msra.mxu0 %v2761
      %2943 = vmatprep.subr.mxu0 0.0
      %2944 = vmatpush2.msra.mxu0 0.0
      %2945 = vmatprep.subr.mxu0 0.0
      %2946 = vmatpush2.msra.mxu0 0.0
      %2947 = vmatprep.subr.mxu0 0.0
      %2948 = vmatpush2.msra.mxu0 0.0
      %2949 = vmatprep.subr.mxu0 0.0
      %2950 = vmatpush2.msra.mxu0 0.0
      %2951 = vmatprep.subr.mxu0 0.0
      %2952 = vmatpush2.msra.mxu0 0.0
      %2953 = vmatprep.subr.mxu0 0.0
      %2954 = vmatpush2.msra.mxu0 0.0
      %2955 = vmatprep.subr.mxu0 0.0
      %2956 = vmatpush2.msra.mxu0 0.0
      %2957 = vmatprep.subr.mxu0 0.0
      %2958 = vmatpush2.msra.mxu0 0.0
      %2959 = vmatprep.subr.mxu0 0.0
      %2960 = vmatpush2.msra.mxu0 0.0
      %2961 = vmatprep.subr.mxu0 0.0
      %2962 = vmatpush2.msra.mxu0 0.0
      %2963 = vmatprep.subr.mxu0 0.0
      %2964 = vmatpush2.msra.mxu0 0.0
      %2965 = vmatprep.subr.mxu0 0.0
      %2966 = vmatpush2.msra.mxu0 0.0
      %2967 = vmatprep.subr.mxu0 0.0
      %2968 = vmatpush2.msra.mxu0 0.0
      %2969 = vmatprep.subr.mxu0 0.0
      %2970 = vmatpush2.msra.mxu0 0.0
      %2971 = vmatprep.subr.mxu0 %v2813
      %2972 = vmatpush2.msra.mxu0 %v2812
      %2973 = vmatprep.subr.mxu0 %v2810
      %2974 = vmatpush2.msra.mxu0 %v2809
      %2975 = vmatprep.mubr.f32.mxu0 %v2829
      %2976 = vmatmul.mubr.f32.gmra.mxu0 %v2659
      %v2977 = vpop.f32.mrf.mxu0
      %v2978 = vadd.f32 %v2901, %v2977
      %v2979 = vpop.f32.mrf.mxu0
      %v2980 = vadd.f32 %v2903, %v2979
      %2981 = vmatprep.mubr.f32.mxu0 %v2832
      %2982 = vmatmul.mubr.f32.gmra.mxu0 %v2663
      %v2983 = vpop.f32.mrf.mxu0
      %v2984 = vadd.f32 %v2907, %v2983
      %v2985 = vpop.f32.mrf.mxu0
      %v2986 = vadd.f32 %v2909, %v2985
      %2987 = vdwg.mxu0
      %2988 = vmatprep.subr.mxu0 0.0
      %2989 = vmatpush1.msra.mxu0 %v2712
      %2990 = vmatprep.subr.mxu0 0.0
      %2991 = vmatpush1.msra.mxu0 %v2709
      %2992 = vmatprep.subr.mxu0 0.0
      %2993 = vmatpush1.msra.mxu0 %v2706
      %2994 = vmatprep.subr.mxu0 0.0
      %2995 = vmatpush1.msra.mxu0 %v2703
      %2996 = vmatprep.subr.mxu0 0.0
      %2997 = vmatpush1.msra.mxu0 %v2700
      %2998 = vmatprep.subr.mxu0 0.0
      %2999 = vmatpush1.msra.mxu0 %v2697
      %3000 = vmatprep.subr.mxu0 0.0
      %3001 = vmatpush1.msra.mxu0 %v2694
      %3002 = vmatprep.subr.mxu0 0.0
      %3003 = vmatpush1.msra.mxu0 %v2691
      %3004 = vmatprep.subr.mxu0 0.0
      %3005 = vmatpush1.msra.mxu0 %v2688
      %3006 = vmatprep.subr.mxu0 0.0
      %3007 = vmatpush1.msra.mxu0 %v2685
      %3008 = vmatprep.subr.mxu0 0.0
      %3009 = vmatpush1.msra.mxu0 %v2682
      %3010 = vmatprep.subr.mxu0 0.0
      %3011 = vmatpush1.msra.mxu0 %v2679
      %3012 = vmatprep.subr.mxu0 0.0
      %3013 = vmatpush1.msra.mxu0 %v2676
      %3014 = vmatprep.subr.mxu0 0.0
      %3015 = vmatpush1.msra.mxu0 %v2673
      %3016 = vmatprep.subr.mxu0 0.0
      %3017 = vmatpush1.msra.mxu0 %v2670
      %3018 = vmatprep.subr.mxu0 0.0
      %3019 = vmatpush1.msra.mxu0 %v2667
      %3020 = vmatprep.subr.mxu0 0.0
      %3021 = vmatpush2.msra.mxu0 %v2760
      %3022 = vmatprep.subr.mxu0 0.0
      %3023 = vmatpush2.msra.mxu0 %v2757
      %3024 = vmatprep.subr.mxu0 0.0
      %3025 = vmatpush2.msra.mxu0 %v2754
      %3026 = vmatprep.subr.mxu0 0.0
      %3027 = vmatpush2.msra.mxu0 %v2751
      %3028 = vmatprep.subr.mxu0 0.0
      %3029 = vmatpush2.msra.mxu0 %v2748
      %3030 = vmatprep.subr.mxu0 0.0
      %3031 = vmatpush2.msra.mxu0 %v2745
      %3032 = vmatprep.subr.mxu0 0.0
      %3033 = vmatpush2.msra.mxu0 %v2742
      %3034 = vmatprep.subr.mxu0 0.0
      %3035 = vmatpush2.msra.mxu0 %v2739
      %3036 = vmatprep.subr.mxu0 0.0
      %3037 = vmatpush2.msra.mxu0 %v2736
      %3038 = vmatprep.subr.mxu0 0.0
      %3039 = vmatpush2.msra.mxu0 %v2733
      %3040 = vmatprep.subr.mxu0 0.0
      %3041 = vmatpush2.msra.mxu0 %v2730
      %3042 = vmatprep.subr.mxu0 0.0
      %3043 = vmatpush2.msra.mxu0 %v2727
      %3044 = vmatprep.subr.mxu0 0.0
      %3045 = vmatpush2.msra.mxu0 %v2724
      %3046 = vmatprep.subr.mxu0 0.0
      %3047 = vmatpush2.msra.mxu0 %v2721
      %3048 = vmatprep.subr.mxu0 0.0
      %3049 = vmatpush2.msra.mxu0 %v2718
      %3050 = vmatprep.subr.mxu0 0.0
      %3051 = vmatpush2.msra.mxu0 %v2715
      %3052 = vmatprep.mubr.f32.mxu0 %v2658
      %3053 = vmatmul.mubr.f32.gmra.mxu0 %v2657
      %v3054 = vpop.f32.mrf.mxu0
      %v3055 = vadd.f32 %v2820, %v3054
      %v3056 = vpop.f32.mrf.mxu0
      %3057 = vmatprep.mubr.f32.mxu0 %v2662
      %3058 = vmatmul.mubr.f32.gmra.mxu0 %v2661
      %v3059 = vpop.f32.mrf.mxu0
      %v3060 = vadd.f32 %v2825, %v3059
      %v3061 = vpop.f32.mrf.mxu0
      %3062 = vdwg.mxu0
      %3063 = vmatprep.subr.mxu0 0.0
      %3064 = vmatpush1.msra.mxu0 %v2808
      %3065 = vmatprep.subr.mxu0 0.0
      %3066 = vmatpush1.msra.mxu0 %v2805
      %3067 = vmatprep.subr.mxu0 0.0
      %3068 = vmatpush1.msra.mxu0 %v2802
      %3069 = vmatprep.subr.mxu0 0.0
      %3070 = vmatpush1.msra.mxu0 %v2799
      %3071 = vmatprep.subr.mxu0 0.0
      %3072 = vmatpush1.msra.mxu0 %v2796
      %3073 = vmatprep.subr.mxu0 0.0
      %3074 = vmatpush1.msra.mxu0 %v2793
      %3075 = vmatprep.subr.mxu0 0.0
      %3076 = vmatpush1.msra.mxu0 %v2790
      %3077 = vmatprep.subr.mxu0 0.0
      %3078 = vmatpush1.msra.mxu0 %v2787
      %3079 = vmatprep.subr.mxu0 0.0
      %3080 = vmatpush1.msra.mxu0 %v2784
      %3081 = vmatprep.subr.mxu0 0.0
      %3082 = vmatpush1.msra.mxu0 %v2781
      %3083 = vmatprep.subr.mxu0 0.0
      %3084 = vmatpush1.msra.mxu0 %v2778
      %3085 = vmatprep.subr.mxu0 0.0
      %3086 = vmatpush1.msra.mxu0 %v2775
      %3087 = vmatprep.subr.mxu0 0.0
      %3088 = vmatpush1.msra.mxu0 %v2772
      %3089 = vmatprep.subr.mxu0 0.0
      %3090 = vmatpush1.msra.mxu0 %v2769
      %3091 = vmatprep.subr.mxu0 0.0
      %3092 = vmatpush1.msra.mxu0 %v2766
      %3093 = vmatprep.subr.mxu0 0.0
      %3094 = vmatpush1.msra.mxu0 %v2763
      %3095 = vmatprep.subr.mxu0 0.0
      %3096 = vmatpush2.msra.mxu0 0.0
      %3097 = vmatprep.subr.mxu0 0.0
      %3098 = vmatpush2.msra.mxu0 0.0
      %3099 = vmatprep.subr.mxu0 0.0
      %3100 = vmatpush2.msra.mxu0 0.0
      %3101 = vmatprep.subr.mxu0 0.0
      %3102 = vmatpush2.msra.mxu0 0.0
      %3103 = vmatprep.subr.mxu0 0.0
      %3104 = vmatpush2.msra.mxu0 0.0
      %3105 = vmatprep.subr.mxu0 0.0
      %3106 = vmatpush2.msra.mxu0 0.0
      %3107 = vmatprep.subr.mxu0 0.0
      %3108 = vmatpush2.msra.mxu0 0.0
      %3109 = vmatprep.subr.mxu0 0.0
      %3110 = vmatpush2.msra.mxu0 0.0
      %3111 = vmatprep.subr.mxu0 0.0
      %3112 = vmatpush2.msra.mxu0 0.0
      %3113 = vmatprep.subr.mxu0 0.0
      %3114 = vmatpush2.msra.mxu0 0.0
      %3115 = vmatprep.subr.mxu0 0.0
      %3116 = vmatpush2.msra.mxu0 0.0
      %3117 = vmatprep.subr.mxu0 0.0
      %3118 = vmatpush2.msra.mxu0 0.0
      %3119 = vmatprep.subr.mxu0 0.0
      %3120 = vmatpush2.msra.mxu0 0.0
      %3121 = vmatprep.subr.mxu0 0.0
      %3122 = vmatpush2.msra.mxu0 0.0
      %3123 = vmatprep.subr.mxu0 0.0
      %3124 = vmatpush2.msra.mxu0 %v2814
      %3125 = vmatprep.subr.mxu0 0.0
      %3126 = vmatpush2.msra.mxu0 %v2811
      %3127 = vmatprep.mubr.f32.mxu0 %v2829
      %3128 = vmatmul.mubr.f32.gmra.mxu0 %v2659
      %v3129 = vpop.f32.mrf.mxu0
      %v3130 = vadd.f32 %v3055, %v3129
      %v3131 = vpop.f32.mrf.mxu0
      %3132 = vmatprep.mubr.f32.mxu0 %v2832
      %3133 = vmatmul.mubr.f32.gmra.mxu0 %v2663
      %v3134 = vpop.f32.mrf.mxu0
      %v3135 = vadd.f32 %v3060, %v3134
      %v3136 = vpop.f32.mrf.mxu0
      %3137 = vdwg.mxu0
      %v3138 = vmax.f32 %v2978, 0.0
      %v3139 = vmax.f32 %v2980, 0.0
      %v3140 = vmax.f32 %v3130, 0.0
      %v3141 = vmax.f32 %v2984, 0.0
      %v3142 = vmax.f32 %v2986, 0.0
      %v3143 = vmax.f32 %v3135, 0.0
      %3144 = vst [vmem:[%s332 + $0x18] sm:$0xff] %v3138
      %3145 = vst [vmem:[%s332 + $0x20] sm:$0xff] %v3139
      %3146 = vst [vmem:[%s332 + $0x28] sm:$0xff] %v3140
      %3147 = vst [vmem:[%s332 + $0x30] sm:$0xff] %v3141
      %3148 = vst [vmem:[%s332 + $0x38] sm:$0xff] %v3142
      %3149 = vst [vmem:[%s332 + $0x40] sm:$0xff] %v3143
      %p3150 = scmp.lt.s32.totalorder %s20, 1
      %s3151 = scalar_select %p3150, %s20, 1
      %s3152 = smul.addr %s3151, 12
      %s3153 = smul.addr %s3152, 8
      %s3154 = scalar_lea.vmem %s9, %s3153
      // Predicated region
      $region57: #{inception_block_forward.1} parent=55 // pred_check
        %p3155 = pneg %p232
      $region58: #{inception_block_forward.1} parent=55 // pred_check_branch
        %3157 = sbr.rel (%p3155) target = $region60
      $region59: #{inception_block_forward.1} parent=55 // pred_region
        _
      $region60: #{inception_block_forward.1} parent=55 // pred_fallthru
        _
    $region56: #{inception_block_forward.1} parent=5 // pred_fallthru
      _
    %p3158 = scmp.le.s32.totalorder 2, %s15
    // Predicated region
    $region61: #{inception_block_forward.1} parent=5 // pred_check
      %p3159 = pneg %p3158
    $region62: #{inception_block_forward.1} parent=5 // pred_check_branch
      %3161 = sbr.rel (%p3159) target = $region64
    $region63: #{inception_block_forward.1} parent=5 // pred_region
      %s3162 = ssub.s32 %s15, 2
      // Predicated region
      $region65: #{inception_block_forward.1} parent=63 // pred_check
        %p3163 = pneg %p238
      $region66: #{inception_block_forward.1} parent=63 // pred_check_branch
        %3165 = sbr.rel (%p3163) target = $region68
      $region67: #{inception_block_forward.1} parent=63 // pred_region
        %p3166 = scmp.lt.s32.totalorder %s21, 1
        %s3167 = scalar_select %p3166, %s21, 1
        %s3168 = smul.addr %s3167, 12
        %s3169 = smul.addr %s3168, 8
        %s3170 = scalar_lea.vmem %s9, %s3169
      $region68: #{inception_block_forward.1} parent=63 // pred_fallthru
        _
    $region64: #{inception_block_forward.1} parent=5 // pred_fallthru
      _
  $region6: #{inception_block_forward.1} parent=0 // loop_footer
    %s19 = sadd.s32 1, %s15
  $region7: #{inception_block_forward.1} parent=0 // loop_footer_branch
    %14 = sbr.rel target = $region3
  $region8: #{inception_block_forward.1} parent=0 // loop_exit
    _

</llo_original>
